<compile_context>
chip_gen: v5e
topology: v5e:2x2
jax: 0.10.0
libtpu: 0.0.40
codegen_flags: <defaults>
</compile_context>

<pallas_src>
import functools

import jax
import jax.numpy as jnp
from jax import lax
from jax.experimental import pallas as pl
from jax.experimental.pallas import tpu as pltpu


# --------------------------- hardware-aware sizing ---------------------------


def _round_up(v, m):
    return ((v + m - 1) // m) * m


def _vmem_budget_bytes():
    """Generation-aware VMEM budget (~75% of physical), conservative fallback."""
    try:
        info = pltpu.get_tpu_info()
        cap = int(getattr(info, "vmem_capacity_bytes", 64 * 1024 * 1024))
    except Exception:
        cap = 64 * 1024 * 1024            # v7x physical size; safe everywhere
    return max(16 * 1024 * 1024, (cap * 3) // 4)


def _num_stat_splits():
    """Two partial-stat accumulators only on 2-TensorCore chips (v7x)."""
    try:
        kind = jax.devices()[0].device_kind.lower()
    except Exception:
        return 1
    return 2 if ("v7" in kind or "7x" in kind) else 1


def _pick_row_tile(n_rows, d, budget, *, target=1024):
    """Largest row tile (multiple of 8, <= target) whose working set fits VMEM.

    Residency is dominated by the (D,D) f32 Gram accumulator (x2 buffers) in the
    stats kernel / the (D,D) bf16 eigvec matrix in the noise kernel; streaming
    buffers are x (in), bf16 coefficients (in) and the output, double-buffered.
    """
    d_lane = _round_up(d, 128)
    resident = 2 * d_lane * d_lane * 4 + 64 * 1024
    per_row = 2 * (4 + 2 + 4) * d_lane        # double-buffered x + coeff + out
    cap = max(8, (budget - resident) // per_row)
    tn = min(target, cap, _round_up(n_rows, 8))
    return max(8, (tn // 8) * 8)


# ------------------------------ Pallas kernels -------------------------------


def _stats_kernel(x_ref, mu0_ref, sum_ref, gram_ref, *, n_rows, k_steps):
    """Fused statistics on mean-shifted patches: column sums + Gram matrix.

    Grid = (n_split, k).  The outer axis is 'parallel' (one partial accumulator
    per TensorCore on v7x); the inner axis is the row-tile reduction with
    resident output blocks.  The row tail (and any duplicated clamped block)
    is masked to zero in-kernel, so no padded copy of the patch matrix exists.
    """
    c = pl.program_id(0)
    k = pl.program_id(1)

    @pl.when(k == 0)
    def _():
        sum_ref[...] = jnp.zeros_like(sum_ref)
        gram_ref[...] = jnp.zeros_like(gram_ref)

    tn = x_ref.shape[0]
    row0 = (c * k_steps + k) * tn                               # global row offset
    rows = lax.broadcasted_iota(jnp.int32, (tn, 1), 0) + row0
    valid = rows < n_rows                                       # (tn, 1) mask

    # Shift by the approximate mean FIRST (cov is shift-invariant), then mask:
    # invalid rows contribute exactly zero to both the sums and the Gram.
    xs = x_ref[...].astype(jnp.float32) - mu0_ref[...]          # (tn, D) f32
    xs = jnp.where(valid, xs, 0.0)

    sum_ref[...] += jnp.sum(xs, axis=0, keepdims=True)[None]    # (1, 1, D)
    # X^T X without materializing a transpose: contract over the row axis.
    gram_ref[...] += lax.dot_general(
        xs, xs, dimension_numbers=(((0,), (0,)), ((), ())),
        preferred_element_type=jnp.float32)[None]               # (1, D, D)


def _noise_add_kernel(x_ref, coeff_ref, vt_ref, out_ref):
    """out = x + coeff @ (scale * eig_vecs.T).

    noise_scale * sqrt(eigenvalues) is pre-folded into vt_ref (bf16) in the
    wrapper; coeff is standard-normal bf16, so the kernel is one MXU matmul
    (f32 accumulate) plus one VPU add per tile.
    """
    noise = jnp.dot(coeff_ref[...], vt_ref[...],
                    preferred_element_type=jnp.float32)         # (tn, D) f32
    out_ref[...] = (x_ref[...].astype(jnp.float32) + noise).astype(out_ref.dtype)


# ------------------------------ Pallas wrappers ------------------------------


def fused_patch_stats(x_patches, mu0, tn, n_split, vmem_limit, eps=1e-6):
    """Single pass over the (N, D) patch matrix -> (mean, covariance)."""
    n, d = x_patches.shape
    blocks_total = pl.cdiv(n, tn)
    n_split = max(1, min(int(n_split), blocks_total))
    k_steps = pl.cdiv(blocks_total, n_split)

    kernel = functools.partial(_stats_kernel, n_rows=n, k_steps=k_steps)

    def x_map(c, k):
        # Clamp to the last real block; any duplicated block is fully masked
        # out inside the kernel (its unclamped row offset is >= n).
        return (jnp.minimum(c * k_steps + k, blocks_total - 1), 0)

    sums, gram = pl.pallas_call(
        kernel,
        out_shape=(jax.ShapeDtypeStruct((n_split, 1, d), jnp.float32),
                   jax.ShapeDtypeStruct((n_split, d, d), jnp.float32)),
        grid=(n_split, k_steps),
        in_specs=[pl.BlockSpec((tn, d), x_map),
                  pl.BlockSpec((1, d), lambda c, k: (0, 0))],
        out_specs=(pl.BlockSpec((1, 1, d), lambda c, k: (c, 0, 0)),
                   pl.BlockSpec((1, d, d), lambda c, k: (c, 0, 0))),
        compiler_params=pltpu.CompilerParams(
            dimension_semantics=("parallel", "arbitrary"),
            vmem_limit_bytes=vmem_limit),
    )(x_patches, mu0)

    n_f = float(n)
    col_sum = jnp.sum(sums[:, 0, :], axis=0)                    # (D,) shifted sums
    gram_d = jnp.sum(gram, axis=0)                              # (D, D)
    mean_s = col_sum / n_f                                      # shifted mean (small)
    cov = (gram_d - n_f * jnp.outer(mean_s, mean_s)) / (n_f - 1.0 + eps)
    mean = mean_s[None, :] + mu0                                # true mean (1, D)
    return mean, cov


def add_pca_noise(x_patches, coeff, vt_scaled, tn, vmem_limit):
    """out = x + coeff @ vt_scaled, tiled over rows, output aliased onto x."""
    n, d = x_patches.shape
    # NOTE: vt_scaled is grid-invariant; where supported it could be
    # single-buffered to halve its VMEM residency (kept default here).
    return pl.pallas_call(
        _noise_add_kernel,
        out_shape=jax.ShapeDtypeStruct((n, d), x_patches.dtype),
        grid=(pl.cdiv(n, tn),),
        in_specs=[pl.BlockSpec((tn, d), lambda i: (i, 0)),      # x patches
                  pl.BlockSpec((tn, d), lambda i: (i, 0)),      # bf16 N(0,1) coeffs
                  pl.BlockSpec((d, d), lambda i: (0, 0))],      # scaled eig_vecs.T
        out_specs=pl.BlockSpec((tn, d), lambda i: (i, 0)),
        input_output_aliases={0: 0},                            # x is dead after
        compiler_params=pltpu.CompilerParams(
            dimension_semantics=("parallel",),
            vmem_limit_bytes=vmem_limit),
    )(x_patches, coeff, vt_scaled)


# -------------------------------- forward pass -------------------------------


def ema_patch_pca_noise_forward(x, key, *, patch_size=4, noise_scale=0.5,
                                alpha=0.995, ema_cov=None, training=True):
    """Functional PCA-noise forward: patch statistics -> eigh -> eigen-basis noise.

    Returns (noisy_image, new_ema_cov).  ema_cov=None reproduces the first-call
    path (new_ema_cov = cov), matching the module's anchors-from-current-batch
    linear-kernel behaviour.
    """
    if not training:
        return x, ema_cov

    b, c, h, w = x.shape
    p = patch_size
    assert h % p == 0 and w % p == 0, "Image dims must be divisible by patch size"
    nh, nw = h // p, w // p
    d = c * p * p
    n = b * nh * nw

    budget = _vmem_budget_bytes()
    n_split = _num_stat_splits()
    tn = _pick_row_tile(n, d, budget)

    # ---- glue: patchify (matches torch unfold + permute(0,2,3,1,4,5)).
    # Kept in the SOURCE dtype so lower-precision images stream at half width.
    # TODO(synk): folding this 6-D transpose into the kernels' index_maps would
    # save a full-image HBM pass; left in XLA.
    x_patches = (x.reshape(b, c, nh, p, nw, p)
                 .transpose(0, 2, 4, 1, 3, 5)                   # (B, nh, nw, C, p, p)
                 .reshape(n, d))                                 # (N, D), x.dtype

    # Cheap approximate per-feature mean from a small row subsample: bounds
    # catastrophic cancellation in the one-pass (Gram - N m m^T) covariance.
    mu0 = jnp.mean(x_patches[:min(n, 1024)].astype(jnp.float32),
                   axis=0, keepdims=True)                        # (1, D) f32

    # ---- Pallas: fused mean + covariance (single pass over the patches) ----
    _, cov = fused_patch_stats(x_patches, mu0, tn, n_split, budget)

    # ---- glue: EMA update + eigendecomposition ----
    new_ema_cov = cov if ema_cov is None else ema_cov * alpha + cov * (1.0 - alpha)

    # TODO(synk): eigh has no Pallas equivalent; computed with XLA's eigh.
    eig_vals, eig_vecs = jnp.linalg.eigh(
        new_ema_cov + 1e-6 * jnp.eye(d, dtype=jnp.float32))
    eig_vals = eig_vals[::-1]                                    # descending
    eig_vecs = eig_vecs[:, ::-1]

    # Static-shape replacement for the valid_components slice: components with
    # eig_vals <= 1e-6 get zero scale, contributing exactly zero noise.
    valid = eig_vals > 1e-6
    scale = jnp.where(valid,
                      jnp.sqrt(jnp.clip(eig_vals, 0.0)) * noise_scale, 0.0)
    # Fold the per-component scale into the back-projection matrix (one-time
    # (D,D) op) and feed the MXU in bf16 with f32 accumulation.
    vt_scaled = (scale[:, None] * eig_vecs.T).astype(jnp.bfloat16)   # (D, D)

    # Standard-normal coefficients generated outside the kernel (in-kernel
    # pltpu PRNG has no interpret/CPU lowering), streamed as bf16.
    coeff = jax.random.normal(key, (n, d), dtype=jnp.bfloat16)

    # ---- Pallas: pca-noise matmul + add (output aliased onto x_patches) ----
    noisy_flat = add_pca_noise(x_patches, coeff, vt_scaled, tn, budget)

    # ---- glue: un-patchify (matches torch permute(0,3,1,4,2,5)) ----
    noisy_image = (noisy_flat.reshape(b, nh, nw, c, p, p)
                   .transpose(0, 3, 1, 4, 2, 5)                  # (B, C, nh, p, nw, p)
                   .reshape(b, c, h, w)).astype(x.dtype)

    return noisy_image, new_ema_cov


# ------------------------------------ main ------------------------------------


if __name__ == "__main__":
    key = jax.random.PRNGKey(0)
    k_x, k_noise = jax.random.split(key)

    # small shapes: B=2, C=4, H=W=16, patch_size=4 -> N=32 patches, D=64 feats
    B, C, H, W, P = 2, 4, 16, 16, 4
    # Non-zero mean exercises the shifted-Gram covariance path.
    x = jax.random.normal(k_x, (B, C, H, W), dtype=jnp.float32) + 2.0

    fwd = jax.jit(functools.partial(
        ema_patch_pca_noise_forward, patch_size=P, noise_scale=0.5,
        alpha=0.995, ema_cov=None, training=True))

    noisy_image, ema_cov = fwd(x, k_noise)
    noisy_image = jax.block_until_ready(noisy_image)
    ema_cov = jax.block_until_ready(ema_cov)

    D = C * P * P
    N = B * (H // P) * (W // P)
    assert noisy_image.shape == x.shape
    assert ema_cov.shape == (D, D)
    assert bool(jnp.all(jnp.isfinite(noisy_image)))
    assert bool(jnp.all(jnp.isfinite(ema_cov)))
    # noise was actually injected
    assert bool(jnp.any(jnp.abs(noisy_image - x) > 1e-3))

    # pure-JAX reference for the fused statistics (mean + covariance)
    xp = (x.reshape(B, C, H // P, P, W // P, P)
          .transpose(0, 2, 4, 1, 3, 5).reshape(N, D)).astype(jnp.float32)
    ref_mean = xp.mean(axis=0, keepdims=True)
    ref_cov = (xp - ref_mean).T @ (xp - ref_mean) / (N - 1 + 1e-6)
    assert bool(jnp.allclose(ema_cov, ref_cov, atol=1e-3, rtol=1e-3))

    print("KERNEL_OK")
</pallas_src>

<mosaic_0001>
module attributes {stable_mosaic.version = 11 : i64} {
  func.func @_stats_kernel(%arg0: i32, %arg1: i32, %arg2: memref<32x64xf32, #tpu.memory_space<vmem>>, %arg3: memref<1x64xf32, #tpu.memory_space<vmem>>, %arg4: memref<1x1x64xf32, #tpu.memory_space<vmem>>, %arg5: memref<1x64x64xf32, #tpu.memory_space<vmem>>) attributes {dimension_semantics = [#tpu.dimension_semantics<parallel>, #tpu.dimension_semantics<arbitrary>], iteration_bounds = array<i64: 1, 1>, scalar_prefetch = 0 : i64, scratch_operands = 0 : i64, tpu.core_type = #tpu.core_type<tc>, window_params = [{transform_indices = @transform_0, window_bounds = array<i64: 32, 64>}, {pipeline_mode = #tpu.pipeline_mode<synchronous>, transform_indices = @transform_1, window_bounds = array<i64: 1, 64>}, {transform_indices = @transform_2, window_bounds = array<i64: 1, 1, 64>}, {transform_indices = @transform_3, window_bounds = array<i64: 1, 64, 64>}]} {
    %c0_i32 = arith.constant 0 : i32
    %0 = arith.cmpi eq, %arg1, %c0_i32 : i32
    %1 = arith.extui %0 : i1 to i32
    %c0_i32_0 = arith.constant 0 : i32
    %2 = arith.cmpi ne, %1, %c0_i32_0 : i32
    scf.if %2 {
      %cst_19 = arith.constant 0.000000e+00 : f32
      %30 = vector.broadcast %cst_19 : f32 to vector<1x1x64xf32>
      %c0_20 = arith.constant 0 : index
      %c0_21 = arith.constant 0 : index
      %c0_22 = arith.constant 0 : index
      %31 = vector.load %arg4[%c0_20, %c0_21, %c0_22] : memref<1x1x64xf32, #tpu.memory_space<vmem>>, vector<1x1x64xf32>
      tpu.vector_store %arg4[%c0_20, %c0_21, %c0_22], %30 {strides = array<i32>} : memref<1x1x64xf32, #tpu.memory_space<vmem>>, vector<1x1x64xf32>,
      %cst_23 = arith.constant 0.000000e+00 : f32
      %32 = vector.broadcast %cst_23 : f32 to vector<1x64x64xf32>
      %c0_24 = arith.constant 0 : index
      %c0_25 = arith.constant 0 : index
      %c0_26 = arith.constant 0 : index
      %33 = vector.load %arg5[%c0_24, %c0_25, %c0_26] : memref<1x64x64xf32, #tpu.memory_space<vmem>>, vector<1x64x64xf32>
      tpu.vector_store %arg5[%c0_24, %c0_25, %c0_26], %32 {strides = array<i32>} : memref<1x64x64xf32, #tpu.memory_space<vmem>>, vector<1x64x64xf32>,
    } else {
    }
    %c1_i32 = arith.constant 1 : i32
    %3 = arith.muli %arg0, %c1_i32 : i32
    %4 = arith.addi %3, %arg1 : i32
    %c32_i32 = arith.constant 32 : i32
    %5 = arith.muli %4, %c32_i32 : i32
    %6 = tpu.iota {dimensions = array<i32: 0>} : vector<32x1xi32>
    %7 = vector.broadcast %5 : i32 to vector<32x1xi32>
    %8 = arith.addi %6, %7 : vector<32x1xi32>
    %c32_i32_1 = arith.constant 32 : i32
    %9 = vector.broadcast %c32_i32_1 : i32 to vector<32x1xi32>
    %10 = arith.cmpi slt, %8, %9 : vector<32x1xi32>
    %c0 = arith.constant 0 : index
    %c0_2 = arith.constant 0 : index
    %11 = vector.load %arg2[%c0, %c0_2] : memref<32x64xf32, #tpu.memory_space<vmem>>, vector<32x64xf32>
    %c0_3 = arith.constant 0 : index
    %c0_4 = arith.constant 0 : index
    %12 = vector.load %arg3[%c0_3, %c0_4] : memref<1x64xf32, #tpu.memory_space<vmem>>, vector<1x64xf32>
    %13 = vector.broadcast %12 : vector<1x64xf32> to vector<32x64xf32>
    %14 = arith.subf %11, %13 : vector<32x64xf32>
    %cst = arith.constant 0.000000e+00 : f32
    %15 = vector.shape_cast %10 : vector<32x1xi1> to vector<32x1xi1>
    %16 = vector.broadcast %15 : vector<32x1xi1> to vector<32x64xi1>
    %17 = vector.broadcast %cst : f32 to vector<32x64xf32>
    %18 = arith.select %16, %14, %17 : vector<32x64xi1>, vector<32x64xf32>
    %c0_5 = arith.constant 0 : index
    %c0_6 = arith.constant 0 : index
    %c0_7 = arith.constant 0 : index
    %19 = vector.load %arg4[%c0_5, %c0_6, %c0_7] : memref<1x1x64xf32, #tpu.memory_space<vmem>>, vector<1x1x64xf32>
    %cst_8 = arith.constant dense<0.000000e+00> : vector<64xf32>
    %20 = vector.multi_reduction <add>, %18, %cst_8 [0] : vector<32x64xf32> to vector<64xf32>
    %21 = vector.shape_cast %20 : vector<64xf32> to vector<1x64xf32>
    %22 = vector.shape_cast %21 : vector<1x64xf32> to vector<1x1x64xf32>
    %23 = arith.addf %19, %22 : vector<1x1x64xf32>
    %c0_9 = arith.constant 0 : index
    %c0_10 = arith.constant 0 : index
    %c0_11 = arith.constant 0 : index
    %24 = vector.load %arg4[%c0_9, %c0_10, %c0_11] : memref<1x1x64xf32, #tpu.memory_space<vmem>>, vector<1x1x64xf32>
    tpu.vector_store %arg4[%c0_9, %c0_10, %c0_11], %23 {strides = array<i32>} : memref<1x1x64xf32, #tpu.memory_space<vmem>>, vector<1x1x64xf32>,
    %c0_12 = arith.constant 0 : index
    %c0_13 = arith.constant 0 : index
    %c0_14 = arith.constant 0 : index
    %25 = vector.load %arg5[%c0_12, %c0_13, %c0_14] : memref<1x64x64xf32, #tpu.memory_space<vmem>>, vector<1x64x64xf32>
    %cst_15 = arith.constant dense<0.000000e+00> : vector<64x64xf32>
    %26 = tpu.matmul %18, %18, %cst_15 {dimension_numbers = #tpu.dot_dimension_numbers<[0], [0], [1], [1], [0, 1, 1, 1], [], []>} : vector<32x64xf32>, vector<32x64xf32>, vector<64x64xf32> -> vector<64x64xf32>
    %27 = vector.shape_cast %26 : vector<64x64xf32> to vector<1x64x64xf32>
    %28 = arith.addf %25, %27 : vector<1x64x64xf32>
    %c0_16 = arith.constant 0 : index
    %c0_17 = arith.constant 0 : index
    %c0_18 = arith.constant 0 : index
    %29 = vector.load %arg5[%c0_16, %c0_17, %c0_18] : memref<1x64x64xf32, #tpu.memory_space<vmem>>, vector<1x64x64xf32>
    tpu.vector_store %arg5[%c0_16, %c0_17, %c0_18], %28 {strides = array<i32>} : memref<1x64x64xf32, #tpu.memory_space<vmem>>, vector<1x64x64xf32>,
    return
  }
  func.func @transform_0(%arg0: i32, %arg1: i32) -> (i32, i32) {
    %c1_i32 = arith.constant 1 : i32
    %0 = arith.muli %arg0, %c1_i32 : i32
    %1 = arith.addi %0, %arg1 : i32
    %c0_i32 = arith.constant 0 : i32
    %2 = arith.minsi %1, %c0_i32 : i32
    %c0_i32_0 = arith.constant 0 : i32
    %c0_i32_1 = arith.constant 0 : i32
    return %2, %c0_i32_0 : i32, i32
  }
  func.func @transform_1(%arg0: i32, %arg1: i32) -> (i32, i32) {
    %c0_i32 = arith.constant 0 : i32
    %c0_i32_0 = arith.constant 0 : i32
    %c0_i32_1 = arith.constant 0 : i32
    return %c0_i32, %c0_i32_0 : i32, i32
  }
  func.func @transform_2(%arg0: i32, %arg1: i32) -> (i32, i32, i32) {
    %c0_i32 = arith.constant 0 : i32
    %c0_i32_0 = arith.constant 0 : i32
    %c0_i32_1 = arith.constant 0 : i32
    return %arg0, %c0_i32, %c0_i32_0 : i32, i32, i32
  }
  func.func @transform_3(%arg0: i32, %arg1: i32) -> (i32, i32, i32) {
    %c0_i32 = arith.constant 0 : i32
    %c0_i32_0 = arith.constant 0 : i32
    %c0_i32_1 = arith.constant 0 : i32
    return %arg0, %c0_i32, %c0_i32_0 : i32, i32, i32
  }
}

module attributes {stable_mosaic.version = 11 : i64} {
  func.func @_noise_add_kernel(%arg0: i32, %arg1: memref<32x64xf32, #tpu.memory_space<vmem>>, %arg2: memref<32x64xbf16, #tpu.memory_space<vmem>>, %arg3: memref<64x64xbf16, #tpu.memory_space<vmem>>, %arg4: memref<32x64xf32, #tpu.memory_space<vmem>>) attributes {dimension_semantics = [#tpu.dimension_semantics<parallel>], iteration_bounds = array<i64: 1>, scalar_prefetch = 0 : i64, scratch_operands = 0 : i64, tpu.core_type = #tpu.core_type<tc>, window_params = [{transform_indices = @transform_0, window_bounds = array<i64: 32, 64>}, {transform_indices = @transform_1, window_bounds = array<i64: 32, 64>}, {pipeline_mode = #tpu.pipeline_mode<synchronous>, transform_indices = @transform_2, window_bounds = array<i64: 64, 64>}, {transform_indices = @transform_3, window_bounds = array<i64: 32, 64>}]} {
    %c0 = arith.constant 0 : index
    %c0_0 = arith.constant 0 : index
    %0 = vector.load %arg2[%c0, %c0_0] : memref<32x64xbf16, #tpu.memory_space<vmem>>, vector<32x64xbf16>
    %c0_1 = arith.constant 0 : index
    %c0_2 = arith.constant 0 : index
    %1 = vector.load %arg3[%c0_1, %c0_2] : memref<64x64xbf16, #tpu.memory_space<vmem>>, vector<64x64xbf16>
    %cst = arith.constant dense<0.000000e+00> : vector<32x64xf32>
    %2 = tpu.matmul %0, %1, %cst {dimension_numbers = #tpu.dot_dimension_numbers<[1], [0], [0], [1], [0, 0, 1, 1], [], []>} : vector<32x64xbf16>, vector<64x64xbf16>, vector<32x64xf32> -> vector<32x64xf32>
    %c0_3 = arith.constant 0 : index
    %c0_4 = arith.constant 0 : index
    %3 = vector.load %arg1[%c0_3, %c0_4] : memref<32x64xf32, #tpu.memory_space<vmem>>, vector<32x64xf32>
    %4 = arith.addf %3, %2 : vector<32x64xf32>
    %c0_5 = arith.constant 0 : index
    %c0_6 = arith.constant 0 : index
    %5 = vector.load %arg4[%c0_5, %c0_6] : memref<32x64xf32, #tpu.memory_space<vmem>>, vector<32x64xf32>
    tpu.vector_store %arg4[%c0_5, %c0_6], %4 {strides = array<i32>} : memref<32x64xf32, #tpu.memory_space<vmem>>, vector<32x64xf32>,
    return
  }
  func.func @transform_0(%arg0: i32) -> (i32, i32) {
    %c0_i32 = arith.constant 0 : i32
    %c0_i32_0 = arith.constant 0 : i32
    return %arg0, %c0_i32 : i32, i32
  }
  func.func @transform_1(%arg0: i32) -> (i32, i32) {
    %c0_i32 = arith.constant 0 : i32
    %c0_i32_0 = arith.constant 0 : i32
    return %arg0, %c0_i32 : i32, i32
  }
  func.func @transform_2(%arg0: i32) -> (i32, i32) {
    %c0_i32 = arith.constant 0 : i32
    %c0_i32_0 = arith.constant 0 : i32
    %c0_i32_1 = arith.constant 0 : i32
    return %c0_i32, %c0_i32_0 : i32, i32
  }
  func.func @transform_3(%arg0: i32) -> (i32, i32) {
    %c0_i32 = arith.constant 0 : i32
    %c0_i32_0 = arith.constant 0 : i32
    return %arg0, %c0_i32 : i32, i32
  }
}

</mosaic_0001>

<llo_original>
// kernel: custom-call.2
$region0: #{custom-call.2}
  %s0 = inlined_call_operand.vmem [shape: f32[32,32], index: 0, kind: input, shape index: {}]
  %s1 = inlined_call_operand.vmem [shape: f32[32,32], index: 1, kind: input, shape index: {}]
  %s2 = inlined_call_operand.vmem [shape: f32[32,32], index: 2, kind: input, shape index: {}]
  %s3 = inlined_call_operand.vmem [shape: f32[32,32], index: 3, kind: input, shape index: {}]
  %s4 = inlined_call_operand.vmem [shape: f32[32], index: 4, kind: output, shape index: {0}]
  %s5 = inlined_call_operand.vmem [shape: f32[32], index: 5, kind: output, shape index: {1}]
  %s6 = inlined_call_operand.vmem [shape: f32[32,32], index: 6, kind: output, shape index: {2}]
  %s7 = inlined_call_operand.vmem [shape: f32[32,32], index: 7, kind: output, shape index: {3}]
  %s8 = inlined_call_operand.vmem [shape: f32[32,32], index: 8, kind: output, shape index: {4}]
  %s9 = inlined_call_operand.vmem [shape: f32[32,32], index: 9, kind: output, shape index: {5}]
  %10 = xla_tuple %s4, %s5, %s6, %s7, %s8, %s9
  $region1: #{custom-call.2} parent=0
    #allocation0 [shape = 'u8[16384]{0}', space=vmem, size = 0x4000, scoped, tag = 'operand span for operand 0']
    #allocation1 [shape = 'u8[16384]{0}', space=vmem, size = 0x4000, scoped, tag = 'operand span for operand 1']
    #allocation2 [shape = 'u8[16384]{0}', space=vmem, size = 0x4000, scoped, tag = 'operand span for operand 2']
    #allocation3 [shape = 'u8[16384]{0}', space=vmem, size = 0x4000, scoped, tag = 'operand span for operand 3']
    #allocation4 [shape = 'u8[4096]{0}', space=vmem, size = 0x1000, scoped, tag = 'operand span for operand 4']
    #allocation5 [shape = 'u8[512]{0}', space=vmem, size = 0x400, scoped, tag = 'packed  for operand 4']
    #allocation6 [shape = 'u8[4096]{0}', space=vmem, size = 0x1000, scoped, tag = 'operand span for operand 5']
    #allocation7 [shape = 'u8[512]{0}', space=vmem, size = 0x400, scoped, tag = 'packed  for operand 5']
    #allocation8 [shape = 'u8[16384]{0}', space=vmem, size = 0x4000, scoped, tag = 'operand span for operand 6']
    #allocation9 [shape = 'u8[16384]{0}', space=vmem, size = 0x4000, scoped, tag = 'operand span for operand 7']
    #allocation10 [shape = 'u8[16384]{0}', space=vmem, size = 0x4000, scoped, tag = 'operand span for operand 8']
    #allocation11 [shape = 'u8[16384]{0}', space=vmem, size = 0x4000, scoped, tag = 'operand span for operand 9']
    #allocation12 [shape = 'f32[32,32]{1,0}', space=vmem, size = 0x4000, scoped, tag = 'a top-left matrix']
    #allocation13 [shape = 'f32[32,32]{1,0}', space=vmem, size = 0x4000, scoped, tag = 'a top-right matrix']
    #allocation14 [shape = 'f32[32,32]{1,0}', space=vmem, size = 0x4000, scoped, tag = 'a bottom-left matrix']
    #allocation15 [shape = 'f32[32,32]{1,0}', space=vmem, size = 0x4000, scoped, tag = 'a bottom-right matrix']
    // Predicated region
    $region2: #{custom-call.2} parent=1 // pred_check
      _
    $region3: #{custom-call.2} parent=1 // pred_check_branch
      %12 = sbr.rel (0) target = $region5
    $region4: #{custom-call.2} parent=1 // pred_region
      %p14 = scmp.gt.s32.totalorder 4, 0
      // Predicated region
      $region6: #{custom-call.2} parent=4 // pred_check
        %p15 = pneg %p14
      $region7: #{custom-call.2} parent=4 // pred_check_branch
        %17 = sbr.rel (%p15) target = $region9
      $region8: #{custom-call.2} parent=4 // pred_region
        %s18 = ssub.s32 4, 1
        %s19 = smul.u32 %s18, 8
        %s20 = scalar_lea.vmem %s0, %s19
        %v21 = vld [vmem:[%s0] sm:$0xff]
        // While loop
        $region10: #{custom-call.2} parent=8 // loop_pre_header
          _
        $region11: #{custom-call.2} parent=8 // loop_header
          %s22 = sphi %s0, %s44
          %s23 = sphi [#allocation0], %s45
          %v24 = vphi %v21, %v46
          %s25 = ssub.s32 %s20, 64
          %p26 = scmp.gt.s32.totalorder %s22, %s25
        $region12: #{custom-call.2} parent=8 // loop_header_branch
          %28 = sbr.rel (%p26) target = $region16
        $region13: #{custom-call.2} parent=8 // loop_body
          %29 = vst [vmem:[%s23] sm:$0xff] %v24
          %v30 = vld [vmem:[%s22 + $0x8] sm:$0xff]
          %31 = vst [vmem:[%s23 + $0x8] sm:$0xff] %v30
          %v32 = vld [vmem:[%s22 + $0x10] sm:$0xff]
          %33 = vst [vmem:[%s23 + $0x10] sm:$0xff] %v32
          %v34 = vld [vmem:[%s22 + $0x18] sm:$0xff]
          %35 = vst [vmem:[%s23 + $0x18] sm:$0xff] %v34
          %v36 = vld [vmem:[%s22 + $0x20] sm:$0xff]
          %37 = vst [vmem:[%s23 + $0x20] sm:$0xff] %v36
          %v38 = vld [vmem:[%s22 + $0x28] sm:$0xff]
          %39 = vst [vmem:[%s23 + $0x28] sm:$0xff] %v38
          %v40 = vld [vmem:[%s22 + $0x30] sm:$0xff]
          %41 = vst [vmem:[%s23 + $0x30] sm:$0xff] %v40
          %v42 = vld [vmem:[%s22 + $0x38] sm:$0xff]
          %43 = vst [vmem:[%s23 + $0x38] sm:$0xff] %v42
        $region14: #{custom-call.2} parent=8 // loop_footer
          %s44 = scalar_lea.vmem %s22, 64
          %s45 = scalar_lea.vmem %s23, 64
          %v46 = vld [vmem:[%s22 + $0x40] sm:$0xff]
        $region15: #{custom-call.2} parent=8 // loop_footer_branch
          %47 = sbr.rel target = $region11
        $region16: #{custom-call.2} parent=8 // loop_exit
          _
        // While loop
        $region17: #{custom-call.2} parent=8 // loop_pre_header
          _
        $region18: #{custom-call.2} parent=8 // loop_header
          %s48 = sphi %s22, %s56
          %s49 = sphi %s23, %s57
          %v50 = vphi %v24, %v50
          %p51 = scmp.gt.s32.totalorder %s48, %s20
        $region19: #{custom-call.2} parent=8 // loop_header_branch
          %53 = sbr.rel (%p51) target = $region23
        $region20: #{custom-call.2} parent=8 // loop_body
          %v54 = vld [vmem:[%s48] sm:$0xff]
          %55 = vst [vmem:[%s49] sm:$0xff] %v54
        $region21: #{custom-call.2} parent=8 // loop_footer
          %s56 = scalar_lea.vmem %s48, 8
          %s57 = scalar_lea.vmem %s49, 8
        $region22: #{custom-call.2} parent=8 // loop_footer_branch
          %58 = sbr.rel target = $region18
        $region23: #{custom-call.2} parent=8 // loop_exit
          _
      $region9: #{custom-call.2} parent=4 // pred_fallthru
        _
      %s60 = ssub.s32 1, 1
      %s61 = smul.u32 4, 8
      %s62 = scalar_lea.vmem [#allocation0], %s61
      %s63 = smul.u32 4, 8
      %s64 = scalar_lea.vmem %s0, %s63
      %v65 = vld [vmem:[%s64] sm:%s60]
      %66 = vst [vmem:[%s62] sm:%s60] %v65
    $region5: #{custom-call.2} parent=1 // pred_fallthru
      _
    // Predicated region
    $region24: #{custom-call.2} parent=1 // pred_check
      _
    $region25: #{custom-call.2} parent=1 // pred_check_branch
      %68 = sbr.rel (0) target = $region27
    $region26: #{custom-call.2} parent=1 // pred_region
      %p70 = scmp.gt.s32.totalorder 4, 0
      // Predicated region
      $region28: #{custom-call.2} parent=26 // pred_check
        %p71 = pneg %p70
      $region29: #{custom-call.2} parent=26 // pred_check_branch
        %73 = sbr.rel (%p71) target = $region31
      $region30: #{custom-call.2} parent=26 // pred_region
        %s74 = ssub.s32 4, 1
        %s75 = smul.u32 %s74, 8
        %s76 = scalar_lea.vmem %s1, %s75
        %v77 = vld [vmem:[%s1] sm:$0xff]
        // While loop
        $region32: #{custom-call.2} parent=30 // loop_pre_header
          _
        $region33: #{custom-call.2} parent=30 // loop_header
          %s78 = sphi %s1, %s100
          %s79 = sphi [#allocation1], %s101
          %v80 = vphi %v77, %v102
          %s81 = ssub.s32 %s76, 64
          %p82 = scmp.gt.s32.totalorder %s78, %s81
        $region34: #{custom-call.2} parent=30 // loop_header_branch
          %84 = sbr.rel (%p82) target = $region38
        $region35: #{custom-call.2} parent=30 // loop_body
          %85 = vst [vmem:[%s79] sm:$0xff] %v80
          %v86 = vld [vmem:[%s78 + $0x8] sm:$0xff]
          %87 = vst [vmem:[%s79 + $0x8] sm:$0xff] %v86
          %v88 = vld [vmem:[%s78 + $0x10] sm:$0xff]
          %89 = vst [vmem:[%s79 + $0x10] sm:$0xff] %v88
          %v90 = vld [vmem:[%s78 + $0x18] sm:$0xff]
          %91 = vst [vmem:[%s79 + $0x18] sm:$0xff] %v90
          %v92 = vld [vmem:[%s78 + $0x20] sm:$0xff]
          %93 = vst [vmem:[%s79 + $0x20] sm:$0xff] %v92
          %v94 = vld [vmem:[%s78 + $0x28] sm:$0xff]
          %95 = vst [vmem:[%s79 + $0x28] sm:$0xff] %v94
          %v96 = vld [vmem:[%s78 + $0x30] sm:$0xff]
          %97 = vst [vmem:[%s79 + $0x30] sm:$0xff] %v96
          %v98 = vld [vmem:[%s78 + $0x38] sm:$0xff]
          %99 = vst [vmem:[%s79 + $0x38] sm:$0xff] %v98
        $region36: #{custom-call.2} parent=30 // loop_footer
          %s100 = scalar_lea.vmem %s78, 64
          %s101 = scalar_lea.vmem %s79, 64
          %v102 = vld [vmem:[%s78 + $0x40] sm:$0xff]
        $region37: #{custom-call.2} parent=30 // loop_footer_branch
          %103 = sbr.rel target = $region33
        $region38: #{custom-call.2} parent=30 // loop_exit
          _
        // While loop
        $region39: #{custom-call.2} parent=30 // loop_pre_header
          _
        $region40: #{custom-call.2} parent=30 // loop_header
          %s104 = sphi %s78, %s112
          %s105 = sphi %s79, %s113
          %v106 = vphi %v80, %v106
          %p107 = scmp.gt.s32.totalorder %s104, %s76
        $region41: #{custom-call.2} parent=30 // loop_header_branch
          %109 = sbr.rel (%p107) target = $region45
        $region42: #{custom-call.2} parent=30 // loop_body
          %v110 = vld [vmem:[%s104] sm:$0xff]
          %111 = vst [vmem:[%s105] sm:$0xff] %v110
        $region43: #{custom-call.2} parent=30 // loop_footer
          %s112 = scalar_lea.vmem %s104, 8
          %s113 = scalar_lea.vmem %s105, 8
        $region44: #{custom-call.2} parent=30 // loop_footer_branch
          %114 = sbr.rel target = $region40
        $region45: #{custom-call.2} parent=30 // loop_exit
          _
      $region31: #{custom-call.2} parent=26 // pred_fallthru
        _
      %s116 = ssub.s32 1, 1
      %s117 = smul.u32 4, 8
      %s118 = scalar_lea.vmem [#allocation1], %s117
      %s119 = smul.u32 4, 8
      %s120 = scalar_lea.vmem %s1, %s119
      %v121 = vld [vmem:[%s120] sm:%s116]
      %122 = vst [vmem:[%s118] sm:%s116] %v121
    $region27: #{custom-call.2} parent=1 // pred_fallthru
      _
    // Predicated region
    $region46: #{custom-call.2} parent=1 // pred_check
      _
    $region47: #{custom-call.2} parent=1 // pred_check_branch
      %124 = sbr.rel (0) target = $region49
    $region48: #{custom-call.2} parent=1 // pred_region
      %p126 = scmp.gt.s32.totalorder 4, 0
      // Predicated region
      $region50: #{custom-call.2} parent=48 // pred_check
        %p127 = pneg %p126
      $region51: #{custom-call.2} parent=48 // pred_check_branch
        %129 = sbr.rel (%p127) target = $region53
      $region52: #{custom-call.2} parent=48 // pred_region
        %s130 = ssub.s32 4, 1
        %s131 = smul.u32 %s130, 8
        %s132 = scalar_lea.vmem %s2, %s131
        %v133 = vld [vmem:[%s2] sm:$0xff]
        // While loop
        $region54: #{custom-call.2} parent=52 // loop_pre_header
          _
        $region55: #{custom-call.2} parent=52 // loop_header
          %s134 = sphi %s2, %s156
          %s135 = sphi [#allocation2], %s157
          %v136 = vphi %v133, %v158
          %s137 = ssub.s32 %s132, 64
          %p138 = scmp.gt.s32.totalorder %s134, %s137
        $region56: #{custom-call.2} parent=52 // loop_header_branch
          %140 = sbr.rel (%p138) target = $region60
        $region57: #{custom-call.2} parent=52 // loop_body
          %141 = vst [vmem:[%s135] sm:$0xff] %v136
          %v142 = vld [vmem:[%s134 + $0x8] sm:$0xff]
          %143 = vst [vmem:[%s135 + $0x8] sm:$0xff] %v142
          %v144 = vld [vmem:[%s134 + $0x10] sm:$0xff]
          %145 = vst [vmem:[%s135 + $0x10] sm:$0xff] %v144
          %v146 = vld [vmem:[%s134 + $0x18] sm:$0xff]
          %147 = vst [vmem:[%s135 + $0x18] sm:$0xff] %v146
          %v148 = vld [vmem:[%s134 + $0x20] sm:$0xff]
          %149 = vst [vmem:[%s135 + $0x20] sm:$0xff] %v148
          %v150 = vld [vmem:[%s134 + $0x28] sm:$0xff]
          %151 = vst [vmem:[%s135 + $0x28] sm:$0xff] %v150
          %v152 = vld [vmem:[%s134 + $0x30] sm:$0xff]
          %153 = vst [vmem:[%s135 + $0x30] sm:$0xff] %v152
          %v154 = vld [vmem:[%s134 + $0x38] sm:$0xff]
          %155 = vst [vmem:[%s135 + $0x38] sm:$0xff] %v154
        $region58: #{custom-call.2} parent=52 // loop_footer
          %s156 = scalar_lea.vmem %s134, 64
          %s157 = scalar_lea.vmem %s135, 64
          %v158 = vld [vmem:[%s134 + $0x40] sm:$0xff]
        $region59: #{custom-call.2} parent=52 // loop_footer_branch
          %159 = sbr.rel target = $region55
        $region60: #{custom-call.2} parent=52 // loop_exit
          _
        // While loop
        $region61: #{custom-call.2} parent=52 // loop_pre_header
          _
        $region62: #{custom-call.2} parent=52 // loop_header
          %s160 = sphi %s134, %s168
          %s161 = sphi %s135, %s169
          %v162 = vphi %v136, %v162
          %p163 = scmp.gt.s32.totalorder %s160, %s132
        $region63: #{custom-call.2} parent=52 // loop_header_branch
          %165 = sbr.rel (%p163) target = $region67
        $region64: #{custom-call.2} parent=52 // loop_body
          %v166 = vld [vmem:[%s160] sm:$0xff]
          %167 = vst [vmem:[%s161] sm:$0xff] %v166
        $region65: #{custom-call.2} parent=52 // loop_footer
          %s168 = scalar_lea.vmem %s160, 8
          %s169 = scalar_lea.vmem %s161, 8
        $region66: #{custom-call.2} parent=52 // loop_footer_branch
          %170 = sbr.rel target = $region62
        $region67: #{custom-call.2} parent=52 // loop_exit
          _
      $region53: #{custom-call.2} parent=48 // pred_fallthru
        _
      %s172 = ssub.s32 1, 1
      %s173 = smul.u32 4, 8
      %s174 = scalar_lea.vmem [#allocation2], %s173
      %s175 = smul.u32 4, 8
      %s176 = scalar_lea.vmem %s2, %s175
      %v177 = vld [vmem:[%s176] sm:%s172]
      %178 = vst [vmem:[%s174] sm:%s172] %v177
    $region49: #{custom-call.2} parent=1 // pred_fallthru
      _
    // Predicated region
    $region68: #{custom-call.2} parent=1 // pred_check
      _
    $region69: #{custom-call.2} parent=1 // pred_check_branch
      %180 = sbr.rel (0) target = $region71
    $region70: #{custom-call.2} parent=1 // pred_region
      %p182 = scmp.gt.s32.totalorder 4, 0
      // Predicated region
      $region72: #{custom-call.2} parent=70 // pred_check
        %p183 = pneg %p182
      $region73: #{custom-call.2} parent=70 // pred_check_branch
        %185 = sbr.rel (%p183) target = $region75
      $region74: #{custom-call.2} parent=70 // pred_region
        %s186 = ssub.s32 4, 1
        %s187 = smul.u32 %s186, 8
        %s188 = scalar_lea.vmem %s3, %s187
        %v189 = vld [vmem:[%s3] sm:$0xff]
        // While loop
        $region76: #{custom-call.2} parent=74 // loop_pre_header
          _
        $region77: #{custom-call.2} parent=74 // loop_header
          %s190 = sphi %s3, %s212
          %s191 = sphi [#allocation3], %s213
          %v192 = vphi %v189, %v214
          %s193 = ssub.s32 %s188, 64
          %p194 = scmp.gt.s32.totalorder %s190, %s193
        $region78: #{custom-call.2} parent=74 // loop_header_branch
          %196 = sbr.rel (%p194) target = $region82
        $region79: #{custom-call.2} parent=74 // loop_body
          %197 = vst [vmem:[%s191] sm:$0xff] %v192
          %v198 = vld [vmem:[%s190 + $0x8] sm:$0xff]
          %199 = vst [vmem:[%s191 + $0x8] sm:$0xff] %v198
          %v200 = vld [vmem:[%s190 + $0x10] sm:$0xff]
          %201 = vst [vmem:[%s191 + $0x10] sm:$0xff] %v200
          %v202 = vld [vmem:[%s190 + $0x18] sm:$0xff]
          %203 = vst [vmem:[%s191 + $0x18] sm:$0xff] %v202
          %v204 = vld [vmem:[%s190 + $0x20] sm:$0xff]
          %205 = vst [vmem:[%s191 + $0x20] sm:$0xff] %v204
          %v206 = vld [vmem:[%s190 + $0x28] sm:$0xff]
          %207 = vst [vmem:[%s191 + $0x28] sm:$0xff] %v206
          %v208 = vld [vmem:[%s190 + $0x30] sm:$0xff]
          %209 = vst [vmem:[%s191 + $0x30] sm:$0xff] %v208
          %v210 = vld [vmem:[%s190 + $0x38] sm:$0xff]
          %211 = vst [vmem:[%s191 + $0x38] sm:$0xff] %v210
        $region80: #{custom-call.2} parent=74 // loop_footer
          %s212 = scalar_lea.vmem %s190, 64
          %s213 = scalar_lea.vmem %s191, 64
          %v214 = vld [vmem:[%s190 + $0x40] sm:$0xff]
        $region81: #{custom-call.2} parent=74 // loop_footer_branch
          %215 = sbr.rel target = $region77
        $region82: #{custom-call.2} parent=74 // loop_exit
          _
        // While loop
        $region83: #{custom-call.2} parent=74 // loop_pre_header
          _
        $region84: #{custom-call.2} parent=74 // loop_header
          %s216 = sphi %s190, %s224
          %s217 = sphi %s191, %s225
          %v218 = vphi %v192, %v218
          %p219 = scmp.gt.s32.totalorder %s216, %s188
        $region85: #{custom-call.2} parent=74 // loop_header_branch
          %221 = sbr.rel (%p219) target = $region89
        $region86: #{custom-call.2} parent=74 // loop_body
          %v222 = vld [vmem:[%s216] sm:$0xff]
          %223 = vst [vmem:[%s217] sm:$0xff] %v222
        $region87: #{custom-call.2} parent=74 // loop_footer
          %s224 = scalar_lea.vmem %s216, 8
          %s225 = scalar_lea.vmem %s217, 8
        $region88: #{custom-call.2} parent=74 // loop_footer_branch
          %226 = sbr.rel target = $region84
        $region89: #{custom-call.2} parent=74 // loop_exit
          _
      $region75: #{custom-call.2} parent=70 // pred_fallthru
        _
      %s228 = ssub.s32 1, 1
      %s229 = smul.u32 4, 8
      %s230 = scalar_lea.vmem [#allocation3], %s229
      %s231 = smul.u32 4, 8
      %s232 = scalar_lea.vmem %s3, %s231
      %v233 = vld [vmem:[%s232] sm:%s228]
      %234 = vst [vmem:[%s230] sm:%s228] %v233
    $region71: #{custom-call.2} parent=1 // pred_fallthru
      _
    %s235 = smov [#allocation12]
    %v236 = vld [vmem:[#allocation0] sm:$0xff]
    %237 = vst [vmem:[%s235] sm:$0xff] %v236
    %s238 = scalar_lea.vmem %s235, 8
    %s239 = scalar_lea.vmem [#allocation0], 8
    %v240 = vld [vmem:[%s239] sm:$0xff]
    %241 = vst [vmem:[%s238] sm:$0xff] %v240
    %s242 = scalar_lea.vmem %s235, 16
    %s243 = scalar_lea.vmem [#allocation0], 16
    %v244 = vld [vmem:[%s243] sm:$0xff]
    %245 = vst [vmem:[%s242] sm:$0xff] %v244
    %s246 = scalar_lea.vmem %s235, 24
    %s247 = scalar_lea.vmem [#allocation0], 24
    %v248 = vld [vmem:[%s247] sm:$0xff]
    %249 = vst [vmem:[%s246] sm:$0xff] %v248
    %s250 = smov [#allocation13]
    %v251 = vld [vmem:[#allocation1] sm:$0xff]
    %252 = vst [vmem:[%s250] sm:$0xff] %v251
    %s253 = scalar_lea.vmem %s250, 8
    %s254 = scalar_lea.vmem [#allocation1], 8
    %v255 = vld [vmem:[%s254] sm:$0xff]
    %256 = vst [vmem:[%s253] sm:$0xff] %v255
    %s257 = scalar_lea.vmem %s250, 16
    %s258 = scalar_lea.vmem [#allocation1], 16
    %v259 = vld [vmem:[%s258] sm:$0xff]
    %260 = vst [vmem:[%s257] sm:$0xff] %v259
    %s261 = scalar_lea.vmem %s250, 24
    %s262 = scalar_lea.vmem [#allocation1], 24
    %v263 = vld [vmem:[%s262] sm:$0xff]
    %264 = vst [vmem:[%s261] sm:$0xff] %v263
    %s265 = smov [#allocation14]
    %v266 = vld [vmem:[#allocation2] sm:$0xff]
    %267 = vst [vmem:[%s265] sm:$0xff] %v266
    %s268 = scalar_lea.vmem %s265, 8
    %s269 = scalar_lea.vmem [#allocation2], 8
    %v270 = vld [vmem:[%s269] sm:$0xff]
    %271 = vst [vmem:[%s268] sm:$0xff] %v270
    %s272 = scalar_lea.vmem %s265, 16
    %s273 = scalar_lea.vmem [#allocation2], 16
    %v274 = vld [vmem:[%s273] sm:$0xff]
    %275 = vst [vmem:[%s272] sm:$0xff] %v274
    %s276 = scalar_lea.vmem %s265, 24
    %s277 = scalar_lea.vmem [#allocation2], 24
    %v278 = vld [vmem:[%s277] sm:$0xff]
    %279 = vst [vmem:[%s276] sm:$0xff] %v278
    %s280 = smov [#allocation15]
    %v281 = vld [vmem:[#allocation3] sm:$0xff]
    %282 = vst [vmem:[%s280] sm:$0xff] %v281
    %s283 = scalar_lea.vmem %s280, 8
    %s284 = scalar_lea.vmem [#allocation3], 8
    %v285 = vld [vmem:[%s284] sm:$0xff]
    %286 = vst [vmem:[%s283] sm:$0xff] %v285
    %s287 = scalar_lea.vmem %s280, 16
    %s288 = scalar_lea.vmem [#allocation3], 16
    %v289 = vld [vmem:[%s288] sm:$0xff]
    %290 = vst [vmem:[%s287] sm:$0xff] %v289
    %s291 = scalar_lea.vmem %s280, 24
    %s292 = scalar_lea.vmem [#allocation3], 24
    %v293 = vld [vmem:[%s292] sm:$0xff]
    %294 = vst [vmem:[%s291] sm:$0xff] %v293
    %295 = vst [vmem:[#allocation8] sm:$0xff] 0.0
    %s296 = scalar_lea.vmem [#allocation8], 8
    %297 = vst [vmem:[%s296] sm:$0xff] 0.0
    %s298 = scalar_lea.vmem [#allocation8], 16
    %299 = vst [vmem:[%s298] sm:$0xff] 0.0
    %s300 = scalar_lea.vmem [#allocation8], 24
    %301 = vst [vmem:[%s300] sm:$0xff] 0.0
    %302 = vst [vmem:[#allocation9] sm:$0xff] 0.0
    %s303 = scalar_lea.vmem [#allocation9], 8
    %304 = vst [vmem:[%s303] sm:$0xff] 0.0
    %s305 = scalar_lea.vmem [#allocation9], 16
    %306 = vst [vmem:[%s305] sm:$0xff] 0.0
    %s307 = scalar_lea.vmem [#allocation9], 24
    %308 = vst [vmem:[%s307] sm:$0xff] 0.0
    %309 = vst [vmem:[#allocation10] sm:$0xff] 0.0
    %s310 = scalar_lea.vmem [#allocation10], 8
    %311 = vst [vmem:[%s310] sm:$0xff] 0.0
    %s312 = scalar_lea.vmem [#allocation10], 16
    %313 = vst [vmem:[%s312] sm:$0xff] 0.0
    %s314 = scalar_lea.vmem [#allocation10], 24
    %315 = vst [vmem:[%s314] sm:$0xff] 0.0
    %316 = vst [vmem:[#allocation11] sm:$0xff] 0.0
    %s317 = scalar_lea.vmem [#allocation11], 8
    %318 = vst [vmem:[%s317] sm:$0xff] 0.0
    %s319 = scalar_lea.vmem [#allocation11], 16
    %320 = vst [vmem:[%s319] sm:$0xff] 0.0
    %s321 = scalar_lea.vmem [#allocation11], 24
    %322 = vst [vmem:[%s321] sm:$0xff] 0.0
    %s323 = smov [#allocation8]
    %v324 = vlaneseq
    %v325 = vand.u32 %v324, 127
    %v326 = vmov %v325
    %v327 = vlaneseq
    %v328 = vshrl.u32 %v327, 7
    %v329 = vmov %v328
    %v330 = vld [vmem:[%s323] sm:$0xff]
    %vm333 = vcmp.eq.s32.totalorder %v329, %v326
    %v334 = vsel %vm333, 1.0, %v330
    %335 = vst [vmem:[%s323] sm:$0xff] %v334
    %s336 = scalar_lea.vmem %s323, 8
    %v337 = vld [vmem:[%s336] sm:$0xff]
    %v339 = vadd.s32 %v329, 8
    %vm340 = vcmp.eq.s32.totalorder %v339, %v326
    %v341 = vsel %vm340, 1.0, %v337
    %342 = vst [vmem:[%s336] sm:$0xff] %v341
    %s343 = scalar_lea.vmem %s323, 16
    %v344 = vld [vmem:[%s343] sm:$0xff]
    %v346 = vadd.s32 %v329, 16
    %vm347 = vcmp.eq.s32.totalorder %v346, %v326
    %v348 = vsel %vm347, 1.0, %v344
    %349 = vst [vmem:[%s343] sm:$0xff] %v348
    %s350 = scalar_lea.vmem %s323, 24
    %v351 = vld [vmem:[%s350] sm:$0xff]
    %v353 = vadd.s32 %v329, 24
    %vm354 = vcmp.eq.s32.totalorder %v353, %v326
    %v355 = vsel %vm354, 1.0, %v351
    %356 = vst [vmem:[%s350] sm:$0xff] %v355
    %s357 = smov [#allocation11]
    %v358 = vlaneseq
    %v359 = vand.u32 %v358, 127
    %v360 = vmov %v359
    %v361 = vlaneseq
    %v362 = vshrl.u32 %v361, 7
    %v363 = vmov %v362
    %v364 = vld [vmem:[%s357] sm:$0xff]
    %vm367 = vcmp.eq.s32.totalorder %v363, %v360
    %v368 = vsel %vm367, 1.0, %v364
    %369 = vst [vmem:[%s357] sm:$0xff] %v368
    %s370 = scalar_lea.vmem %s357, 8
    %v371 = vld [vmem:[%s370] sm:$0xff]
    %v373 = vadd.s32 %v363, 8
    %vm374 = vcmp.eq.s32.totalorder %v373, %v360
    %v375 = vsel %vm374, 1.0, %v371
    %376 = vst [vmem:[%s370] sm:$0xff] %v375
    %s377 = scalar_lea.vmem %s357, 16
    %v378 = vld [vmem:[%s377] sm:$0xff]
    %v380 = vadd.s32 %v363, 16
    %vm381 = vcmp.eq.s32.totalorder %v380, %v360
    %v382 = vsel %vm381, 1.0, %v378
    %383 = vst [vmem:[%s377] sm:$0xff] %v382
    %s384 = scalar_lea.vmem %s357, 24
    %v385 = vld [vmem:[%s384] sm:$0xff]
    %v387 = vadd.s32 %v363, 24
    %vm388 = vcmp.eq.s32.totalorder %v387, %v360
    %v389 = vsel %vm388, 1.0, %v385
    %390 = vst [vmem:[%s384] sm:$0xff] %v389
    // While loop
    $region90: #{custom-call.2} parent=1 // loop_pre_header
      _
    $region91: #{custom-call.2} parent=1 // loop_header
      %s392 = sphi 0, %s2042
      %v393 = vlaneseq
      %v394 = vand.u32 %v393, 127
      %v395 = vmov %v394
      %v396 = vlaneseq
      %v397 = vshrl.u32 %v396, 7
      %v398 = vmov %v397
      %s399 = smov [#allocation12]
      %v400 = vlaneseq
      %v401 = vand.u32 %v400, 127
      %vm402 = vcmp.ge.s32.totalorder %v401, 0
      %vm403 = vcmp.lt.s32.totalorder %v401, 32
      %vm404 = vmand %vm402, %vm403
      %v405 = vld [vmem:[%s399] sm:$0xff]
      %v406 = vsel %vm404, %v405, 0.0
      %v407 = vmul.f32 %v406, %v406
      %vm410 = vcmp.eq.s32.totalorder %v398, %v395
      %v411 = vsel %vm410, 0.0, %v407
      %s412 = scalar_lea.vmem %s399, 8
      %v413 = vld [vmem:[%s412] sm:$0xff]
      %v414 = vsel %vm404, %v413, 0.0
      %v415 = vmul.f32 %v414, %v414
      %v417 = vadd.s32 %v398, 8
      %vm418 = vcmp.eq.s32.totalorder %v417, %v395
      %v419 = vsel %vm418, 0.0, %v415
      %v420 = vadd.f32 %v411, %v419
      %v421 = vadd.f32 %v407, %v415
      %s422 = scalar_lea.vmem %s399, 16
      %v423 = vld [vmem:[%s422] sm:$0xff]
      %v424 = vsel %vm404, %v423, 0.0
      %v425 = vmul.f32 %v424, %v424
      %v427 = vadd.s32 %v398, 16
      %vm428 = vcmp.eq.s32.totalorder %v427, %v395
      %v429 = vsel %vm428, 0.0, %v425
      %v430 = vadd.f32 %v420, %v429
      %v431 = vadd.f32 %v421, %v425
      %s432 = scalar_lea.vmem %s399, 24
      %v433 = vld [vmem:[%s432] sm:$0xff]
      %v434 = vsel %vm404, %v433, 0.0
      %v435 = vmul.f32 %v434, %v434
      %v437 = vadd.s32 %v398, 24
      %vm438 = vcmp.eq.s32.totalorder %v437, %v395
      %v439 = vsel %vm438, 0.0, %v435
      %v440 = vadd.f32 %v430, %v439
      %v441 = vadd.f32 %v431, %v435
      %v442 = vlaneseq
      %v443 = vand.u32 %v442, 127
      %v444 = vmov %v443
      %v445 = vlaneseq
      %v446 = vshrl.u32 %v445, 7
      %v447 = vmov %v446
      %s448 = smov [#allocation13]
      %v449 = vlaneseq
      %v450 = vand.u32 %v449, 127
      %vm451 = vcmp.ge.s32.totalorder %v450, 0
      %vm452 = vcmp.lt.s32.totalorder %v450, 32
      %vm453 = vmand %vm451, %vm452
      %v454 = vld [vmem:[%s448] sm:$0xff]
      %v455 = vsel %vm453, %v454, 0.0
      %v456 = vmul.f32 %v455, %v455
      %v457 = vadd.f32 %v440, %v456
      %v458 = vadd.f32 %v441, %v456
      %s459 = scalar_lea.vmem %s448, 8
      %v460 = vld [vmem:[%s459] sm:$0xff]
      %v461 = vsel %vm453, %v460, 0.0
      %v462 = vmul.f32 %v461, %v461
      %v463 = vadd.f32 %v457, %v462
      %v464 = vadd.f32 %v458, %v462
      %s465 = scalar_lea.vmem %s448, 16
      %v466 = vld [vmem:[%s465] sm:$0xff]
      %v467 = vsel %vm453, %v466, 0.0
      %v468 = vmul.f32 %v467, %v467
      %v469 = vadd.f32 %v463, %v468
      %v470 = vadd.f32 %v464, %v468
      %s471 = scalar_lea.vmem %s448, 24
      %v472 = vld [vmem:[%s471] sm:$0xff]
      %v473 = vsel %vm453, %v472, 0.0
      %v474 = vmul.f32 %v473, %v473
      %v475 = vadd.f32 %v469, %v474
      %v476 = vadd.f32 %v470, %v474
      %v477 = vlaneseq
      %v478 = vand.u32 %v477, 127
      %v479 = vmov %v478
      %v480 = vlaneseq
      %v481 = vshrl.u32 %v480, 7
      %v482 = vmov %v481
      %s483 = smov [#allocation14]
      %v484 = vlaneseq
      %v485 = vand.u32 %v484, 127
      %vm486 = vcmp.ge.s32.totalorder %v485, 0
      %vm487 = vcmp.lt.s32.totalorder %v485, 32
      %vm488 = vmand %vm486, %vm487
      %v489 = vld [vmem:[%s483] sm:$0xff]
      %v490 = vsel %vm488, %v489, 0.0
      %v491 = vmul.f32 %v490, %v490
      %v492 = vadd.f32 %v475, %v491
      %v493 = vadd.f32 %v476, %v491
      %s494 = scalar_lea.vmem %s483, 8
      %v495 = vld [vmem:[%s494] sm:$0xff]
      %v496 = vsel %vm488, %v495, 0.0
      %v497 = vmul.f32 %v496, %v496
      %v498 = vadd.f32 %v492, %v497
      %v499 = vadd.f32 %v493, %v497
      %s500 = scalar_lea.vmem %s483, 16
      %v501 = vld [vmem:[%s500] sm:$0xff]
      %v502 = vsel %vm488, %v501, 0.0
      %v503 = vmul.f32 %v502, %v502
      %v504 = vadd.f32 %v498, %v503
      %v505 = vadd.f32 %v499, %v503
      %s506 = scalar_lea.vmem %s483, 24
      %v507 = vld [vmem:[%s506] sm:$0xff]
      %v508 = vsel %vm488, %v507, 0.0
      %v509 = vmul.f32 %v508, %v508
      %v510 = vadd.f32 %v504, %v509
      %v511 = vadd.f32 %v505, %v509
      %v512 = vlaneseq
      %v513 = vand.u32 %v512, 127
      %v514 = vmov %v513
      %v515 = vlaneseq
      %v516 = vshrl.u32 %v515, 7
      %v517 = vmov %v516
      %s518 = smov [#allocation15]
      %v519 = vlaneseq
      %v520 = vand.u32 %v519, 127
      %vm521 = vcmp.ge.s32.totalorder %v520, 0
      %vm522 = vcmp.lt.s32.totalorder %v520, 32
      %vm523 = vmand %vm521, %vm522
      %v524 = vld [vmem:[%s518] sm:$0xff]
      %v525 = vsel %vm523, %v524, 0.0
      %v526 = vmul.f32 %v525, %v525
      %vm529 = vcmp.eq.s32.totalorder %v517, %v514
      %v530 = vsel %vm529, 0.0, %v526
      %v531 = vadd.f32 %v510, %v530
      %v532 = vadd.f32 %v511, %v526
      %s533 = scalar_lea.vmem %s518, 8
      %v534 = vld [vmem:[%s533] sm:$0xff]
      %v535 = vsel %vm523, %v534, 0.0
      %v536 = vmul.f32 %v535, %v535
      %v538 = vadd.s32 %v517, 8
      %vm539 = vcmp.eq.s32.totalorder %v538, %v514
      %v540 = vsel %vm539, 0.0, %v536
      %v541 = vadd.f32 %v531, %v540
      %v542 = vadd.f32 %v532, %v536
      %s543 = scalar_lea.vmem %s518, 16
      %v544 = vld [vmem:[%s543] sm:$0xff]
      %v545 = vsel %vm523, %v544, 0.0
      %v546 = vmul.f32 %v545, %v545
      %v548 = vadd.s32 %v517, 16
      %vm549 = vcmp.eq.s32.totalorder %v548, %v514
      %v550 = vsel %vm549, 0.0, %v546
      %v551 = vadd.f32 %v541, %v550
      %v552 = vadd.f32 %v542, %v546
      %s553 = scalar_lea.vmem %s518, 24
      %v554 = vld [vmem:[%s553] sm:$0xff]
      %v555 = vsel %vm523, %v554, 0.0
      %v556 = vmul.f32 %v555, %v555
      %v558 = vadd.s32 %v517, 24
      %vm559 = vcmp.eq.s32.totalorder %v558, %v514
      %v560 = vsel %vm559, 0.0, %v556
      %v561 = vadd.f32 %v551, %v560
      %v562 = vadd.f32 %v552, %v556
      %563 = vadd.xlane.f32.xlu0 %v562
      %v564 = vpop.xlane.xlu0 %563
      %v565 = vrot.slane %v564, 4
      %v566 = vadd.f32 %v564, %v565
      %v567 = vrot.slane %v566, 2
      %v568 = vadd.f32 %v566, %v567
      %v569 = vrot.slane %v568, 1
      %v570 = vadd.f32 %v568, %v569
      %571 = vadd.xlane.f32.xlu0 %v561
      %v572 = vpop.xlane.xlu0 %571
      %v573 = vrot.slane %v572, 4
      %v574 = vadd.f32 %v572, %v573
      %v575 = vrot.slane %v574, 2
      %v576 = vadd.f32 %v574, %v575
      %v577 = vrot.slane %v576, 1
      %v578 = vadd.f32 %v576, %v577
      %s579 = vtos %v578
      %s580 = vtos %v570
      %s581 = smul.f32 1e-10, %s580
      %p582 = scmp.le.f32.partialorder %s579, %s581
      %p583 = scmp.ge.s32.totalorder %s392, 15
      %p584 = por %p582, %p583
    $region92: #{custom-call.2} parent=1 // loop_header_branch
      %2044 = sbr.rel (%p584) target = $region96
    $region93: #{custom-call.2} parent=1 // loop_body
      loop: start=0, step=1, limit=63
      $region97: #{custom-call.2} parent=93 // loop_pre_header
        _
      $region98: #{custom-call.2} parent=93 // loop_header
        %s586 = sphi 0, %s590
        %p587 = scmp.ge.s32.totalorder %s586, 63
      $region99: #{custom-call.2} parent=93 // loop_header_branch
        %589 = sbr.rel (%p587) target = $region103
      $region100: #{custom-call.2} parent=93 // loop_body
        #allocation16 [shape = 'f32[1024]{0}', space=vmem, size = 0x1000, scoped, tag = 'a_tl_diag vmem']
        #allocation17 [shape = 'f32[1024]{0}', space=vmem, size = 0x1000, scoped, tag = 'a_tr_diag vmem']
        #allocation18 [shape = 'f32[1024]{0}', space=vmem, size = 0x1000, scoped, tag = 'a_br_diag vmem']
        #allocation19 [shape = 'f32[1024]{0}', space=vmem, size = 0x1000, scoped, tag = 'rt1 vmem']
        #allocation20 [shape = 'f32[1024]{0}', space=vmem, size = 0x1000, scoped, tag = 'rt2 vmem']
        #allocation21 [shape = 'f32[1024]{0}', space=vmem, size = 0x1000, scoped, tag = 'c vmem']
        #allocation22 [shape = 'f32[1024]{0}', space=vmem, size = 0x1000, scoped, tag = 's vmem']
        #allocation23 [shape = 'f32[16384]{0}', space=vmem, size = 0x10000, scoped, tag = 'c broadcast']
        #allocation24 [shape = 'f32[16384]{0}', space=vmem, size = 0x10000, scoped, tag = 's broadcast']
        %s591 = smov [#allocation12]
        %s592 = smov [#allocation16]
        %v593 = vlaneseq
        %v594 = vand.u32 %v593, 127
        %v595 = vmov %v594
        %v596 = vlaneseq
        %v597 = vshrl.u32 %v596, 7
        %v598 = vmov %v597
        %v599 = vld [vmem:[%s591] sm:$0xff]
        %vm602 = vcmp.eq.s32.totalorder %v598, %v595
        %v603 = vsel %vm602, %v599, 0.0
        %s604 = scalar_lea.vmem %s591, 8
        %v605 = vld [vmem:[%s604] sm:$0xff]
        %v607 = vadd.s32 %v598, 8
        %vm608 = vcmp.eq.s32.totalorder %v607, %v595
        %v609 = vsel %vm608, %v605, %v603
        %s610 = scalar_lea.vmem %s591, 16
        %v611 = vld [vmem:[%s610] sm:$0xff]
        %v613 = vadd.s32 %v598, 16
        %vm614 = vcmp.eq.s32.totalorder %v613, %v595
        %v615 = vsel %vm614, %v611, %v609
        %s616 = scalar_lea.vmem %s591, 24
        %v617 = vld [vmem:[%s616] sm:$0xff]
        %v619 = vadd.s32 %v598, 24
        %vm620 = vcmp.eq.s32.totalorder %v619, %v595
        %v621 = vsel %vm620, %v617, %v615
        %v622 = vrot.slane %v621, 4
        %v623 = vadd.f32 %v621, %v622
        %v624 = vrot.slane %v623, 2
        %v625 = vadd.f32 %v623, %v624
        %v626 = vrot.slane %v625, 1
        %v627 = vadd.f32 %v625, %v626
        %628 = vst [vmem:[%s592] sm:$0x1] %v627
        %s629 = smov [#allocation13]
        %s630 = smov [#allocation17]
        %v631 = vlaneseq
        %v632 = vand.u32 %v631, 127
        %v633 = vmov %v632
        %v634 = vlaneseq
        %v635 = vshrl.u32 %v634, 7
        %v636 = vmov %v635
        %v637 = vld [vmem:[%s629] sm:$0xff]
        %vm640 = vcmp.eq.s32.totalorder %v636, %v633
        %v641 = vsel %vm640, %v637, 0.0
        %s642 = scalar_lea.vmem %s629, 8
        %v643 = vld [vmem:[%s642] sm:$0xff]
        %v645 = vadd.s32 %v636, 8
        %vm646 = vcmp.eq.s32.totalorder %v645, %v633
        %v647 = vsel %vm646, %v643, %v641
        %s648 = scalar_lea.vmem %s629, 16
        %v649 = vld [vmem:[%s648] sm:$0xff]
        %v651 = vadd.s32 %v636, 16
        %vm652 = vcmp.eq.s32.totalorder %v651, %v633
        %v653 = vsel %vm652, %v649, %v647
        %s654 = scalar_lea.vmem %s629, 24
        %v655 = vld [vmem:[%s654] sm:$0xff]
        %v657 = vadd.s32 %v636, 24
        %vm658 = vcmp.eq.s32.totalorder %v657, %v633
        %v659 = vsel %vm658, %v655, %v653
        %v660 = vrot.slane %v659, 4
        %v661 = vadd.f32 %v659, %v660
        %v662 = vrot.slane %v661, 2
        %v663 = vadd.f32 %v661, %v662
        %v664 = vrot.slane %v663, 1
        %v665 = vadd.f32 %v663, %v664
        %666 = vst [vmem:[%s630] sm:$0x1] %v665
        %s667 = smov [#allocation15]
        %s668 = smov [#allocation18]
        %v669 = vlaneseq
        %v670 = vand.u32 %v669, 127
        %v671 = vmov %v670
        %v672 = vlaneseq
        %v673 = vshrl.u32 %v672, 7
        %v674 = vmov %v673
        %v675 = vld [vmem:[%s667] sm:$0xff]
        %vm678 = vcmp.eq.s32.totalorder %v674, %v671
        %v679 = vsel %vm678, %v675, 0.0
        %s680 = scalar_lea.vmem %s667, 8
        %v681 = vld [vmem:[%s680] sm:$0xff]
        %v683 = vadd.s32 %v674, 8
        %vm684 = vcmp.eq.s32.totalorder %v683, %v671
        %v685 = vsel %vm684, %v681, %v679
        %s686 = scalar_lea.vmem %s667, 16
        %v687 = vld [vmem:[%s686] sm:$0xff]
        %v689 = vadd.s32 %v674, 16
        %vm690 = vcmp.eq.s32.totalorder %v689, %v671
        %v691 = vsel %vm690, %v687, %v685
        %s692 = scalar_lea.vmem %s667, 24
        %v693 = vld [vmem:[%s692] sm:$0xff]
        %v695 = vadd.s32 %v674, 24
        %vm696 = vcmp.eq.s32.totalorder %v695, %v671
        %v697 = vsel %vm696, %v693, %v691
        %v698 = vrot.slane %v697, 4
        %v699 = vadd.f32 %v697, %v698
        %v700 = vrot.slane %v699, 2
        %v701 = vadd.f32 %v699, %v700
        %v702 = vrot.slane %v701, 1
        %v703 = vadd.f32 %v701, %v702
        %704 = vst [vmem:[%s668] sm:$0x1] %v703
        %s705 = smov [#allocation21]
        %s706 = smov [#allocation22]
        %s707 = smov [#allocation16]
        %v708 = vld [vmem:[%s707] sm:$0xff]
        %s709 = smov [#allocation17]
        %v710 = vld [vmem:[%s709] sm:$0xff]
        %s711 = smov [#allocation18]
        %v712 = vld [vmem:[%s711] sm:$0xff]
        %v713 = vsub.f32 %v712, %v708
        %v714 = vmul.f32 2.0, %v710
        %v715 = vrcp.pop %v714
        %v716 = vmul.f32 %v714, %v715
        %v717 = vsub.f32 1.0, %v716
        %v718 = vmul.f32 %v715, %v717
        %v719 = vadd.f32 %v715, %v718
        %vm720 = vweird.f32 %v714
        %vm721 = vweird.f32 %v715
        %vm722 = vmor %vm720, %vm721
        %v723 = vsel %vm722, %v715, %v719
        %v724 = vand.u32 2147483647, %v714
        %vm725 = vcmp.eq.f32.partialorder %v724, 8.507059e+37
        %v726 = vand.u32 %v714, 2147483648
        %v727 = vor.u32 1.1754944e-38, %v726
        %v728 = vsel %vm725, %v727, %v723
        %v729 = vmul.f32 %v713, %v728
        %vm730 = vcmp.ge.f32.partialorder %v729, 0.0
        %v731 = vmul.f32 %v729, %v729
        %v732 = vadd.f32 1.0, %v731
        %v733 = vrsqrt.pop %v732
        %v734 = vmul.f32 %v733, %v732
        %v735 = vmul.f32 %v734, %v733
        %v736 = vmul.f32 0.5, %v735
        %v737 = vsub.f32 1.5, %v736
        %v738 = vmul.f32 %v733, %v737
        %v739 = vmul.f32 %v732, %v738
        %vm740 = vcmp.eq.f32.partialorder %v732, inf
        %v741 = vsel %vm740, %v732, %v739
        %vm742 = vcmp.eq.f32.partialorder %v732, 0.0
        %v743 = vand.u32 %v732, 2147483648
        %v744 = vsel %vm742, %v743, %v741
        %v745 = vxor.u32 %v744, 2147483648
        %v746 = vsel %vm730, %v744, %v745
        %v747 = vadd.f32 %v729, %v746
        %v748 = vrcp.pop %v747
        %v749 = vmul.f32 %v747, %v748
        %v750 = vsub.f32 1.0, %v749
        %v751 = vmul.f32 %v748, %v750
        %v752 = vadd.f32 %v748, %v751
        %vm753 = vweird.f32 %v747
        %vm754 = vweird.f32 %v748
        %vm755 = vmor %vm753, %vm754
        %v756 = vsel %vm755, %v748, %v752
        %v757 = vand.u32 2147483647, %v747
        %vm758 = vcmp.eq.f32.partialorder %v757, 8.507059e+37
        %v759 = vand.u32 %v747, 2147483648
        %v760 = vor.u32 1.1754944e-38, %v759
        %v761 = vsel %vm758, %v760, %v756
        %v762 = vand.u32 2147483647, %v708
        %v763 = vand.u32 2147483647, %v710
        %v764 = vand.u32 2147483647, %v712
        %v765 = vmin.f32 %v762, %v764
        %v766 = vmul.f32 1.1920929e-08, %v765
        %vm767 = vcmp.le.f32.partialorder %v763, %v766
        %v768 = vsel %vm767, 0.0, %v761
        %v769 = vmul.f32 %v768, %v768
        %v770 = vadd.f32 1.0, %v769
        %v771 = vrsqrt.pop %v770
        %v772 = vmul.f32 %v771, %v770
        %v773 = vmul.f32 %v772, %v771
        %v774 = vmul.f32 0.5, %v773
        %v775 = vsub.f32 1.5, %v774
        %v776 = vmul.f32 %v771, %v775
        %vm777 = vweird.f32 %v770
        %vm778 = vweird.f32 %v771
        %vm779 = vmor %vm777, %vm778
        %v780 = vsel %vm779, %v771, %v776
        %v781 = vmul.f32 %v768, %v780
        %v782 = vmul.f32 %v768, %v710
        %v783 = vsub.f32 %v708, %v782
        %v784 = vmul.f32 %v768, %v710
        %v785 = vadd.f32 %v712, %v784
        %s786 = smov [#allocation19]
        %787 = vst [vmem:[%s786] sm:$0xff] %v783
        %s788 = smov [#allocation20]
        %789 = vst [vmem:[%s788] sm:$0xff] %v785
        %s790 = smov %s705
        %791 = vst [vmem:[%s790] sm:$0xff] %v780
        %s792 = smov %s706
        %793 = vst [vmem:[%s792] sm:$0xff] %v781
        %s794 = smov [#allocation21]
        %v795 = vld [vmem:[%s794] ss:$0 sm:$0xff]
        %v796 = vlaneseq
        %v797 = vand.u32 %v796, 127
        %v798 = vmov %v797
        %v799 = vlaneseq
        %v800 = vshrl.u32 %v799, 7
        %v801 = vmov %v800
        %vm803 = vcmp.eq.s32.totalorder %v801, %v798
        %v804 = vsel %vm803, %v795, 0.0
        %805 = vadd.xlane.f32.xlu0 %v804
        %v806 = vpop.xlane.xlu0 %805
        %s807 = smov [#allocation23]
        %808 = vst [vmem:[%s807] sm:$0xff] %v806
        %s809 = smov [#allocation21]
        %v810 = vld [vmem:[%s809] ss:$0 sm:$0xff]
        %v811 = vlaneseq
        %v812 = vand.u32 %v811, 127
        %v813 = vmov %v812
        %v814 = vlaneseq
        %v815 = vshrl.u32 %v814, 7
        %v816 = vmov %v815
        %v817 = vadd.s32 %v816, 8
        %vm818 = vcmp.eq.s32.totalorder %v817, %v813
        %v819 = vsel %vm818, %v810, 0.0
        %820 = vadd.xlane.f32.xlu0 %v819
        %v821 = vpop.xlane.xlu0 %820
        %s822 = smov [#allocation23]
        %s823 = scalar_lea.vmem %s822, 8
        %824 = vst [vmem:[%s823] sm:$0xff] %v821
        %s825 = smov [#allocation21]
        %v826 = vld [vmem:[%s825] ss:$0 sm:$0xff]
        %v827 = vlaneseq
        %v828 = vand.u32 %v827, 127
        %v829 = vmov %v828
        %v830 = vlaneseq
        %v831 = vshrl.u32 %v830, 7
        %v832 = vmov %v831
        %v833 = vadd.s32 %v832, 16
        %vm834 = vcmp.eq.s32.totalorder %v833, %v829
        %v835 = vsel %vm834, %v826, 0.0
        %836 = vadd.xlane.f32.xlu0 %v835
        %v837 = vpop.xlane.xlu0 %836
        %s838 = smov [#allocation23]
        %s839 = scalar_lea.vmem %s838, 16
        %840 = vst [vmem:[%s839] sm:$0xff] %v837
        %s841 = smov [#allocation21]
        %v842 = vld [vmem:[%s841] ss:$0 sm:$0xff]
        %v843 = vlaneseq
        %v844 = vand.u32 %v843, 127
        %v845 = vmov %v844
        %v846 = vlaneseq
        %v847 = vshrl.u32 %v846, 7
        %v848 = vmov %v847
        %v849 = vadd.s32 %v848, 24
        %vm850 = vcmp.eq.s32.totalorder %v849, %v845
        %v851 = vsel %vm850, %v842, 0.0
        %852 = vadd.xlane.f32.xlu0 %v851
        %v853 = vpop.xlane.xlu0 %852
        %s854 = smov [#allocation23]
        %s855 = scalar_lea.vmem %s854, 24
        %856 = vst [vmem:[%s855] sm:$0xff] %v853
        %s857 = smov [#allocation22]
        %v858 = vld [vmem:[%s857] ss:$0 sm:$0xff]
        %v859 = vlaneseq
        %v860 = vand.u32 %v859, 127
        %v861 = vmov %v860
        %v862 = vlaneseq
        %v863 = vshrl.u32 %v862, 7
        %v864 = vmov %v863
        %vm866 = vcmp.eq.s32.totalorder %v864, %v861
        %v867 = vsel %vm866, %v858, 0.0
        %868 = vadd.xlane.f32.xlu0 %v867
        %v869 = vpop.xlane.xlu0 %868
        %s870 = smov [#allocation24]
        %871 = vst [vmem:[%s870] sm:$0xff] %v869
        %s872 = smov [#allocation22]
        %v873 = vld [vmem:[%s872] ss:$0 sm:$0xff]
        %v874 = vlaneseq
        %v875 = vand.u32 %v874, 127
        %v876 = vmov %v875
        %v877 = vlaneseq
        %v878 = vshrl.u32 %v877, 7
        %v879 = vmov %v878
        %v880 = vadd.s32 %v879, 8
        %vm881 = vcmp.eq.s32.totalorder %v880, %v876
        %v882 = vsel %vm881, %v873, 0.0
        %883 = vadd.xlane.f32.xlu0 %v882
        %v884 = vpop.xlane.xlu0 %883
        %s885 = smov [#allocation24]
        %s886 = scalar_lea.vmem %s885, 8
        %887 = vst [vmem:[%s886] sm:$0xff] %v884
        %s888 = smov [#allocation22]
        %v889 = vld [vmem:[%s888] ss:$0 sm:$0xff]
        %v890 = vlaneseq
        %v891 = vand.u32 %v890, 127
        %v892 = vmov %v891
        %v893 = vlaneseq
        %v894 = vshrl.u32 %v893, 7
        %v895 = vmov %v894
        %v896 = vadd.s32 %v895, 16
        %vm897 = vcmp.eq.s32.totalorder %v896, %v892
        %v898 = vsel %vm897, %v889, 0.0
        %899 = vadd.xlane.f32.xlu0 %v898
        %v900 = vpop.xlane.xlu0 %899
        %s901 = smov [#allocation24]
        %s902 = scalar_lea.vmem %s901, 16
        %903 = vst [vmem:[%s902] sm:$0xff] %v900
        %s904 = smov [#allocation22]
        %v905 = vld [vmem:[%s904] ss:$0 sm:$0xff]
        %v906 = vlaneseq
        %v907 = vand.u32 %v906, 127
        %v908 = vmov %v907
        %v909 = vlaneseq
        %v910 = vshrl.u32 %v909, 7
        %v911 = vmov %v910
        %v912 = vadd.s32 %v911, 24
        %vm913 = vcmp.eq.s32.totalorder %v912, %v908
        %v914 = vsel %vm913, %v905, 0.0
        %915 = vadd.xlane.f32.xlu0 %v914
        %v916 = vpop.xlane.xlu0 %915
        %s917 = smov [#allocation24]
        %s918 = scalar_lea.vmem %s917, 24
        %919 = vst [vmem:[%s918] sm:$0xff] %v916
        %s920 = smov [#allocation23]
        %v921 = vld [vmem:[%s920] sm:$0xff]
        %s922 = smov [#allocation24]
        %v923 = vld [vmem:[%s922] sm:$0xff]
        %s924 = smov [#allocation12]
        %s925 = smov [#allocation13]
        %s926 = smov [#allocation14]
        %s927 = smov [#allocation15]
        %v928 = vld [vmem:[%s924] sm:$0xff]
        %v929 = vld [vmem:[%s925] sm:$0xff]
        %v930 = vld [vmem:[%s926] sm:$0xff]
        %v931 = vld [vmem:[%s927] sm:$0xff]
        %v932 = vmul.f32 %v921, %v928
        %v933 = vmul.f32 %v923, %v930
        %v934 = vsub.f32 %v932, %v933
        %v935 = vmul.f32 %v921, %v929
        %v936 = vmul.f32 %v923, %v931
        %v937 = vsub.f32 %v935, %v936
        %v938 = vmul.f32 %v923, %v928
        %v939 = vmul.f32 %v921, %v930
        %v940 = vadd.f32 %v938, %v939
        %v941 = vmul.f32 %v923, %v929
        %v942 = vmul.f32 %v921, %v931
        %v943 = vadd.f32 %v941, %v942
        %944 = vst [vmem:[%s924] sm:$0xff] %v934
        %945 = vst [vmem:[%s925] sm:$0xff] %v937
        %946 = vst [vmem:[%s926] sm:$0xff] %v940
        %947 = vst [vmem:[%s927] sm:$0xff] %v943
        %s948 = smov [#allocation23]
        %s949 = scalar_lea.vmem %s948, 8
        %v950 = vld [vmem:[%s949] sm:$0xff]
        %s951 = smov [#allocation24]
        %s952 = scalar_lea.vmem %s951, 8
        %v953 = vld [vmem:[%s952] sm:$0xff]
        %s954 = smov [#allocation12]
        %s955 = scalar_lea.vmem %s954, 8
        %s956 = smov [#allocation13]
        %s957 = scalar_lea.vmem %s956, 8
        %s958 = smov [#allocation14]
        %s959 = scalar_lea.vmem %s958, 8
        %s960 = smov [#allocation15]
        %s961 = scalar_lea.vmem %s960, 8
        %v962 = vld [vmem:[%s955] sm:$0xff]
        %v963 = vld [vmem:[%s957] sm:$0xff]
        %v964 = vld [vmem:[%s959] sm:$0xff]
        %v965 = vld [vmem:[%s961] sm:$0xff]
        %v966 = vmul.f32 %v950, %v962
        %v967 = vmul.f32 %v953, %v964
        %v968 = vsub.f32 %v966, %v967
        %v969 = vmul.f32 %v950, %v963
        %v970 = vmul.f32 %v953, %v965
        %v971 = vsub.f32 %v969, %v970
        %v972 = vmul.f32 %v953, %v962
        %v973 = vmul.f32 %v950, %v964
        %v974 = vadd.f32 %v972, %v973
        %v975 = vmul.f32 %v953, %v963
        %v976 = vmul.f32 %v950, %v965
        %v977 = vadd.f32 %v975, %v976
        %978 = vst [vmem:[%s955] sm:$0xff] %v968
        %979 = vst [vmem:[%s957] sm:$0xff] %v971
        %980 = vst [vmem:[%s959] sm:$0xff] %v974
        %981 = vst [vmem:[%s961] sm:$0xff] %v977
        %s982 = smov [#allocation23]
        %s983 = scalar_lea.vmem %s982, 16
        %v984 = vld [vmem:[%s983] sm:$0xff]
        %s985 = smov [#allocation24]
        %s986 = scalar_lea.vmem %s985, 16
        %v987 = vld [vmem:[%s986] sm:$0xff]
        %s988 = smov [#allocation12]
        %s989 = scalar_lea.vmem %s988, 16
        %s990 = smov [#allocation13]
        %s991 = scalar_lea.vmem %s990, 16
        %s992 = smov [#allocation14]
        %s993 = scalar_lea.vmem %s992, 16
        %s994 = smov [#allocation15]
        %s995 = scalar_lea.vmem %s994, 16
        %v996 = vld [vmem:[%s989] sm:$0xff]
        %v997 = vld [vmem:[%s991] sm:$0xff]
        %v998 = vld [vmem:[%s993] sm:$0xff]
        %v999 = vld [vmem:[%s995] sm:$0xff]
        %v1000 = vmul.f32 %v984, %v996
        %v1001 = vmul.f32 %v987, %v998
        %v1002 = vsub.f32 %v1000, %v1001
        %v1003 = vmul.f32 %v984, %v997
        %v1004 = vmul.f32 %v987, %v999
        %v1005 = vsub.f32 %v1003, %v1004
        %v1006 = vmul.f32 %v987, %v996
        %v1007 = vmul.f32 %v984, %v998
        %v1008 = vadd.f32 %v1006, %v1007
        %v1009 = vmul.f32 %v987, %v997
        %v1010 = vmul.f32 %v984, %v999
        %v1011 = vadd.f32 %v1009, %v1010
        %1012 = vst [vmem:[%s989] sm:$0xff] %v1002
        %1013 = vst [vmem:[%s991] sm:$0xff] %v1005
        %1014 = vst [vmem:[%s993] sm:$0xff] %v1008
        %1015 = vst [vmem:[%s995] sm:$0xff] %v1011
        %s1016 = smov [#allocation23]
        %s1017 = scalar_lea.vmem %s1016, 24
        %v1018 = vld [vmem:[%s1017] sm:$0xff]
        %s1019 = smov [#allocation24]
        %s1020 = scalar_lea.vmem %s1019, 24
        %v1021 = vld [vmem:[%s1020] sm:$0xff]
        %s1022 = smov [#allocation12]
        %s1023 = scalar_lea.vmem %s1022, 24
        %s1024 = smov [#allocation13]
        %s1025 = scalar_lea.vmem %s1024, 24
        %s1026 = smov [#allocation14]
        %s1027 = scalar_lea.vmem %s1026, 24
        %s1028 = smov [#allocation15]
        %s1029 = scalar_lea.vmem %s1028, 24
        %v1030 = vld [vmem:[%s1023] sm:$0xff]
        %v1031 = vld [vmem:[%s1025] sm:$0xff]
        %v1032 = vld [vmem:[%s1027] sm:$0xff]
        %v1033 = vld [vmem:[%s1029] sm:$0xff]
        %v1034 = vmul.f32 %v1018, %v1030
        %v1035 = vmul.f32 %v1021, %v1032
        %v1036 = vsub.f32 %v1034, %v1035
        %v1037 = vmul.f32 %v1018, %v1031
        %v1038 = vmul.f32 %v1021, %v1033
        %v1039 = vsub.f32 %v1037, %v1038
        %v1040 = vmul.f32 %v1021, %v1030
        %v1041 = vmul.f32 %v1018, %v1032
        %v1042 = vadd.f32 %v1040, %v1041
        %v1043 = vmul.f32 %v1021, %v1031
        %v1044 = vmul.f32 %v1018, %v1033
        %v1045 = vadd.f32 %v1043, %v1044
        %1046 = vst [vmem:[%s1023] sm:$0xff] %v1036
        %1047 = vst [vmem:[%s1025] sm:$0xff] %v1039
        %1048 = vst [vmem:[%s1027] sm:$0xff] %v1042
        %1049 = vst [vmem:[%s1029] sm:$0xff] %v1045
        %s1050 = smov [#allocation21]
        %v1051 = vld [vmem:[%s1050] ss:$0 sm:$0xff]
        %s1052 = smov [#allocation22]
        %v1053 = vld [vmem:[%s1052] ss:$0 sm:$0xff]
        %s1054 = smov [#allocation12]
        %s1055 = smov [#allocation13]
        %s1056 = smov [#allocation14]
        %s1057 = smov [#allocation15]
        %v1058 = vld [vmem:[%s1054] sm:$0xff]
        %v1059 = vld [vmem:[%s1055] sm:$0xff]
        %v1060 = vld [vmem:[%s1056] sm:$0xff]
        %v1061 = vld [vmem:[%s1057] sm:$0xff]
        %v1062 = vmul.f32 %v1051, %v1058
        %v1063 = vmul.f32 %v1053, %v1059
        %v1064 = vsub.f32 %v1062, %v1063
        %v1065 = vmul.f32 %v1053, %v1058
        %v1066 = vmul.f32 %v1051, %v1059
        %v1067 = vadd.f32 %v1065, %v1066
        %v1068 = vmul.f32 %v1051, %v1060
        %v1069 = vmul.f32 %v1053, %v1061
        %v1070 = vsub.f32 %v1068, %v1069
        %v1071 = vmul.f32 %v1053, %v1060
        %v1072 = vmul.f32 %v1051, %v1061
        %v1073 = vadd.f32 %v1071, %v1072
        %1074 = vst [vmem:[%s1054] sm:$0xff] %v1064
        %1075 = vst [vmem:[%s1055] sm:$0xff] %v1067
        %1076 = vst [vmem:[%s1056] sm:$0xff] %v1070
        %1077 = vst [vmem:[%s1057] sm:$0xff] %v1073
        %s1078 = smov [#allocation12]
        %s1079 = scalar_lea.vmem %s1078, 8
        %s1080 = smov [#allocation13]
        %s1081 = scalar_lea.vmem %s1080, 8
        %s1082 = smov [#allocation14]
        %s1083 = scalar_lea.vmem %s1082, 8
        %s1084 = smov [#allocation15]
        %s1085 = scalar_lea.vmem %s1084, 8
        %v1086 = vld [vmem:[%s1079] sm:$0xff]
        %v1087 = vld [vmem:[%s1081] sm:$0xff]
        %v1088 = vld [vmem:[%s1083] sm:$0xff]
        %v1089 = vld [vmem:[%s1085] sm:$0xff]
        %v1090 = vmul.f32 %v1051, %v1086
        %v1091 = vmul.f32 %v1053, %v1087
        %v1092 = vsub.f32 %v1090, %v1091
        %v1093 = vmul.f32 %v1053, %v1086
        %v1094 = vmul.f32 %v1051, %v1087
        %v1095 = vadd.f32 %v1093, %v1094
        %v1096 = vmul.f32 %v1051, %v1088
        %v1097 = vmul.f32 %v1053, %v1089
        %v1098 = vsub.f32 %v1096, %v1097
        %v1099 = vmul.f32 %v1053, %v1088
        %v1100 = vmul.f32 %v1051, %v1089
        %v1101 = vadd.f32 %v1099, %v1100
        %1102 = vst [vmem:[%s1079] sm:$0xff] %v1092
        %1103 = vst [vmem:[%s1081] sm:$0xff] %v1095
        %1104 = vst [vmem:[%s1083] sm:$0xff] %v1098
        %1105 = vst [vmem:[%s1085] sm:$0xff] %v1101
        %s1106 = smov [#allocation12]
        %s1107 = scalar_lea.vmem %s1106, 16
        %s1108 = smov [#allocation13]
        %s1109 = scalar_lea.vmem %s1108, 16
        %s1110 = smov [#allocation14]
        %s1111 = scalar_lea.vmem %s1110, 16
        %s1112 = smov [#allocation15]
        %s1113 = scalar_lea.vmem %s1112, 16
        %v1114 = vld [vmem:[%s1107] sm:$0xff]
        %v1115 = vld [vmem:[%s1109] sm:$0xff]
        %v1116 = vld [vmem:[%s1111] sm:$0xff]
        %v1117 = vld [vmem:[%s1113] sm:$0xff]
        %v1118 = vmul.f32 %v1051, %v1114
        %v1119 = vmul.f32 %v1053, %v1115
        %v1120 = vsub.f32 %v1118, %v1119
        %v1121 = vmul.f32 %v1053, %v1114
        %v1122 = vmul.f32 %v1051, %v1115
        %v1123 = vadd.f32 %v1121, %v1122
        %v1124 = vmul.f32 %v1051, %v1116
        %v1125 = vmul.f32 %v1053, %v1117
        %v1126 = vsub.f32 %v1124, %v1125
        %v1127 = vmul.f32 %v1053, %v1116
        %v1128 = vmul.f32 %v1051, %v1117
        %v1129 = vadd.f32 %v1127, %v1128
        %1130 = vst [vmem:[%s1107] sm:$0xff] %v1120
        %1131 = vst [vmem:[%s1109] sm:$0xff] %v1123
        %1132 = vst [vmem:[%s1111] sm:$0xff] %v1126
        %1133 = vst [vmem:[%s1113] sm:$0xff] %v1129
        %s1134 = smov [#allocation12]
        %s1135 = scalar_lea.vmem %s1134, 24
        %s1136 = smov [#allocation13]
        %s1137 = scalar_lea.vmem %s1136, 24
        %s1138 = smov [#allocation14]
        %s1139 = scalar_lea.vmem %s1138, 24
        %s1140 = smov [#allocation15]
        %s1141 = scalar_lea.vmem %s1140, 24
        %v1142 = vld [vmem:[%s1135] sm:$0xff]
        %v1143 = vld [vmem:[%s1137] sm:$0xff]
        %v1144 = vld [vmem:[%s1139] sm:$0xff]
        %v1145 = vld [vmem:[%s1141] sm:$0xff]
        %v1146 = vmul.f32 %v1051, %v1142
        %v1147 = vmul.f32 %v1053, %v1143
        %v1148 = vsub.f32 %v1146, %v1147
        %v1149 = vmul.f32 %v1053, %v1142
        %v1150 = vmul.f32 %v1051, %v1143
        %v1151 = vadd.f32 %v1149, %v1150
        %v1152 = vmul.f32 %v1051, %v1144
        %v1153 = vmul.f32 %v1053, %v1145
        %v1154 = vsub.f32 %v1152, %v1153
        %v1155 = vmul.f32 %v1053, %v1144
        %v1156 = vmul.f32 %v1051, %v1145
        %v1157 = vadd.f32 %v1155, %v1156
        %1158 = vst [vmem:[%s1135] sm:$0xff] %v1148
        %1159 = vst [vmem:[%s1137] sm:$0xff] %v1151
        %1160 = vst [vmem:[%s1139] sm:$0xff] %v1154
        %1161 = vst [vmem:[%s1141] sm:$0xff] %v1157
        %s1162 = smov [#allocation12]
        %s1163 = smov [#allocation19]
        %v1164 = vlaneseq
        %v1165 = vand.u32 %v1164, 127
        %v1166 = vmov %v1165
        %v1167 = vlaneseq
        %v1168 = vshrl.u32 %v1167, 7
        %v1169 = vmov %v1168
        %v1170 = vld [vmem:[%s1163] ss:$0 sm:$0xff]
        %v1171 = vld [vmem:[%s1162] sm:$0xff]
        %vm1174 = vcmp.eq.s32.totalorder %v1169, %v1166
        %v1175 = vsel %vm1174, %v1170, %v1171
        %1176 = vst [vmem:[%s1162] sm:$0xff] %v1175
        %v1177 = vld [vmem:[%s1163] ss:$0 sm:$0xff]
        %s1178 = scalar_lea.vmem %s1162, 8
        %v1179 = vld [vmem:[%s1178] sm:$0xff]
        %v1181 = vadd.s32 %v1169, 8
        %vm1182 = vcmp.eq.s32.totalorder %v1181, %v1166
        %v1183 = vsel %vm1182, %v1177, %v1179
        %1184 = vst [vmem:[%s1178] sm:$0xff] %v1183
        %v1185 = vld [vmem:[%s1163] ss:$0 sm:$0xff]
        %s1186 = scalar_lea.vmem %s1162, 16
        %v1187 = vld [vmem:[%s1186] sm:$0xff]
        %v1189 = vadd.s32 %v1169, 16
        %vm1190 = vcmp.eq.s32.totalorder %v1189, %v1166
        %v1191 = vsel %vm1190, %v1185, %v1187
        %1192 = vst [vmem:[%s1186] sm:$0xff] %v1191
        %v1193 = vld [vmem:[%s1163] ss:$0 sm:$0xff]
        %s1194 = scalar_lea.vmem %s1162, 24
        %v1195 = vld [vmem:[%s1194] sm:$0xff]
        %v1197 = vadd.s32 %v1169, 24
        %vm1198 = vcmp.eq.s32.totalorder %v1197, %v1166
        %v1199 = vsel %vm1198, %v1193, %v1195
        %1200 = vst [vmem:[%s1194] sm:$0xff] %v1199
        %s1201 = smov [#allocation13]
        %v1202 = vlaneseq
        %v1203 = vand.u32 %v1202, 127
        %v1204 = vmov %v1203
        %v1205 = vlaneseq
        %v1206 = vshrl.u32 %v1205, 7
        %v1207 = vmov %v1206
        %v1208 = vld [vmem:[%s1201] sm:$0xff]
        %vm1211 = vcmp.eq.s32.totalorder %v1207, %v1204
        %v1212 = vsel %vm1211, 0.0, %v1208
        %1213 = vst [vmem:[%s1201] sm:$0xff] %v1212
        %s1214 = scalar_lea.vmem %s1201, 8
        %v1215 = vld [vmem:[%s1214] sm:$0xff]
        %v1217 = vadd.s32 %v1207, 8
        %vm1218 = vcmp.eq.s32.totalorder %v1217, %v1204
        %v1219 = vsel %vm1218, 0.0, %v1215
        %1220 = vst [vmem:[%s1214] sm:$0xff] %v1219
        %s1221 = scalar_lea.vmem %s1201, 16
        %v1222 = vld [vmem:[%s1221] sm:$0xff]
        %v1224 = vadd.s32 %v1207, 16
        %vm1225 = vcmp.eq.s32.totalorder %v1224, %v1204
        %v1226 = vsel %vm1225, 0.0, %v1222
        %1227 = vst [vmem:[%s1221] sm:$0xff] %v1226
        %s1228 = scalar_lea.vmem %s1201, 24
        %v1229 = vld [vmem:[%s1228] sm:$0xff]
        %v1231 = vadd.s32 %v1207, 24
        %vm1232 = vcmp.eq.s32.totalorder %v1231, %v1204
        %v1233 = vsel %vm1232, 0.0, %v1229
        %1234 = vst [vmem:[%s1228] sm:$0xff] %v1233
        %s1235 = smov [#allocation14]
        %v1236 = vlaneseq
        %v1237 = vand.u32 %v1236, 127
        %v1238 = vmov %v1237
        %v1239 = vlaneseq
        %v1240 = vshrl.u32 %v1239, 7
        %v1241 = vmov %v1240
        %v1242 = vld [vmem:[%s1235] sm:$0xff]
        %vm1245 = vcmp.eq.s32.totalorder %v1241, %v1238
        %v1246 = vsel %vm1245, 0.0, %v1242
        %1247 = vst [vmem:[%s1235] sm:$0xff] %v1246
        %s1248 = scalar_lea.vmem %s1235, 8
        %v1249 = vld [vmem:[%s1248] sm:$0xff]
        %v1251 = vadd.s32 %v1241, 8
        %vm1252 = vcmp.eq.s32.totalorder %v1251, %v1238
        %v1253 = vsel %vm1252, 0.0, %v1249
        %1254 = vst [vmem:[%s1248] sm:$0xff] %v1253
        %s1255 = scalar_lea.vmem %s1235, 16
        %v1256 = vld [vmem:[%s1255] sm:$0xff]
        %v1258 = vadd.s32 %v1241, 16
        %vm1259 = vcmp.eq.s32.totalorder %v1258, %v1238
        %v1260 = vsel %vm1259, 0.0, %v1256
        %1261 = vst [vmem:[%s1255] sm:$0xff] %v1260
        %s1262 = scalar_lea.vmem %s1235, 24
        %v1263 = vld [vmem:[%s1262] sm:$0xff]
        %v1265 = vadd.s32 %v1241, 24
        %vm1266 = vcmp.eq.s32.totalorder %v1265, %v1238
        %v1267 = vsel %vm1266, 0.0, %v1263
        %1268 = vst [vmem:[%s1262] sm:$0xff] %v1267
        %s1269 = smov [#allocation15]
        %s1270 = smov [#allocation20]
        %v1271 = vlaneseq
        %v1272 = vand.u32 %v1271, 127
        %v1273 = vmov %v1272
        %v1274 = vlaneseq
        %v1275 = vshrl.u32 %v1274, 7
        %v1276 = vmov %v1275
        %v1277 = vld [vmem:[%s1270] ss:$0 sm:$0xff]
        %v1278 = vld [vmem:[%s1269] sm:$0xff]
        %vm1281 = vcmp.eq.s32.totalorder %v1276, %v1273
        %v1282 = vsel %vm1281, %v1277, %v1278
        %1283 = vst [vmem:[%s1269] sm:$0xff] %v1282
        %v1284 = vld [vmem:[%s1270] ss:$0 sm:$0xff]
        %s1285 = scalar_lea.vmem %s1269, 8
        %v1286 = vld [vmem:[%s1285] sm:$0xff]
        %v1288 = vadd.s32 %v1276, 8
        %vm1289 = vcmp.eq.s32.totalorder %v1288, %v1273
        %v1290 = vsel %vm1289, %v1284, %v1286
        %1291 = vst [vmem:[%s1285] sm:$0xff] %v1290
        %v1292 = vld [vmem:[%s1270] ss:$0 sm:$0xff]
        %s1293 = scalar_lea.vmem %s1269, 16
        %v1294 = vld [vmem:[%s1293] sm:$0xff]
        %v1296 = vadd.s32 %v1276, 16
        %vm1297 = vcmp.eq.s32.totalorder %v1296, %v1273
        %v1298 = vsel %vm1297, %v1292, %v1294
        %1299 = vst [vmem:[%s1293] sm:$0xff] %v1298
        %v1300 = vld [vmem:[%s1270] ss:$0 sm:$0xff]
        %s1301 = scalar_lea.vmem %s1269, 24
        %v1302 = vld [vmem:[%s1301] sm:$0xff]
        %v1304 = vadd.s32 %v1276, 24
        %vm1305 = vcmp.eq.s32.totalorder %v1304, %v1273
        %v1306 = vsel %vm1305, %v1300, %v1302
        %1307 = vst [vmem:[%s1301] sm:$0xff] %v1306
        %s1308 = smov [#allocation12]
        %s1309 = smov [#allocation13]
        %v1310 = vld [vmem:[%s1309] sm:$0xff]
        %1311 = vrot.lane.b32.xlu0 %v1310, 1
        %v1312 = vpop.permute.xlu0 %1311
        %v1313 = vld [vmem:[%s1308] sm:$0xff]
        %v1314 = vld [vmem:[%s1308] sm:$0xff]
        %1315 = vrot.lane.b32.xlu0 %v1314, 1
        %v1316 = vpop.permute.xlu0 %1315
        %v1317 = vlaneseq
        %v1318 = vand.u32 %v1317, 127
        %vm1319 = vcmp.eq.s32.totalorder %v1318, 0
        %v1320 = vsel %vm1319, %v1314, %v1316
        %v1321 = vlaneseq
        %v1322 = vand.u32 %v1321, 127
        %vm1323 = vcmp.eq.s32.totalorder %v1322, 1
        %v1324 = vsel %vm1323, %v1312, %v1320
        %v1325 = vlaneseq
        %v1326 = vand.u32 %v1325, 127
        %vm1327 = vcmp.ge.s32.totalorder %v1326, 0
        %vm1328 = vcmp.lt.s32.totalorder %v1326, 32
        %vm1329 = vmand %vm1327, %vm1328
        %v1330 = vsel %vm1329, %v1324, 0.0
        %v1331 = vld [vmem:[%s1309] sm:$0xff]
        %1332 = vrot.lane.b32.xlu0 %v1331, 127
        %v1333 = vpop.permute.xlu0 %1332
        %v1334 = vlaneseq
        %v1335 = vand.u32 %v1334, 127
        %vm1336 = vcmp.eq.s32.totalorder %v1335, 31
        %v1337 = vsel %vm1336, %v1313, %v1333
        %s1338 = smov [#allocation12]
        %s1339 = scalar_lea.vmem %s1338, 8
        %s1340 = smov [#allocation13]
        %s1341 = scalar_lea.vmem %s1340, 8
        %v1342 = vld [vmem:[%s1341] sm:$0xff]
        %1343 = vrot.lane.b32.xlu0 %v1342, 1
        %v1344 = vpop.permute.xlu0 %1343
        %v1345 = vld [vmem:[%s1339] sm:$0xff]
        %v1346 = vld [vmem:[%s1339] sm:$0xff]
        %1347 = vrot.lane.b32.xlu0 %v1346, 1
        %v1348 = vpop.permute.xlu0 %1347
        %v1349 = vlaneseq
        %v1350 = vand.u32 %v1349, 127
        %vm1351 = vcmp.eq.s32.totalorder %v1350, 0
        %v1352 = vsel %vm1351, %v1346, %v1348
        %v1353 = vlaneseq
        %v1354 = vand.u32 %v1353, 127
        %vm1355 = vcmp.eq.s32.totalorder %v1354, 1
        %v1356 = vsel %vm1355, %v1344, %v1352
        %v1357 = vlaneseq
        %v1358 = vand.u32 %v1357, 127
        %vm1359 = vcmp.ge.s32.totalorder %v1358, 0
        %vm1360 = vcmp.lt.s32.totalorder %v1358, 32
        %vm1361 = vmand %vm1359, %vm1360
        %v1362 = vsel %vm1361, %v1356, 0.0
        %v1363 = vld [vmem:[%s1341] sm:$0xff]
        %1364 = vrot.lane.b32.xlu0 %v1363, 127
        %v1365 = vpop.permute.xlu0 %1364
        %v1366 = vlaneseq
        %v1367 = vand.u32 %v1366, 127
        %vm1368 = vcmp.eq.s32.totalorder %v1367, 31
        %v1369 = vsel %vm1368, %v1345, %v1365
        %s1370 = smov [#allocation12]
        %s1371 = scalar_lea.vmem %s1370, 16
        %s1372 = smov [#allocation13]
        %s1373 = scalar_lea.vmem %s1372, 16
        %v1374 = vld [vmem:[%s1373] sm:$0xff]
        %1375 = vrot.lane.b32.xlu0 %v1374, 1
        %v1376 = vpop.permute.xlu0 %1375
        %v1377 = vld [vmem:[%s1371] sm:$0xff]
        %v1378 = vld [vmem:[%s1371] sm:$0xff]
        %1379 = vrot.lane.b32.xlu0 %v1378, 1
        %v1380 = vpop.permute.xlu0 %1379
        %v1381 = vlaneseq
        %v1382 = vand.u32 %v1381, 127
        %vm1383 = vcmp.eq.s32.totalorder %v1382, 0
        %v1384 = vsel %vm1383, %v1378, %v1380
        %v1385 = vlaneseq
        %v1386 = vand.u32 %v1385, 127
        %vm1387 = vcmp.eq.s32.totalorder %v1386, 1
        %v1388 = vsel %vm1387, %v1376, %v1384
        %v1389 = vlaneseq
        %v1390 = vand.u32 %v1389, 127
        %vm1391 = vcmp.ge.s32.totalorder %v1390, 0
        %vm1392 = vcmp.lt.s32.totalorder %v1390, 32
        %vm1393 = vmand %vm1391, %vm1392
        %v1394 = vsel %vm1393, %v1388, 0.0
        %v1395 = vld [vmem:[%s1373] sm:$0xff]
        %1396 = vrot.lane.b32.xlu0 %v1395, 127
        %v1397 = vpop.permute.xlu0 %1396
        %v1398 = vlaneseq
        %v1399 = vand.u32 %v1398, 127
        %vm1400 = vcmp.eq.s32.totalorder %v1399, 31
        %v1401 = vsel %vm1400, %v1377, %v1397
        %s1402 = smov [#allocation12]
        %s1403 = scalar_lea.vmem %s1402, 24
        %s1404 = smov [#allocation13]
        %s1405 = scalar_lea.vmem %s1404, 24
        %v1406 = vld [vmem:[%s1405] sm:$0xff]
        %1407 = vrot.lane.b32.xlu0 %v1406, 1
        %v1408 = vpop.permute.xlu0 %1407
        %v1409 = vld [vmem:[%s1403] sm:$0xff]
        %v1410 = vld [vmem:[%s1403] sm:$0xff]
        %1411 = vrot.lane.b32.xlu0 %v1410, 1
        %v1412 = vpop.permute.xlu0 %1411
        %v1413 = vlaneseq
        %v1414 = vand.u32 %v1413, 127
        %vm1415 = vcmp.eq.s32.totalorder %v1414, 0
        %v1416 = vsel %vm1415, %v1410, %v1412
        %v1417 = vlaneseq
        %v1418 = vand.u32 %v1417, 127
        %vm1419 = vcmp.eq.s32.totalorder %v1418, 1
        %v1420 = vsel %vm1419, %v1408, %v1416
        %v1421 = vlaneseq
        %v1422 = vand.u32 %v1421, 127
        %vm1423 = vcmp.ge.s32.totalorder %v1422, 0
        %vm1424 = vcmp.lt.s32.totalorder %v1422, 32
        %vm1425 = vmand %vm1423, %vm1424
        %v1426 = vsel %vm1425, %v1420, 0.0
        %v1427 = vld [vmem:[%s1405] sm:$0xff]
        %1428 = vrot.lane.b32.xlu0 %v1427, 127
        %v1429 = vpop.permute.xlu0 %1428
        %v1430 = vlaneseq
        %v1431 = vand.u32 %v1430, 127
        %vm1432 = vcmp.eq.s32.totalorder %v1431, 31
        %v1433 = vsel %vm1432, %v1409, %v1429
        %1434 = vst [vmem:[%s1308] sm:$0xff] %v1330
        %1435 = vst [vmem:[%s1309] sm:$0xff] %v1337
        %1436 = vst [vmem:[%s1339] sm:$0xff] %v1362
        %1437 = vst [vmem:[%s1341] sm:$0xff] %v1369
        %1438 = vst [vmem:[%s1371] sm:$0xff] %v1394
        %1439 = vst [vmem:[%s1373] sm:$0xff] %v1401
        %1440 = vst [vmem:[%s1403] sm:$0xff] %v1426
        %1441 = vst [vmem:[%s1405] sm:$0xff] %v1433
        %s1442 = smov [#allocation14]
        %s1443 = smov [#allocation15]
        %v1444 = vld [vmem:[%s1443] sm:$0xff]
        %1445 = vrot.lane.b32.xlu0 %v1444, 1
        %v1446 = vpop.permute.xlu0 %1445
        %v1447 = vld [vmem:[%s1442] sm:$0xff]
        %v1448 = vld [vmem:[%s1442] sm:$0xff]
        %1449 = vrot.lane.b32.xlu0 %v1448, 1
        %v1450 = vpop.permute.xlu0 %1449
        %v1451 = vlaneseq
        %v1452 = vand.u32 %v1451, 127
        %vm1453 = vcmp.eq.s32.totalorder %v1452, 0
        %v1454 = vsel %vm1453, %v1448, %v1450
        %v1455 = vlaneseq
        %v1456 = vand.u32 %v1455, 127
        %vm1457 = vcmp.eq.s32.totalorder %v1456, 1
        %v1458 = vsel %vm1457, %v1446, %v1454
        %v1459 = vlaneseq
        %v1460 = vand.u32 %v1459, 127
        %vm1461 = vcmp.ge.s32.totalorder %v1460, 0
        %vm1462 = vcmp.lt.s32.totalorder %v1460, 32
        %vm1463 = vmand %vm1461, %vm1462
        %v1464 = vsel %vm1463, %v1458, 0.0
        %v1465 = vld [vmem:[%s1443] sm:$0xff]
        %1466 = vrot.lane.b32.xlu0 %v1465, 127
        %v1467 = vpop.permute.xlu0 %1466
        %v1468 = vlaneseq
        %v1469 = vand.u32 %v1468, 127
        %vm1470 = vcmp.eq.s32.totalorder %v1469, 31
        %v1471 = vsel %vm1470, %v1447, %v1467
        %s1472 = smov [#allocation14]
        %s1473 = scalar_lea.vmem %s1472, 8
        %s1474 = smov [#allocation15]
        %s1475 = scalar_lea.vmem %s1474, 8
        %v1476 = vld [vmem:[%s1475] sm:$0xff]
        %1477 = vrot.lane.b32.xlu0 %v1476, 1
        %v1478 = vpop.permute.xlu0 %1477
        %v1479 = vld [vmem:[%s1473] sm:$0xff]
        %v1480 = vld [vmem:[%s1473] sm:$0xff]
        %1481 = vrot.lane.b32.xlu0 %v1480, 1
        %v1482 = vpop.permute.xlu0 %1481
        %v1483 = vlaneseq
        %v1484 = vand.u32 %v1483, 127
        %vm1485 = vcmp.eq.s32.totalorder %v1484, 0
        %v1486 = vsel %vm1485, %v1480, %v1482
        %v1487 = vlaneseq
        %v1488 = vand.u32 %v1487, 127
        %vm1489 = vcmp.eq.s32.totalorder %v1488, 1
        %v1490 = vsel %vm1489, %v1478, %v1486
        %v1491 = vlaneseq
        %v1492 = vand.u32 %v1491, 127
        %vm1493 = vcmp.ge.s32.totalorder %v1492, 0
        %vm1494 = vcmp.lt.s32.totalorder %v1492, 32
        %vm1495 = vmand %vm1493, %vm1494
        %v1496 = vsel %vm1495, %v1490, 0.0
        %v1497 = vld [vmem:[%s1475] sm:$0xff]
        %1498 = vrot.lane.b32.xlu0 %v1497, 127
        %v1499 = vpop.permute.xlu0 %1498
        %v1500 = vlaneseq
        %v1501 = vand.u32 %v1500, 127
        %vm1502 = vcmp.eq.s32.totalorder %v1501, 31
        %v1503 = vsel %vm1502, %v1479, %v1499
        %s1504 = smov [#allocation14]
        %s1505 = scalar_lea.vmem %s1504, 16
        %s1506 = smov [#allocation15]
        %s1507 = scalar_lea.vmem %s1506, 16
        %v1508 = vld [vmem:[%s1507] sm:$0xff]
        %1509 = vrot.lane.b32.xlu0 %v1508, 1
        %v1510 = vpop.permute.xlu0 %1509
        %v1511 = vld [vmem:[%s1505] sm:$0xff]
        %v1512 = vld [vmem:[%s1505] sm:$0xff]
        %1513 = vrot.lane.b32.xlu0 %v1512, 1
        %v1514 = vpop.permute.xlu0 %1513
        %v1515 = vlaneseq
        %v1516 = vand.u32 %v1515, 127
        %vm1517 = vcmp.eq.s32.totalorder %v1516, 0
        %v1518 = vsel %vm1517, %v1512, %v1514
        %v1519 = vlaneseq
        %v1520 = vand.u32 %v1519, 127
        %vm1521 = vcmp.eq.s32.totalorder %v1520, 1
        %v1522 = vsel %vm1521, %v1510, %v1518
        %v1523 = vlaneseq
        %v1524 = vand.u32 %v1523, 127
        %vm1525 = vcmp.ge.s32.totalorder %v1524, 0
        %vm1526 = vcmp.lt.s32.totalorder %v1524, 32
        %vm1527 = vmand %vm1525, %vm1526
        %v1528 = vsel %vm1527, %v1522, 0.0
        %v1529 = vld [vmem:[%s1507] sm:$0xff]
        %1530 = vrot.lane.b32.xlu0 %v1529, 127
        %v1531 = vpop.permute.xlu0 %1530
        %v1532 = vlaneseq
        %v1533 = vand.u32 %v1532, 127
        %vm1534 = vcmp.eq.s32.totalorder %v1533, 31
        %v1535 = vsel %vm1534, %v1511, %v1531
        %s1536 = smov [#allocation14]
        %s1537 = scalar_lea.vmem %s1536, 24
        %s1538 = smov [#allocation15]
        %s1539 = scalar_lea.vmem %s1538, 24
        %v1540 = vld [vmem:[%s1539] sm:$0xff]
        %1541 = vrot.lane.b32.xlu0 %v1540, 1
        %v1542 = vpop.permute.xlu0 %1541
        %v1543 = vld [vmem:[%s1537] sm:$0xff]
        %v1544 = vld [vmem:[%s1537] sm:$0xff]
        %1545 = vrot.lane.b32.xlu0 %v1544, 1
        %v1546 = vpop.permute.xlu0 %1545
        %v1547 = vlaneseq
        %v1548 = vand.u32 %v1547, 127
        %vm1549 = vcmp.eq.s32.totalorder %v1548, 0
        %v1550 = vsel %vm1549, %v1544, %v1546
        %v1551 = vlaneseq
        %v1552 = vand.u32 %v1551, 127
        %vm1553 = vcmp.eq.s32.totalorder %v1552, 1
        %v1554 = vsel %vm1553, %v1542, %v1550
        %v1555 = vlaneseq
        %v1556 = vand.u32 %v1555, 127
        %vm1557 = vcmp.ge.s32.totalorder %v1556, 0
        %vm1558 = vcmp.lt.s32.totalorder %v1556, 32
        %vm1559 = vmand %vm1557, %vm1558
        %v1560 = vsel %vm1559, %v1554, 0.0
        %v1561 = vld [vmem:[%s1539] sm:$0xff]
        %1562 = vrot.lane.b32.xlu0 %v1561, 127
        %v1563 = vpop.permute.xlu0 %1562
        %v1564 = vlaneseq
        %v1565 = vand.u32 %v1564, 127
        %vm1566 = vcmp.eq.s32.totalorder %v1565, 31
        %v1567 = vsel %vm1566, %v1543, %v1563
        %1568 = vst [vmem:[%s1442] sm:$0xff] %v1464
        %1569 = vst [vmem:[%s1443] sm:$0xff] %v1471
        %1570 = vst [vmem:[%s1473] sm:$0xff] %v1496
        %1571 = vst [vmem:[%s1475] sm:$0xff] %v1503
        %1572 = vst [vmem:[%s1505] sm:$0xff] %v1528
        %1573 = vst [vmem:[%s1507] sm:$0xff] %v1535
        %1574 = vst [vmem:[%s1537] sm:$0xff] %v1560
        %1575 = vst [vmem:[%s1539] sm:$0xff] %v1567
        %s1576 = smov [#allocation12]
        %s1577 = smov [#allocation14]
        %v1578 = vld [vmem:[%s1576] ss:$0 sm:$0xff]
        %s1580 = scalar_lea.vmem %s1576, 4294967295
        %v1581 = vld [vmem:[%s1580] sm:$0xfe]
        %v1582 = vlaneseq
        %v1583 = vshrl.u32 %v1582, 7
        %vm1584 = vcmp.eq.s32.totalorder %v1583, 0
        %v1585 = vsel %vm1584, %v1578, %v1581
        %s1586 = scalar_lea.vmem %s1576, 7
        %v1587 = vld [vmem:[%s1586] ss:$0 sm:$0xff]
        %1588 = vst [vmem:[%s1576] sm:$0xff] %v1585
        %s1589 = scalar_lea.vmem %s1576, 8
        %s1591 = scalar_lea.vmem %s1589, 4294967295
        %v1592 = vld [vmem:[%s1591] sm:$0xfe]
        %v1593 = vlaneseq
        %v1594 = vshrl.u32 %v1593, 7
        %vm1595 = vcmp.eq.s32.totalorder %v1594, 0
        %v1596 = vsel %vm1595, %v1587, %v1592
        %s1597 = scalar_lea.vmem %s1589, 7
        %v1598 = vld [vmem:[%s1597] ss:$0 sm:$0xff]
        %1599 = vst [vmem:[%s1589] sm:$0xff] %v1596
        %s1600 = scalar_lea.vmem %s1576, 16
        %s1602 = scalar_lea.vmem %s1600, 4294967295
        %v1603 = vld [vmem:[%s1602] sm:$0xfe]
        %v1604 = vlaneseq
        %v1605 = vshrl.u32 %v1604, 7
        %vm1606 = vcmp.eq.s32.totalorder %v1605, 0
        %v1607 = vsel %vm1606, %v1598, %v1603
        %s1608 = scalar_lea.vmem %s1600, 7
        %v1609 = vld [vmem:[%s1608] ss:$0 sm:$0xff]
        %1610 = vst [vmem:[%s1600] sm:$0xff] %v1607
        %s1611 = scalar_lea.vmem %s1576, 24
        %s1613 = scalar_lea.vmem %s1611, 4294967295
        %v1614 = vld [vmem:[%s1613] sm:$0xfe]
        %v1615 = vlaneseq
        %v1616 = vshrl.u32 %v1615, 7
        %vm1617 = vcmp.eq.s32.totalorder %v1616, 0
        %v1618 = vsel %vm1617, %v1609, %v1614
        %s1619 = scalar_lea.vmem %s1611, 7
        %v1620 = vld [vmem:[%s1619] ss:$0 sm:$0xff]
        %1621 = vst [vmem:[%s1611] sm:$0xff] %v1618
        %v1622 = vld [vmem:[%s1577] ss:$0 sm:$0xff]
        %s1623 = scalar_lea.vmem %s1576, 1
        %1624 = vst [vmem:[%s1623] sm:$0x1] %v1622
        %s1625 = scalar_lea.vmem %s1577, 24
        %s1626 = scalar_lea.vmem %s1625, 1
        %v1627 = vld [vmem:[%s1626] sm:$0x7f]
        %v1628 = vlaneseq
        %v1629 = vshrl.u32 %v1628, 7
        %vm1630 = vcmp.eq.s32.totalorder %v1629, 7
        %v1631 = vsel %vm1630, %v1620, %v1627
        %v1632 = vld [vmem:[%s1625] ss:$0 sm:$0xff]
        %1633 = vst [vmem:[%s1625] sm:$0xff] %v1631
        %s1634 = scalar_lea.vmem %s1577, 16
        %s1635 = scalar_lea.vmem %s1634, 1
        %v1636 = vld [vmem:[%s1635] sm:$0x7f]
        %v1637 = vlaneseq
        %v1638 = vshrl.u32 %v1637, 7
        %vm1639 = vcmp.eq.s32.totalorder %v1638, 7
        %v1640 = vsel %vm1639, %v1632, %v1636
        %v1641 = vld [vmem:[%s1634] ss:$0 sm:$0xff]
        %1642 = vst [vmem:[%s1634] sm:$0xff] %v1640
        %s1643 = scalar_lea.vmem %s1577, 8
        %s1644 = scalar_lea.vmem %s1643, 1
        %v1645 = vld [vmem:[%s1644] sm:$0x7f]
        %v1646 = vlaneseq
        %v1647 = vshrl.u32 %v1646, 7
        %vm1648 = vcmp.eq.s32.totalorder %v1647, 7
        %v1649 = vsel %vm1648, %v1641, %v1645
        %v1650 = vld [vmem:[%s1643] ss:$0 sm:$0xff]
        %1651 = vst [vmem:[%s1643] sm:$0xff] %v1649
        %s1652 = scalar_lea.vmem %s1577, 1
        %v1653 = vld [vmem:[%s1652] sm:$0x7f]
        %v1654 = vlaneseq
        %v1655 = vshrl.u32 %v1654, 7
        %vm1656 = vcmp.eq.s32.totalorder %v1655, 7
        %v1657 = vsel %vm1656, %v1650, %v1653
        %v1658 = vld [vmem:[%s1577] ss:$0 sm:$0xff]
        %1659 = vst [vmem:[%s1577] sm:$0xff] %v1657
        %s1660 = smov [#allocation13]
        %s1661 = smov [#allocation15]
        %v1662 = vld [vmem:[%s1660] ss:$0 sm:$0xff]
        %s1664 = scalar_lea.vmem %s1660, 4294967295
        %v1665 = vld [vmem:[%s1664] sm:$0xfe]
        %v1666 = vlaneseq
        %v1667 = vshrl.u32 %v1666, 7
        %vm1668 = vcmp.eq.s32.totalorder %v1667, 0
        %v1669 = vsel %vm1668, %v1662, %v1665
        %s1670 = scalar_lea.vmem %s1660, 7
        %v1671 = vld [vmem:[%s1670] ss:$0 sm:$0xff]
        %1672 = vst [vmem:[%s1660] sm:$0xff] %v1669
        %s1673 = scalar_lea.vmem %s1660, 8
        %s1675 = scalar_lea.vmem %s1673, 4294967295
        %v1676 = vld [vmem:[%s1675] sm:$0xfe]
        %v1677 = vlaneseq
        %v1678 = vshrl.u32 %v1677, 7
        %vm1679 = vcmp.eq.s32.totalorder %v1678, 0
        %v1680 = vsel %vm1679, %v1671, %v1676
        %s1681 = scalar_lea.vmem %s1673, 7
        %v1682 = vld [vmem:[%s1681] ss:$0 sm:$0xff]
        %1683 = vst [vmem:[%s1673] sm:$0xff] %v1680
        %s1684 = scalar_lea.vmem %s1660, 16
        %s1686 = scalar_lea.vmem %s1684, 4294967295
        %v1687 = vld [vmem:[%s1686] sm:$0xfe]
        %v1688 = vlaneseq
        %v1689 = vshrl.u32 %v1688, 7
        %vm1690 = vcmp.eq.s32.totalorder %v1689, 0
        %v1691 = vsel %vm1690, %v1682, %v1687
        %s1692 = scalar_lea.vmem %s1684, 7
        %v1693 = vld [vmem:[%s1692] ss:$0 sm:$0xff]
        %1694 = vst [vmem:[%s1684] sm:$0xff] %v1691
        %s1695 = scalar_lea.vmem %s1660, 24
        %s1697 = scalar_lea.vmem %s1695, 4294967295
        %v1698 = vld [vmem:[%s1697] sm:$0xfe]
        %v1699 = vlaneseq
        %v1700 = vshrl.u32 %v1699, 7
        %vm1701 = vcmp.eq.s32.totalorder %v1700, 0
        %v1702 = vsel %vm1701, %v1693, %v1698
        %s1703 = scalar_lea.vmem %s1695, 7
        %v1704 = vld [vmem:[%s1703] ss:$0 sm:$0xff]
        %1705 = vst [vmem:[%s1695] sm:$0xff] %v1702
        %v1706 = vld [vmem:[%s1661] ss:$0 sm:$0xff]
        %s1707 = scalar_lea.vmem %s1660, 1
        %1708 = vst [vmem:[%s1707] sm:$0x1] %v1706
        %s1709 = scalar_lea.vmem %s1661, 24
        %s1710 = scalar_lea.vmem %s1709, 1
        %v1711 = vld [vmem:[%s1710] sm:$0x7f]
        %v1712 = vlaneseq
        %v1713 = vshrl.u32 %v1712, 7
        %vm1714 = vcmp.eq.s32.totalorder %v1713, 7
        %v1715 = vsel %vm1714, %v1704, %v1711
        %v1716 = vld [vmem:[%s1709] ss:$0 sm:$0xff]
        %1717 = vst [vmem:[%s1709] sm:$0xff] %v1715
        %s1718 = scalar_lea.vmem %s1661, 16
        %s1719 = scalar_lea.vmem %s1718, 1
        %v1720 = vld [vmem:[%s1719] sm:$0x7f]
        %v1721 = vlaneseq
        %v1722 = vshrl.u32 %v1721, 7
        %vm1723 = vcmp.eq.s32.totalorder %v1722, 7
        %v1724 = vsel %vm1723, %v1716, %v1720
        %v1725 = vld [vmem:[%s1718] ss:$0 sm:$0xff]
        %1726 = vst [vmem:[%s1718] sm:$0xff] %v1724
        %s1727 = scalar_lea.vmem %s1661, 8
        %s1728 = scalar_lea.vmem %s1727, 1
        %v1729 = vld [vmem:[%s1728] sm:$0x7f]
        %v1730 = vlaneseq
        %v1731 = vshrl.u32 %v1730, 7
        %vm1732 = vcmp.eq.s32.totalorder %v1731, 7
        %v1733 = vsel %vm1732, %v1725, %v1729
        %v1734 = vld [vmem:[%s1727] ss:$0 sm:$0xff]
        %1735 = vst [vmem:[%s1727] sm:$0xff] %v1733
        %s1736 = scalar_lea.vmem %s1661, 1
        %v1737 = vld [vmem:[%s1736] sm:$0x7f]
        %v1738 = vlaneseq
        %v1739 = vshrl.u32 %v1738, 7
        %vm1740 = vcmp.eq.s32.totalorder %v1739, 7
        %v1741 = vsel %vm1740, %v1734, %v1737
        %v1742 = vld [vmem:[%s1661] ss:$0 sm:$0xff]
        %1743 = vst [vmem:[%s1661] sm:$0xff] %v1741
        %s1744 = smov [#allocation23]
        %v1745 = vld [vmem:[%s1744] sm:$0xff]
        %s1746 = smov [#allocation24]
        %v1747 = vld [vmem:[%s1746] sm:$0xff]
        %s1748 = smov [#allocation8]
        %s1749 = smov [#allocation9]
        %s1750 = smov [#allocation10]
        %s1751 = smov [#allocation11]
        %v1752 = vld [vmem:[%s1748] sm:$0xff]
        %v1753 = vld [vmem:[%s1749] sm:$0xff]
        %v1754 = vld [vmem:[%s1750] sm:$0xff]
        %v1755 = vld [vmem:[%s1751] sm:$0xff]
        %v1756 = vmul.f32 %v1745, %v1752
        %v1757 = vmul.f32 %v1747, %v1754
        %v1758 = vsub.f32 %v1756, %v1757
        %v1759 = vmul.f32 %v1745, %v1753
        %v1760 = vmul.f32 %v1747, %v1755
        %v1761 = vsub.f32 %v1759, %v1760
        %v1762 = vmul.f32 %v1747, %v1752
        %v1763 = vmul.f32 %v1745, %v1754
        %v1764 = vadd.f32 %v1762, %v1763
        %v1765 = vmul.f32 %v1747, %v1753
        %v1766 = vmul.f32 %v1745, %v1755
        %v1767 = vadd.f32 %v1765, %v1766
        %1768 = vst [vmem:[%s1748] sm:$0xff] %v1758
        %1769 = vst [vmem:[%s1749] sm:$0xff] %v1761
        %1770 = vst [vmem:[%s1750] sm:$0xff] %v1764
        %1771 = vst [vmem:[%s1751] sm:$0xff] %v1767
        %s1772 = smov [#allocation23]
        %s1773 = scalar_lea.vmem %s1772, 8
        %v1774 = vld [vmem:[%s1773] sm:$0xff]
        %s1775 = smov [#allocation24]
        %s1776 = scalar_lea.vmem %s1775, 8
        %v1777 = vld [vmem:[%s1776] sm:$0xff]
        %s1778 = smov [#allocation8]
        %s1779 = scalar_lea.vmem %s1778, 8
        %s1780 = smov [#allocation9]
        %s1781 = scalar_lea.vmem %s1780, 8
        %s1782 = smov [#allocation10]
        %s1783 = scalar_lea.vmem %s1782, 8
        %s1784 = smov [#allocation11]
        %s1785 = scalar_lea.vmem %s1784, 8
        %v1786 = vld [vmem:[%s1779] sm:$0xff]
        %v1787 = vld [vmem:[%s1781] sm:$0xff]
        %v1788 = vld [vmem:[%s1783] sm:$0xff]
        %v1789 = vld [vmem:[%s1785] sm:$0xff]
        %v1790 = vmul.f32 %v1774, %v1786
        %v1791 = vmul.f32 %v1777, %v1788
        %v1792 = vsub.f32 %v1790, %v1791
        %v1793 = vmul.f32 %v1774, %v1787
        %v1794 = vmul.f32 %v1777, %v1789
        %v1795 = vsub.f32 %v1793, %v1794
        %v1796 = vmul.f32 %v1777, %v1786
        %v1797 = vmul.f32 %v1774, %v1788
        %v1798 = vadd.f32 %v1796, %v1797
        %v1799 = vmul.f32 %v1777, %v1787
        %v1800 = vmul.f32 %v1774, %v1789
        %v1801 = vadd.f32 %v1799, %v1800
        %1802 = vst [vmem:[%s1779] sm:$0xff] %v1792
        %1803 = vst [vmem:[%s1781] sm:$0xff] %v1795
        %1804 = vst [vmem:[%s1783] sm:$0xff] %v1798
        %1805 = vst [vmem:[%s1785] sm:$0xff] %v1801
        %s1806 = smov [#allocation23]
        %s1807 = scalar_lea.vmem %s1806, 16
        %v1808 = vld [vmem:[%s1807] sm:$0xff]
        %s1809 = smov [#allocation24]
        %s1810 = scalar_lea.vmem %s1809, 16
        %v1811 = vld [vmem:[%s1810] sm:$0xff]
        %s1812 = smov [#allocation8]
        %s1813 = scalar_lea.vmem %s1812, 16
        %s1814 = smov [#allocation9]
        %s1815 = scalar_lea.vmem %s1814, 16
        %s1816 = smov [#allocation10]
        %s1817 = scalar_lea.vmem %s1816, 16
        %s1818 = smov [#allocation11]
        %s1819 = scalar_lea.vmem %s1818, 16
        %v1820 = vld [vmem:[%s1813] sm:$0xff]
        %v1821 = vld [vmem:[%s1815] sm:$0xff]
        %v1822 = vld [vmem:[%s1817] sm:$0xff]
        %v1823 = vld [vmem:[%s1819] sm:$0xff]
        %v1824 = vmul.f32 %v1808, %v1820
        %v1825 = vmul.f32 %v1811, %v1822
        %v1826 = vsub.f32 %v1824, %v1825
        %v1827 = vmul.f32 %v1808, %v1821
        %v1828 = vmul.f32 %v1811, %v1823
        %v1829 = vsub.f32 %v1827, %v1828
        %v1830 = vmul.f32 %v1811, %v1820
        %v1831 = vmul.f32 %v1808, %v1822
        %v1832 = vadd.f32 %v1830, %v1831
        %v1833 = vmul.f32 %v1811, %v1821
        %v1834 = vmul.f32 %v1808, %v1823
        %v1835 = vadd.f32 %v1833, %v1834
        %1836 = vst [vmem:[%s1813] sm:$0xff] %v1826
        %1837 = vst [vmem:[%s1815] sm:$0xff] %v1829
        %1838 = vst [vmem:[%s1817] sm:$0xff] %v1832
        %1839 = vst [vmem:[%s1819] sm:$0xff] %v1835
        %s1840 = smov [#allocation23]
        %s1841 = scalar_lea.vmem %s1840, 24
        %v1842 = vld [vmem:[%s1841] sm:$0xff]
        %s1843 = smov [#allocation24]
        %s1844 = scalar_lea.vmem %s1843, 24
        %v1845 = vld [vmem:[%s1844] sm:$0xff]
        %s1846 = smov [#allocation8]
        %s1847 = scalar_lea.vmem %s1846, 24
        %s1848 = smov [#allocation9]
        %s1849 = scalar_lea.vmem %s1848, 24
        %s1850 = smov [#allocation10]
        %s1851 = scalar_lea.vmem %s1850, 24
        %s1852 = smov [#allocation11]
        %s1853 = scalar_lea.vmem %s1852, 24
        %v1854 = vld [vmem:[%s1847] sm:$0xff]
        %v1855 = vld [vmem:[%s1849] sm:$0xff]
        %v1856 = vld [vmem:[%s1851] sm:$0xff]
        %v1857 = vld [vmem:[%s1853] sm:$0xff]
        %v1858 = vmul.f32 %v1842, %v1854
        %v1859 = vmul.f32 %v1845, %v1856
        %v1860 = vsub.f32 %v1858, %v1859
        %v1861 = vmul.f32 %v1842, %v1855
        %v1862 = vmul.f32 %v1845, %v1857
        %v1863 = vsub.f32 %v1861, %v1862
        %v1864 = vmul.f32 %v1845, %v1854
        %v1865 = vmul.f32 %v1842, %v1856
        %v1866 = vadd.f32 %v1864, %v1865
        %v1867 = vmul.f32 %v1845, %v1855
        %v1868 = vmul.f32 %v1842, %v1857
        %v1869 = vadd.f32 %v1867, %v1868
        %1870 = vst [vmem:[%s1847] sm:$0xff] %v1860
        %1871 = vst [vmem:[%s1849] sm:$0xff] %v1863
        %1872 = vst [vmem:[%s1851] sm:$0xff] %v1866
        %1873 = vst [vmem:[%s1853] sm:$0xff] %v1869
        %s1874 = smov [#allocation8]
        %s1875 = smov [#allocation10]
        %v1876 = vld [vmem:[%s1874] ss:$0 sm:$0xff]
        %s1878 = scalar_lea.vmem %s1874, 4294967295
        %v1879 = vld [vmem:[%s1878] sm:$0xfe]
        %v1880 = vlaneseq
        %v1881 = vshrl.u32 %v1880, 7
        %vm1882 = vcmp.eq.s32.totalorder %v1881, 0
        %v1883 = vsel %vm1882, %v1876, %v1879
        %s1884 = scalar_lea.vmem %s1874, 7
        %v1885 = vld [vmem:[%s1884] ss:$0 sm:$0xff]
        %1886 = vst [vmem:[%s1874] sm:$0xff] %v1883
        %s1887 = scalar_lea.vmem %s1874, 8
        %s1889 = scalar_lea.vmem %s1887, 4294967295
        %v1890 = vld [vmem:[%s1889] sm:$0xfe]
        %v1891 = vlaneseq
        %v1892 = vshrl.u32 %v1891, 7
        %vm1893 = vcmp.eq.s32.totalorder %v1892, 0
        %v1894 = vsel %vm1893, %v1885, %v1890
        %s1895 = scalar_lea.vmem %s1887, 7
        %v1896 = vld [vmem:[%s1895] ss:$0 sm:$0xff]
        %1897 = vst [vmem:[%s1887] sm:$0xff] %v1894
        %s1898 = scalar_lea.vmem %s1874, 16
        %s1900 = scalar_lea.vmem %s1898, 4294967295
        %v1901 = vld [vmem:[%s1900] sm:$0xfe]
        %v1902 = vlaneseq
        %v1903 = vshrl.u32 %v1902, 7
        %vm1904 = vcmp.eq.s32.totalorder %v1903, 0
        %v1905 = vsel %vm1904, %v1896, %v1901
        %s1906 = scalar_lea.vmem %s1898, 7
        %v1907 = vld [vmem:[%s1906] ss:$0 sm:$0xff]
        %1908 = vst [vmem:[%s1898] sm:$0xff] %v1905
        %s1909 = scalar_lea.vmem %s1874, 24
        %s1911 = scalar_lea.vmem %s1909, 4294967295
        %v1912 = vld [vmem:[%s1911] sm:$0xfe]
        %v1913 = vlaneseq
        %v1914 = vshrl.u32 %v1913, 7
        %vm1915 = vcmp.eq.s32.totalorder %v1914, 0
        %v1916 = vsel %vm1915, %v1907, %v1912
        %s1917 = scalar_lea.vmem %s1909, 7
        %v1918 = vld [vmem:[%s1917] ss:$0 sm:$0xff]
        %1919 = vst [vmem:[%s1909] sm:$0xff] %v1916
        %v1920 = vld [vmem:[%s1875] ss:$0 sm:$0xff]
        %s1921 = scalar_lea.vmem %s1874, 1
        %1922 = vst [vmem:[%s1921] sm:$0x1] %v1920
        %s1923 = scalar_lea.vmem %s1875, 24
        %s1924 = scalar_lea.vmem %s1923, 1
        %v1925 = vld [vmem:[%s1924] sm:$0x7f]
        %v1926 = vlaneseq
        %v1927 = vshrl.u32 %v1926, 7
        %vm1928 = vcmp.eq.s32.totalorder %v1927, 7
        %v1929 = vsel %vm1928, %v1918, %v1925
        %v1930 = vld [vmem:[%s1923] ss:$0 sm:$0xff]
        %1931 = vst [vmem:[%s1923] sm:$0xff] %v1929
        %s1932 = scalar_lea.vmem %s1875, 16
        %s1933 = scalar_lea.vmem %s1932, 1
        %v1934 = vld [vmem:[%s1933] sm:$0x7f]
        %v1935 = vlaneseq
        %v1936 = vshrl.u32 %v1935, 7
        %vm1937 = vcmp.eq.s32.totalorder %v1936, 7
        %v1938 = vsel %vm1937, %v1930, %v1934
        %v1939 = vld [vmem:[%s1932] ss:$0 sm:$0xff]
        %1940 = vst [vmem:[%s1932] sm:$0xff] %v1938
        %s1941 = scalar_lea.vmem %s1875, 8
        %s1942 = scalar_lea.vmem %s1941, 1
        %v1943 = vld [vmem:[%s1942] sm:$0x7f]
        %v1944 = vlaneseq
        %v1945 = vshrl.u32 %v1944, 7
        %vm1946 = vcmp.eq.s32.totalorder %v1945, 7
        %v1947 = vsel %vm1946, %v1939, %v1943
        %v1948 = vld [vmem:[%s1941] ss:$0 sm:$0xff]
        %1949 = vst [vmem:[%s1941] sm:$0xff] %v1947
        %s1950 = scalar_lea.vmem %s1875, 1
        %v1951 = vld [vmem:[%s1950] sm:$0x7f]
        %v1952 = vlaneseq
        %v1953 = vshrl.u32 %v1952, 7
        %vm1954 = vcmp.eq.s32.totalorder %v1953, 7
        %v1955 = vsel %vm1954, %v1948, %v1951
        %v1956 = vld [vmem:[%s1875] ss:$0 sm:$0xff]
        %1957 = vst [vmem:[%s1875] sm:$0xff] %v1955
        %s1958 = smov [#allocation9]
        %s1959 = smov [#allocation11]
        %v1960 = vld [vmem:[%s1958] ss:$0 sm:$0xff]
        %s1962 = scalar_lea.vmem %s1958, 4294967295
        %v1963 = vld [vmem:[%s1962] sm:$0xfe]
        %v1964 = vlaneseq
        %v1965 = vshrl.u32 %v1964, 7
        %vm1966 = vcmp.eq.s32.totalorder %v1965, 0
        %v1967 = vsel %vm1966, %v1960, %v1963
        %s1968 = scalar_lea.vmem %s1958, 7
        %v1969 = vld [vmem:[%s1968] ss:$0 sm:$0xff]
        %1970 = vst [vmem:[%s1958] sm:$0xff] %v1967
        %s1971 = scalar_lea.vmem %s1958, 8
        %s1973 = scalar_lea.vmem %s1971, 4294967295
        %v1974 = vld [vmem:[%s1973] sm:$0xfe]
        %v1975 = vlaneseq
        %v1976 = vshrl.u32 %v1975, 7
        %vm1977 = vcmp.eq.s32.totalorder %v1976, 0
        %v1978 = vsel %vm1977, %v1969, %v1974
        %s1979 = scalar_lea.vmem %s1971, 7
        %v1980 = vld [vmem:[%s1979] ss:$0 sm:$0xff]
        %1981 = vst [vmem:[%s1971] sm:$0xff] %v1978
        %s1982 = scalar_lea.vmem %s1958, 16
        %s1984 = scalar_lea.vmem %s1982, 4294967295
        %v1985 = vld [vmem:[%s1984] sm:$0xfe]
        %v1986 = vlaneseq
        %v1987 = vshrl.u32 %v1986, 7
        %vm1988 = vcmp.eq.s32.totalorder %v1987, 0
        %v1989 = vsel %vm1988, %v1980, %v1985
        %s1990 = scalar_lea.vmem %s1982, 7
        %v1991 = vld [vmem:[%s1990] ss:$0 sm:$0xff]
        %1992 = vst [vmem:[%s1982] sm:$0xff] %v1989
        %s1993 = scalar_lea.vmem %s1958, 24
        %s1995 = scalar_lea.vmem %s1993, 4294967295
        %v1996 = vld [vmem:[%s1995] sm:$0xfe]
        %v1997 = vlaneseq
        %v1998 = vshrl.u32 %v1997, 7
        %vm1999 = vcmp.eq.s32.totalorder %v1998, 0
        %v2000 = vsel %vm1999, %v1991, %v1996
        %s2001 = scalar_lea.vmem %s1993, 7
        %v2002 = vld [vmem:[%s2001] ss:$0 sm:$0xff]
        %2003 = vst [vmem:[%s1993] sm:$0xff] %v2000
        %v2004 = vld [vmem:[%s1959] ss:$0 sm:$0xff]
        %s2005 = scalar_lea.vmem %s1958, 1
        %2006 = vst [vmem:[%s2005] sm:$0x1] %v2004
        %s2007 = scalar_lea.vmem %s1959, 24
        %s2008 = scalar_lea.vmem %s2007, 1
        %v2009 = vld [vmem:[%s2008] sm:$0x7f]
        %v2010 = vlaneseq
        %v2011 = vshrl.u32 %v2010, 7
        %vm2012 = vcmp.eq.s32.totalorder %v2011, 7
        %v2013 = vsel %vm2012, %v2002, %v2009
        %v2014 = vld [vmem:[%s2007] ss:$0 sm:$0xff]
        %2015 = vst [vmem:[%s2007] sm:$0xff] %v2013
        %s2016 = scalar_lea.vmem %s1959, 16
        %s2017 = scalar_lea.vmem %s2016, 1
        %v2018 = vld [vmem:[%s2017] sm:$0x7f]
        %v2019 = vlaneseq
        %v2020 = vshrl.u32 %v2019, 7
        %vm2021 = vcmp.eq.s32.totalorder %v2020, 7
        %v2022 = vsel %vm2021, %v2014, %v2018
        %v2023 = vld [vmem:[%s2016] ss:$0 sm:$0xff]
        %2024 = vst [vmem:[%s2016] sm:$0xff] %v2022
        %s2025 = scalar_lea.vmem %s1959, 8
        %s2026 = scalar_lea.vmem %s2025, 1
        %v2027 = vld [vmem:[%s2026] sm:$0x7f]
        %v2028 = vlaneseq
        %v2029 = vshrl.u32 %v2028, 7
        %vm2030 = vcmp.eq.s32.totalorder %v2029, 7
        %v2031 = vsel %vm2030, %v2023, %v2027
        %v2032 = vld [vmem:[%s2025] ss:$0 sm:$0xff]
        %2033 = vst [vmem:[%s2025] sm:$0xff] %v2031
        %s2034 = scalar_lea.vmem %s1959, 1
        %v2035 = vld [vmem:[%s2034] sm:$0x7f]
        %v2036 = vlaneseq
        %v2037 = vshrl.u32 %v2036, 7
        %vm2038 = vcmp.eq.s32.totalorder %v2037, 7
        %v2039 = vsel %vm2038, %v2032, %v2035
        %v2040 = vld [vmem:[%s1959] ss:$0 sm:$0xff]
        %2041 = vst [vmem:[%s1959] sm:$0xff] %v2039
      $region101: #{custom-call.2} parent=93 // loop_footer
        %s590 = sadd.s32 1, %s586
      $region102: #{custom-call.2} parent=93 // loop_footer_branch
        %585 = sbr.rel target = $region98
      $region103: #{custom-call.2} parent=93 // loop_exit
        _
      %s2042 = sadd.s32 %s392, 1
    $region94: #{custom-call.2} parent=1 // loop_footer
      _
    $region95: #{custom-call.2} parent=1 // loop_footer_branch
      %391 = sbr.rel target = $region91
    $region96: #{custom-call.2} parent=1 // loop_exit
      _
    %s2045 = smov [#allocation12]
    %s2046 = smov [#allocation4]
    %v2047 = vlaneseq
    %v2048 = vand.u32 %v2047, 127
    %v2049 = vmov %v2048
    %v2050 = vlaneseq
    %v2051 = vshrl.u32 %v2050, 7
    %v2052 = vmov %v2051
    %v2053 = vld [vmem:[%s2045] sm:$0xff]
    %vm2056 = vcmp.eq.s32.totalorder %v2052, %v2049
    %v2057 = vsel %vm2056, %v2053, 0.0
    %s2058 = scalar_lea.vmem %s2045, 8
    %v2059 = vld [vmem:[%s2058] sm:$0xff]
    %v2061 = vadd.s32 %v2052, 8
    %vm2062 = vcmp.eq.s32.totalorder %v2061, %v2049
    %v2063 = vsel %vm2062, %v2059, %v2057
    %s2064 = scalar_lea.vmem %s2045, 16
    %v2065 = vld [vmem:[%s2064] sm:$0xff]
    %v2067 = vadd.s32 %v2052, 16
    %vm2068 = vcmp.eq.s32.totalorder %v2067, %v2049
    %v2069 = vsel %vm2068, %v2065, %v2063
    %s2070 = scalar_lea.vmem %s2045, 24
    %v2071 = vld [vmem:[%s2070] sm:$0xff]
    %v2073 = vadd.s32 %v2052, 24
    %vm2074 = vcmp.eq.s32.totalorder %v2073, %v2049
    %v2075 = vsel %vm2074, %v2071, %v2069
    %v2076 = vrot.slane %v2075, 4
    %v2077 = vadd.f32 %v2075, %v2076
    %v2078 = vrot.slane %v2077, 2
    %v2079 = vadd.f32 %v2077, %v2078
    %v2080 = vrot.slane %v2079, 1
    %v2081 = vadd.f32 %v2079, %v2080
    %2082 = vst [vmem:[%s2046] sm:$0x1] %v2081
    %s2083 = smov [#allocation15]
    %s2084 = smov [#allocation6]
    %v2085 = vlaneseq
    %v2086 = vand.u32 %v2085, 127
    %v2087 = vmov %v2086
    %v2088 = vlaneseq
    %v2089 = vshrl.u32 %v2088, 7
    %v2090 = vmov %v2089
    %v2091 = vld [vmem:[%s2083] sm:$0xff]
    %vm2094 = vcmp.eq.s32.totalorder %v2090, %v2087
    %v2095 = vsel %vm2094, %v2091, 0.0
    %s2096 = scalar_lea.vmem %s2083, 8
    %v2097 = vld [vmem:[%s2096] sm:$0xff]
    %v2099 = vadd.s32 %v2090, 8
    %vm2100 = vcmp.eq.s32.totalorder %v2099, %v2087
    %v2101 = vsel %vm2100, %v2097, %v2095
    %s2102 = scalar_lea.vmem %s2083, 16
    %v2103 = vld [vmem:[%s2102] sm:$0xff]
    %v2105 = vadd.s32 %v2090, 16
    %vm2106 = vcmp.eq.s32.totalorder %v2105, %v2087
    %v2107 = vsel %vm2106, %v2103, %v2101
    %s2108 = scalar_lea.vmem %s2083, 24
    %v2109 = vld [vmem:[%s2108] sm:$0xff]
    %v2111 = vadd.s32 %v2090, 24
    %vm2112 = vcmp.eq.s32.totalorder %v2111, %v2087
    %v2113 = vsel %vm2112, %v2109, %v2107
    %v2114 = vrot.slane %v2113, 4
    %v2115 = vadd.f32 %v2113, %v2114
    %v2116 = vrot.slane %v2115, 2
    %v2117 = vadd.f32 %v2115, %v2116
    %v2118 = vrot.slane %v2117, 1
    %v2119 = vadd.f32 %v2117, %v2118
    %2120 = vst [vmem:[%s2084] sm:$0x1] %v2119
    %s2122 = ssub.s32 2, 1
    %v2123 = vld [vmem:[#allocation4] sm:%s2122]
    %s2125 = ssub.s32 2, 1
    %2126 = vst [vmem:[#allocation5] sm:%s2125] %v2123
    %s2128 = ssub.s32 2, 1
    %v2129 = vld [vmem:[#allocation6] sm:%s2128]
    %s2131 = ssub.s32 2, 1
    %2132 = vst [vmem:[#allocation7] sm:%s2131] %v2129
    // Predicated region
    $region104: #{custom-call.2} parent=1 // pred_check
      _
    $region105: #{custom-call.2} parent=1 // pred_check_branch
      %2134 = sbr.rel (0) target = $region107
    $region106: #{custom-call.2} parent=1 // pred_region
      // Predicated region
      $region108: #{custom-call.2} parent=106 // pred_check
        _
      $region109: #{custom-call.2} parent=106 // pred_check_branch
        %2136 = sbr.rel (0) target = $region111
      $region110: #{custom-call.2} parent=106 // pred_region
        %p2138 = scmp.gt.s32.totalorder 0, 0
        // Predicated region
        $region112: #{custom-call.2} parent=110 // pred_check
          %p2139 = pneg %p2138
        $region113: #{custom-call.2} parent=110 // pred_check_branch
          %2141 = sbr.rel (%p2139) target = $region115
        $region114: #{custom-call.2} parent=110 // pred_region
          %s2142 = ssub.s32 0, 1
          %s2143 = smul.u32 %s2142, 8
          %s2144 = scalar_lea.vmem [#allocation5], %s2143
          %v2145 = vld [vmem:[#allocation5] sm:$0xff]
          // While loop
          $region116: #{custom-call.2} parent=114 // loop_pre_header
            _
          $region117: #{custom-call.2} parent=114 // loop_header
            %s2146 = sphi [#allocation5], %s2168
            %s2147 = sphi %s4, %s2169
            %v2148 = vphi %v2145, %v2170
            %s2149 = ssub.s32 %s2144, 64
            %p2150 = scmp.gt.s32.totalorder %s2146, %s2149
          $region118: #{custom-call.2} parent=114 // loop_header_branch
            %2152 = sbr.rel (%p2150) target = $region122
          $region119: #{custom-call.2} parent=114 // loop_body
            %2153 = vst [vmem:[%s2147] sm:$0xff] %v2148
            %v2154 = vld [vmem:[%s2146 + $0x8] sm:$0xff]
            %2155 = vst [vmem:[%s2147 + $0x8] sm:$0xff] %v2154
            %v2156 = vld [vmem:[%s2146 + $0x10] sm:$0xff]
            %2157 = vst [vmem:[%s2147 + $0x10] sm:$0xff] %v2156
            %v2158 = vld [vmem:[%s2146 + $0x18] sm:$0xff]
            %2159 = vst [vmem:[%s2147 + $0x18] sm:$0xff] %v2158
            %v2160 = vld [vmem:[%s2146 + $0x20] sm:$0xff]
            %2161 = vst [vmem:[%s2147 + $0x20] sm:$0xff] %v2160
            %v2162 = vld [vmem:[%s2146 + $0x28] sm:$0xff]
            %2163 = vst [vmem:[%s2147 + $0x28] sm:$0xff] %v2162
            %v2164 = vld [vmem:[%s2146 + $0x30] sm:$0xff]
            %2165 = vst [vmem:[%s2147 + $0x30] sm:$0xff] %v2164
            %v2166 = vld [vmem:[%s2146 + $0x38] sm:$0xff]
            %2167 = vst [vmem:[%s2147 + $0x38] sm:$0xff] %v2166
          $region120: #{custom-call.2} parent=114 // loop_footer
            %s2168 = scalar_lea.vmem %s2146, 64
            %s2169 = scalar_lea.vmem %s2147, 64
            %v2170 = vld [vmem:[%s2146 + $0x40] sm:$0xff]
          $region121: #{custom-call.2} parent=114 // loop_footer_branch
            %2171 = sbr.rel target = $region117
          $region122: #{custom-call.2} parent=114 // loop_exit
            _
          // While loop
          $region123: #{custom-call.2} parent=114 // loop_pre_header
            _
          $region124: #{custom-call.2} parent=114 // loop_header
            %s2172 = sphi %s2146, %s2180
            %s2173 = sphi %s2147, %s2181
            %v2174 = vphi %v2148, %v2174
            %p2175 = scmp.gt.s32.totalorder %s2172, %s2144
          $region125: #{custom-call.2} parent=114 // loop_header_branch
            %2177 = sbr.rel (%p2175) target = $region129
          $region126: #{custom-call.2} parent=114 // loop_body
            %v2178 = vld [vmem:[%s2172] sm:$0xff]
            %2179 = vst [vmem:[%s2173] sm:$0xff] %v2178
          $region127: #{custom-call.2} parent=114 // loop_footer
            %s2180 = scalar_lea.vmem %s2172, 8
            %s2181 = scalar_lea.vmem %s2173, 8
          $region128: #{custom-call.2} parent=114 // loop_footer_branch
            %2182 = sbr.rel target = $region124
          $region129: #{custom-call.2} parent=114 // loop_exit
            _
        $region115: #{custom-call.2} parent=110 // pred_fallthru
          _
        %s2184 = ssub.s32 2, 1
        %s2185 = smul.u32 0, 8
        %s2186 = scalar_lea.vmem %s4, %s2185
        %s2187 = smul.u32 0, 8
        %s2188 = scalar_lea.vmem [#allocation5], %s2187
        %v2189 = vld [vmem:[%s2188] sm:%s2184]
        %2190 = vst [vmem:[%s2186] sm:%s2184] %v2189
      $region111: #{custom-call.2} parent=106 // pred_fallthru
        _
    $region107: #{custom-call.2} parent=1 // pred_fallthru
      _
    // Predicated region
    $region130: #{custom-call.2} parent=1 // pred_check
      _
    $region131: #{custom-call.2} parent=1 // pred_check_branch
      %2192 = sbr.rel (0) target = $region133
    $region132: #{custom-call.2} parent=1 // pred_region
      // Predicated region
      $region134: #{custom-call.2} parent=132 // pred_check
        _
      $region135: #{custom-call.2} parent=132 // pred_check_branch
        %2194 = sbr.rel (0) target = $region137
      $region136: #{custom-call.2} parent=132 // pred_region
        %p2196 = scmp.gt.s32.totalorder 0, 0
        // Predicated region
        $region138: #{custom-call.2} parent=136 // pred_check
          %p2197 = pneg %p2196
        $region139: #{custom-call.2} parent=136 // pred_check_branch
          %2199 = sbr.rel (%p2197) target = $region141
        $region140: #{custom-call.2} parent=136 // pred_region
          %s2200 = ssub.s32 0, 1
          %s2201 = smul.u32 %s2200, 8
          %s2202 = scalar_lea.vmem [#allocation7], %s2201
          %v2203 = vld [vmem:[#allocation7] sm:$0xff]
          // While loop
          $region142: #{custom-call.2} parent=140 // loop_pre_header
            _
          $region143: #{custom-call.2} parent=140 // loop_header
            %s2204 = sphi [#allocation7], %s2226
            %s2205 = sphi %s5, %s2227
            %v2206 = vphi %v2203, %v2228
            %s2207 = ssub.s32 %s2202, 64
            %p2208 = scmp.gt.s32.totalorder %s2204, %s2207
          $region144: #{custom-call.2} parent=140 // loop_header_branch
            %2210 = sbr.rel (%p2208) target = $region148
          $region145: #{custom-call.2} parent=140 // loop_body
            %2211 = vst [vmem:[%s2205] sm:$0xff] %v2206
            %v2212 = vld [vmem:[%s2204 + $0x8] sm:$0xff]
            %2213 = vst [vmem:[%s2205 + $0x8] sm:$0xff] %v2212
            %v2214 = vld [vmem:[%s2204 + $0x10] sm:$0xff]
            %2215 = vst [vmem:[%s2205 + $0x10] sm:$0xff] %v2214
            %v2216 = vld [vmem:[%s2204 + $0x18] sm:$0xff]
            %2217 = vst [vmem:[%s2205 + $0x18] sm:$0xff] %v2216
            %v2218 = vld [vmem:[%s2204 + $0x20] sm:$0xff]
            %2219 = vst [vmem:[%s2205 + $0x20] sm:$0xff] %v2218
            %v2220 = vld [vmem:[%s2204 + $0x28] sm:$0xff]
            %2221 = vst [vmem:[%s2205 + $0x28] sm:$0xff] %v2220
            %v2222 = vld [vmem:[%s2204 + $0x30] sm:$0xff]
            %2223 = vst [vmem:[%s2205 + $0x30] sm:$0xff] %v2222
            %v2224 = vld [vmem:[%s2204 + $0x38] sm:$0xff]
            %2225 = vst [vmem:[%s2205 + $0x38] sm:$0xff] %v2224
          $region146: #{custom-call.2} parent=140 // loop_footer
            %s2226 = scalar_lea.vmem %s2204, 64
            %s2227 = scalar_lea.vmem %s2205, 64
            %v2228 = vld [vmem:[%s2204 + $0x40] sm:$0xff]
          $region147: #{custom-call.2} parent=140 // loop_footer_branch
            %2229 = sbr.rel target = $region143
          $region148: #{custom-call.2} parent=140 // loop_exit
            _
          // While loop
          $region149: #{custom-call.2} parent=140 // loop_pre_header
            _
          $region150: #{custom-call.2} parent=140 // loop_header
            %s2230 = sphi %s2204, %s2238
            %s2231 = sphi %s2205, %s2239
            %v2232 = vphi %v2206, %v2232
            %p2233 = scmp.gt.s32.totalorder %s2230, %s2202
          $region151: #{custom-call.2} parent=140 // loop_header_branch
            %2235 = sbr.rel (%p2233) target = $region155
          $region152: #{custom-call.2} parent=140 // loop_body
            %v2236 = vld [vmem:[%s2230] sm:$0xff]
            %2237 = vst [vmem:[%s2231] sm:$0xff] %v2236
          $region153: #{custom-call.2} parent=140 // loop_footer
            %s2238 = scalar_lea.vmem %s2230, 8
            %s2239 = scalar_lea.vmem %s2231, 8
          $region154: #{custom-call.2} parent=140 // loop_footer_branch
            %2240 = sbr.rel target = $region150
          $region155: #{custom-call.2} parent=140 // loop_exit
            _
        $region141: #{custom-call.2} parent=136 // pred_fallthru
          _
        %s2242 = ssub.s32 2, 1
        %s2243 = smul.u32 0, 8
        %s2244 = scalar_lea.vmem %s5, %s2243
        %s2245 = smul.u32 0, 8
        %s2246 = scalar_lea.vmem [#allocation7], %s2245
        %v2247 = vld [vmem:[%s2246] sm:%s2242]
        %2248 = vst [vmem:[%s2244] sm:%s2242] %v2247
      $region137: #{custom-call.2} parent=132 // pred_fallthru
        _
    $region133: #{custom-call.2} parent=1 // pred_fallthru
      _
    // Predicated region
    $region156: #{custom-call.2} parent=1 // pred_check
      _
    $region157: #{custom-call.2} parent=1 // pred_check_branch
      %2250 = sbr.rel (0) target = $region159
    $region158: #{custom-call.2} parent=1 // pred_region
      %p2252 = scmp.gt.s32.totalorder 4, 0
      // Predicated region
      $region160: #{custom-call.2} parent=158 // pred_check
        %p2253 = pneg %p2252
      $region161: #{custom-call.2} parent=158 // pred_check_branch
        %2255 = sbr.rel (%p2253) target = $region163
      $region162: #{custom-call.2} parent=158 // pred_region
        %s2256 = ssub.s32 4, 1
        %s2257 = smul.u32 %s2256, 8
        %s2258 = scalar_lea.vmem [#allocation8], %s2257
        %v2259 = vld [vmem:[#allocation8] sm:$0xff]
        // While loop
        $region164: #{custom-call.2} parent=162 // loop_pre_header
          _
        $region165: #{custom-call.2} parent=162 // loop_header
          %s2260 = sphi [#allocation8], %s2282
          %s2261 = sphi %s6, %s2283
          %v2262 = vphi %v2259, %v2284
          %s2263 = ssub.s32 %s2258, 64
          %p2264 = scmp.gt.s32.totalorder %s2260, %s2263
        $region166: #{custom-call.2} parent=162 // loop_header_branch
          %2266 = sbr.rel (%p2264) target = $region170
        $region167: #{custom-call.2} parent=162 // loop_body
          %2267 = vst [vmem:[%s2261] sm:$0xff] %v2262
          %v2268 = vld [vmem:[%s2260 + $0x8] sm:$0xff]
          %2269 = vst [vmem:[%s2261 + $0x8] sm:$0xff] %v2268
          %v2270 = vld [vmem:[%s2260 + $0x10] sm:$0xff]
          %2271 = vst [vmem:[%s2261 + $0x10] sm:$0xff] %v2270
          %v2272 = vld [vmem:[%s2260 + $0x18] sm:$0xff]
          %2273 = vst [vmem:[%s2261 + $0x18] sm:$0xff] %v2272
          %v2274 = vld [vmem:[%s2260 + $0x20] sm:$0xff]
          %2275 = vst [vmem:[%s2261 + $0x20] sm:$0xff] %v2274
          %v2276 = vld [vmem:[%s2260 + $0x28] sm:$0xff]
          %2277 = vst [vmem:[%s2261 + $0x28] sm:$0xff] %v2276
          %v2278 = vld [vmem:[%s2260 + $0x30] sm:$0xff]
          %2279 = vst [vmem:[%s2261 + $0x30] sm:$0xff] %v2278
          %v2280 = vld [vmem:[%s2260 + $0x38] sm:$0xff]
          %2281 = vst [vmem:[%s2261 + $0x38] sm:$0xff] %v2280
        $region168: #{custom-call.2} parent=162 // loop_footer
          %s2282 = scalar_lea.vmem %s2260, 64
          %s2283 = scalar_lea.vmem %s2261, 64
          %v2284 = vld [vmem:[%s2260 + $0x40] sm:$0xff]
        $region169: #{custom-call.2} parent=162 // loop_footer_branch
          %2285 = sbr.rel target = $region165
        $region170: #{custom-call.2} parent=162 // loop_exit
          _
        // While loop
        $region171: #{custom-call.2} parent=162 // loop_pre_header
          _
        $region172: #{custom-call.2} parent=162 // loop_header
          %s2286 = sphi %s2260, %s2294
          %s2287 = sphi %s2261, %s2295
          %v2288 = vphi %v2262, %v2288
          %p2289 = scmp.gt.s32.totalorder %s2286, %s2258
        $region173: #{custom-call.2} parent=162 // loop_header_branch
          %2291 = sbr.rel (%p2289) target = $region177
        $region174: #{custom-call.2} parent=162 // loop_body
          %v2292 = vld [vmem:[%s2286] sm:$0xff]
          %2293 = vst [vmem:[%s2287] sm:$0xff] %v2292
        $region175: #{custom-call.2} parent=162 // loop_footer
          %s2294 = scalar_lea.vmem %s2286, 8
          %s2295 = scalar_lea.vmem %s2287, 8
        $region176: #{custom-call.2} parent=162 // loop_footer_branch
          %2296 = sbr.rel target = $region172
        $region177: #{custom-call.2} parent=162 // loop_exit
          _
      $region163: #{custom-call.2} parent=158 // pred_fallthru
        _
      %s2298 = ssub.s32 1, 1
      %s2299 = smul.u32 4, 8
      %s2300 = scalar_lea.vmem %s6, %s2299
      %s2301 = smul.u32 4, 8
      %s2302 = scalar_lea.vmem [#allocation8], %s2301
      %v2303 = vld [vmem:[%s2302] sm:%s2298]
      %2304 = vst [vmem:[%s2300] sm:%s2298] %v2303
    $region159: #{custom-call.2} parent=1 // pred_fallthru
      _
    // Predicated region
    $region178: #{custom-call.2} parent=1 // pred_check
      _
    $region179: #{custom-call.2} parent=1 // pred_check_branch
      %2306 = sbr.rel (0) target = $region181
    $region180: #{custom-call.2} parent=1 // pred_region
      %p2308 = scmp.gt.s32.totalorder 4, 0
      // Predicated region
      $region182: #{custom-call.2} parent=180 // pred_check
        %p2309 = pneg %p2308
      $region183: #{custom-call.2} parent=180 // pred_check_branch
        %2311 = sbr.rel (%p2309) target = $region185
      $region184: #{custom-call.2} parent=180 // pred_region
        %s2312 = ssub.s32 4, 1
        %s2313 = smul.u32 %s2312, 8
        %s2314 = scalar_lea.vmem [#allocation9], %s2313
        %v2315 = vld [vmem:[#allocation9] sm:$0xff]
        // While loop
        $region186: #{custom-call.2} parent=184 // loop_pre_header
          _
        $region187: #{custom-call.2} parent=184 // loop_header
          %s2316 = sphi [#allocation9], %s2338
          %s2317 = sphi %s7, %s2339
          %v2318 = vphi %v2315, %v2340
          %s2319 = ssub.s32 %s2314, 64
          %p2320 = scmp.gt.s32.totalorder %s2316, %s2319
        $region188: #{custom-call.2} parent=184 // loop_header_branch
          %2322 = sbr.rel (%p2320) target = $region192
        $region189: #{custom-call.2} parent=184 // loop_body
          %2323 = vst [vmem:[%s2317] sm:$0xff] %v2318
          %v2324 = vld [vmem:[%s2316 + $0x8] sm:$0xff]
          %2325 = vst [vmem:[%s2317 + $0x8] sm:$0xff] %v2324
          %v2326 = vld [vmem:[%s2316 + $0x10] sm:$0xff]
          %2327 = vst [vmem:[%s2317 + $0x10] sm:$0xff] %v2326
          %v2328 = vld [vmem:[%s2316 + $0x18] sm:$0xff]
          %2329 = vst [vmem:[%s2317 + $0x18] sm:$0xff] %v2328
          %v2330 = vld [vmem:[%s2316 + $0x20] sm:$0xff]
          %2331 = vst [vmem:[%s2317 + $0x20] sm:$0xff] %v2330
          %v2332 = vld [vmem:[%s2316 + $0x28] sm:$0xff]
          %2333 = vst [vmem:[%s2317 + $0x28] sm:$0xff] %v2332
          %v2334 = vld [vmem:[%s2316 + $0x30] sm:$0xff]
          %2335 = vst [vmem:[%s2317 + $0x30] sm:$0xff] %v2334
          %v2336 = vld [vmem:[%s2316 + $0x38] sm:$0xff]
          %2337 = vst [vmem:[%s2317 + $0x38] sm:$0xff] %v2336
        $region190: #{custom-call.2} parent=184 // loop_footer
          %s2338 = scalar_lea.vmem %s2316, 64
          %s2339 = scalar_lea.vmem %s2317, 64
          %v2340 = vld [vmem:[%s2316 + $0x40] sm:$0xff]
        $region191: #{custom-call.2} parent=184 // loop_footer_branch
          %2341 = sbr.rel target = $region187
        $region192: #{custom-call.2} parent=184 // loop_exit
          _
        // While loop
        $region193: #{custom-call.2} parent=184 // loop_pre_header
          _
        $region194: #{custom-call.2} parent=184 // loop_header
          %s2342 = sphi %s2316, %s2350
          %s2343 = sphi %s2317, %s2351
          %v2344 = vphi %v2318, %v2344
          %p2345 = scmp.gt.s32.totalorder %s2342, %s2314
        $region195: #{custom-call.2} parent=184 // loop_header_branch
          %2347 = sbr.rel (%p2345) target = $region199
        $region196: #{custom-call.2} parent=184 // loop_body
          %v2348 = vld [vmem:[%s2342] sm:$0xff]
          %2349 = vst [vmem:[%s2343] sm:$0xff] %v2348
        $region197: #{custom-call.2} parent=184 // loop_footer
          %s2350 = scalar_lea.vmem %s2342, 8
          %s2351 = scalar_lea.vmem %s2343, 8
        $region198: #{custom-call.2} parent=184 // loop_footer_branch
          %2352 = sbr.rel target = $region194
        $region199: #{custom-call.2} parent=184 // loop_exit
          _
      $region185: #{custom-call.2} parent=180 // pred_fallthru
        _
      %s2354 = ssub.s32 1, 1
      %s2355 = smul.u32 4, 8
      %s2356 = scalar_lea.vmem %s7, %s2355
      %s2357 = smul.u32 4, 8
      %s2358 = scalar_lea.vmem [#allocation9], %s2357
      %v2359 = vld [vmem:[%s2358] sm:%s2354]
      %2360 = vst [vmem:[%s2356] sm:%s2354] %v2359
    $region181: #{custom-call.2} parent=1 // pred_fallthru
      _
    // Predicated region
    $region200: #{custom-call.2} parent=1 // pred_check
      _
    $region201: #{custom-call.2} parent=1 // pred_check_branch
      %2362 = sbr.rel (0) target = $region203
    $region202: #{custom-call.2} parent=1 // pred_region
      %p2364 = scmp.gt.s32.totalorder 4, 0
      // Predicated region
      $region204: #{custom-call.2} parent=202 // pred_check
        %p2365 = pneg %p2364
      $region205: #{custom-call.2} parent=202 // pred_check_branch
        %2367 = sbr.rel (%p2365) target = $region207
      $region206: #{custom-call.2} parent=202 // pred_region
        %s2368 = ssub.s32 4, 1
        %s2369 = smul.u32 %s2368, 8
        %s2370 = scalar_lea.vmem [#allocation10], %s2369
        %v2371 = vld [vmem:[#allocation10] sm:$0xff]
        // While loop
        $region208: #{custom-call.2} parent=206 // loop_pre_header
          _
        $region209: #{custom-call.2} parent=206 // loop_header
          %s2372 = sphi [#allocation10], %s2394
          %s2373 = sphi %s8, %s2395
          %v2374 = vphi %v2371, %v2396
          %s2375 = ssub.s32 %s2370, 64
          %p2376 = scmp.gt.s32.totalorder %s2372, %s2375
        $region210: #{custom-call.2} parent=206 // loop_header_branch
          %2378 = sbr.rel (%p2376) target = $region214
        $region211: #{custom-call.2} parent=206 // loop_body
          %2379 = vst [vmem:[%s2373] sm:$0xff] %v2374
          %v2380 = vld [vmem:[%s2372 + $0x8] sm:$0xff]
          %2381 = vst [vmem:[%s2373 + $0x8] sm:$0xff] %v2380
          %v2382 = vld [vmem:[%s2372 + $0x10] sm:$0xff]
          %2383 = vst [vmem:[%s2373 + $0x10] sm:$0xff] %v2382
          %v2384 = vld [vmem:[%s2372 + $0x18] sm:$0xff]
          %2385 = vst [vmem:[%s2373 + $0x18] sm:$0xff] %v2384
          %v2386 = vld [vmem:[%s2372 + $0x20] sm:$0xff]
          %2387 = vst [vmem:[%s2373 + $0x20] sm:$0xff] %v2386
          %v2388 = vld [vmem:[%s2372 + $0x28] sm:$0xff]
          %2389 = vst [vmem:[%s2373 + $0x28] sm:$0xff] %v2388
          %v2390 = vld [vmem:[%s2372 + $0x30] sm:$0xff]
          %2391 = vst [vmem:[%s2373 + $0x30] sm:$0xff] %v2390
          %v2392 = vld [vmem:[%s2372 + $0x38] sm:$0xff]
          %2393 = vst [vmem:[%s2373 + $0x38] sm:$0xff] %v2392
        $region212: #{custom-call.2} parent=206 // loop_footer
          %s2394 = scalar_lea.vmem %s2372, 64
          %s2395 = scalar_lea.vmem %s2373, 64
          %v2396 = vld [vmem:[%s2372 + $0x40] sm:$0xff]
        $region213: #{custom-call.2} parent=206 // loop_footer_branch
          %2397 = sbr.rel target = $region209
        $region214: #{custom-call.2} parent=206 // loop_exit
          _
        // While loop
        $region215: #{custom-call.2} parent=206 // loop_pre_header
          _
        $region216: #{custom-call.2} parent=206 // loop_header
          %s2398 = sphi %s2372, %s2406
          %s2399 = sphi %s2373, %s2407
          %v2400 = vphi %v2374, %v2400
          %p2401 = scmp.gt.s32.totalorder %s2398, %s2370
        $region217: #{custom-call.2} parent=206 // loop_header_branch
          %2403 = sbr.rel (%p2401) target = $region221
        $region218: #{custom-call.2} parent=206 // loop_body
          %v2404 = vld [vmem:[%s2398] sm:$0xff]
          %2405 = vst [vmem:[%s2399] sm:$0xff] %v2404
        $region219: #{custom-call.2} parent=206 // loop_footer
          %s2406 = scalar_lea.vmem %s2398, 8
          %s2407 = scalar_lea.vmem %s2399, 8
        $region220: #{custom-call.2} parent=206 // loop_footer_branch
          %2408 = sbr.rel target = $region216
        $region221: #{custom-call.2} parent=206 // loop_exit
          _
      $region207: #{custom-call.2} parent=202 // pred_fallthru
        _
      %s2410 = ssub.s32 1, 1
      %s2411 = smul.u32 4, 8
      %s2412 = scalar_lea.vmem %s8, %s2411
      %s2413 = smul.u32 4, 8
      %s2414 = scalar_lea.vmem [#allocation10], %s2413
      %v2415 = vld [vmem:[%s2414] sm:%s2410]
      %2416 = vst [vmem:[%s2412] sm:%s2410] %v2415
    $region203: #{custom-call.2} parent=1 // pred_fallthru
      _
    // Predicated region
    $region222: #{custom-call.2} parent=1 // pred_check
      _
    $region223: #{custom-call.2} parent=1 // pred_check_branch
      %2418 = sbr.rel (0) target = $region225
    $region224: #{custom-call.2} parent=1 // pred_region
      %p2420 = scmp.gt.s32.totalorder 4, 0
      // Predicated region
      $region226: #{custom-call.2} parent=224 // pred_check
        %p2421 = pneg %p2420
      $region227: #{custom-call.2} parent=224 // pred_check_branch
        %2423 = sbr.rel (%p2421) target = $region229
      $region228: #{custom-call.2} parent=224 // pred_region
        %s2424 = ssub.s32 4, 1
        %s2425 = smul.u32 %s2424, 8
        %s2426 = scalar_lea.vmem [#allocation11], %s2425
        %v2427 = vld [vmem:[#allocation11] sm:$0xff]
        // While loop
        $region230: #{custom-call.2} parent=228 // loop_pre_header
          _
        $region231: #{custom-call.2} parent=228 // loop_header
          %s2428 = sphi [#allocation11], %s2450
          %s2429 = sphi %s9, %s2451
          %v2430 = vphi %v2427, %v2452
          %s2431 = ssub.s32 %s2426, 64
          %p2432 = scmp.gt.s32.totalorder %s2428, %s2431
        $region232: #{custom-call.2} parent=228 // loop_header_branch
          %2434 = sbr.rel (%p2432) target = $region236
        $region233: #{custom-call.2} parent=228 // loop_body
          %2435 = vst [vmem:[%s2429] sm:$0xff] %v2430
          %v2436 = vld [vmem:[%s2428 + $0x8] sm:$0xff]
          %2437 = vst [vmem:[%s2429 + $0x8] sm:$0xff] %v2436
          %v2438 = vld [vmem:[%s2428 + $0x10] sm:$0xff]
          %2439 = vst [vmem:[%s2429 + $0x10] sm:$0xff] %v2438
          %v2440 = vld [vmem:[%s2428 + $0x18] sm:$0xff]
          %2441 = vst [vmem:[%s2429 + $0x18] sm:$0xff] %v2440
          %v2442 = vld [vmem:[%s2428 + $0x20] sm:$0xff]
          %2443 = vst [vmem:[%s2429 + $0x20] sm:$0xff] %v2442
          %v2444 = vld [vmem:[%s2428 + $0x28] sm:$0xff]
          %2445 = vst [vmem:[%s2429 + $0x28] sm:$0xff] %v2444
          %v2446 = vld [vmem:[%s2428 + $0x30] sm:$0xff]
          %2447 = vst [vmem:[%s2429 + $0x30] sm:$0xff] %v2446
          %v2448 = vld [vmem:[%s2428 + $0x38] sm:$0xff]
          %2449 = vst [vmem:[%s2429 + $0x38] sm:$0xff] %v2448
        $region234: #{custom-call.2} parent=228 // loop_footer
          %s2450 = scalar_lea.vmem %s2428, 64
          %s2451 = scalar_lea.vmem %s2429, 64
          %v2452 = vld [vmem:[%s2428 + $0x40] sm:$0xff]
        $region235: #{custom-call.2} parent=228 // loop_footer_branch
          %2453 = sbr.rel target = $region231
        $region236: #{custom-call.2} parent=228 // loop_exit
          _
        // While loop
        $region237: #{custom-call.2} parent=228 // loop_pre_header
          _
        $region238: #{custom-call.2} parent=228 // loop_header
          %s2454 = sphi %s2428, %s2462
          %s2455 = sphi %s2429, %s2463
          %v2456 = vphi %v2430, %v2456
          %p2457 = scmp.gt.s32.totalorder %s2454, %s2426
        $region239: #{custom-call.2} parent=228 // loop_header_branch
          %2459 = sbr.rel (%p2457) target = $region243
        $region240: #{custom-call.2} parent=228 // loop_body
          %v2460 = vld [vmem:[%s2454] sm:$0xff]
          %2461 = vst [vmem:[%s2455] sm:$0xff] %v2460
        $region241: #{custom-call.2} parent=228 // loop_footer
          %s2462 = scalar_lea.vmem %s2454, 8
          %s2463 = scalar_lea.vmem %s2455, 8
        $region242: #{custom-call.2} parent=228 // loop_footer_branch
          %2464 = sbr.rel target = $region238
        $region243: #{custom-call.2} parent=228 // loop_exit
          _
      $region229: #{custom-call.2} parent=224 // pred_fallthru
        _
      %s2466 = ssub.s32 1, 1
      %s2467 = smul.u32 4, 8
      %s2468 = scalar_lea.vmem %s9, %s2467
      %s2469 = smul.u32 4, 8
      %s2470 = scalar_lea.vmem [#allocation11], %s2469
      %v2471 = vld [vmem:[%s2470] sm:%s2466]
      %2472 = vst [vmem:[%s2468] sm:%s2466] %v2471
    $region225: #{custom-call.2} parent=1 // pred_fallthru
      _
    // Predicated region
    $region244: #{custom-call.2} parent=1 // pred_check
      _
    $region245: #{custom-call.2} parent=1 // pred_check_branch
      %2474 = sbr.rel (0) target = $region247
    $region246: #{custom-call.2} parent=1 // pred_region
      _
    $region247: #{custom-call.2} parent=1 // pred_fallthru
      _
    // Predicated region
    $region248: #{custom-call.2} parent=1 // pred_check
      _
    $region249: #{custom-call.2} parent=1 // pred_check_branch
      %2476 = sbr.rel (0) target = $region251
    $region250: #{custom-call.2} parent=1 // pred_region
      _
    $region251: #{custom-call.2} parent=1 // pred_fallthru
      _

// kernel: ema_patch_pca_noise_forward.2
$region0: #{ema_patch_pca_noise_forward.2}
  #allocation0 [shape = 'u32[]', space=smem, size = 0x4, offset = 0x4, fixed_abs, tag = 'smem constant byte address 0x4 - core index']
  #allocation1 [shape = 'u32[72,128]{1,0:T(1,128)}', space=vmem, size = 0x9000, scoped, tag = 'internal scratch']
  %s0 = inlined_call_operand.vmem [shape: f32[32,64], index: 0, kind: input, shape index: {}]
  %s1 = inlined_call_operand.vmem [shape: f32[1,64], index: 1, kind: input, shape index: {}]
  %s2 = inlined_call_operand.vmem [shape: f32[1,1,64], index: 2, kind: output, shape index: {0}]
  %s3 = inlined_call_operand.vmem [shape: f32[1,64,64], index: 3, kind: output, shape index: {1}]
  %4 = xla_tuple %s2, %s3
  %s5 = sld [smem:[#allocation0]]
  $region30: #{ema_patch_pca_noise_forward.2} parent=0
    _
  %s7 = ssub.s32 1, %s5
  %s8 = scalar_select 0, %s7, %s5
  // Predicated region
  $region2: #{ema_patch_pca_noise_forward.2} parent=0 // pred_check
    _
  $region3: #{ema_patch_pca_noise_forward.2} parent=0 // pred_check_branch
    %10 = sbr.rel (0) target = $region5
  $region4: #{ema_patch_pca_noise_forward.2} parent=0 // pred_region
    %s11 = sadd.s32 0, 0
    %p12 = scmp.lt.s32.totalorder %s11, 0
    %s13 = scalar_select %p12, %s11, 0
    %s14 = smul.u32 4, %s13
    %p15 = scmp.lt.s32.totalorder %s14, 3
    %s16 = scalar_select %p15, %s14, 3
    %s17 = smul.addr %s16, 8
    %s18 = scalar_lea.vmem %s0, %s17
    %s19 = sadd.s32 0, 0
    %p20 = scmp.lt.s32.totalorder %s19, 0
    %s21 = scalar_select %p20, %s19, 0
    %s22 = smul.u32 4, %s21
  $region5: #{ema_patch_pca_noise_forward.2} parent=0 // pred_fallthru
    _
  // Predicated region
  $region6: #{ema_patch_pca_noise_forward.2} parent=0 // pred_check
    _
  $region7: #{ema_patch_pca_noise_forward.2} parent=0 // pred_check_branch
    %24 = sbr.rel (0) target = $region9
  $region8: #{ema_patch_pca_noise_forward.2} parent=0 // pred_region
    _
  $region9: #{ema_patch_pca_noise_forward.2} parent=0 // pred_fallthru
    _
  %s25 = sadd.s32 0, 0
  %p26 = scmp.lt.s32.totalorder %s25, 0
  %s27 = scalar_select %p26, %s25, 0
  %s28 = smul.u32 4, %s27
  %p29 = scmp.lt.s32.totalorder %s28, 3
  %s30 = scalar_select %p29, %s28, 3
  %s31 = smul.addr %s30, 8
  %s32 = scalar_lea.vmem %s0, %s31
  %s33 = sadd.s32 0, 0
  %p34 = scmp.lt.s32.totalorder %s33, 0
  %s35 = scalar_select %p34, %s33, 0
  %s36 = smul.u32 4, %s35
  %p37 = scmp.lt.s32.totalorder %s36, 3
  %s38 = scalar_select %p37, %s36, 3
  %s39 = smul.addr %s38, 8
  %s40 = scalar_lea.vmem %s0, %s39
  %s41 = sadd.s32 0, 0
  %p42 = scmp.lt.s32.totalorder %s41, 0
  %s43 = scalar_select %p42, %s41, 0
  %s44 = smul.u32 4, %s43
  %p45 = scmp.eq.s32.totalorder 0, 0
  // Predicated region
  $region10: #{ema_patch_pca_noise_forward.2} parent=0 // pred_check
    %p46 = pneg %p45
  $region11: #{ema_patch_pca_noise_forward.2} parent=0 // pred_check_branch
    %48 = sbr.rel (%p46) target = $region13
  $region12: #{ema_patch_pca_noise_forward.2} parent=0 // pred_region
    %vm49 = vcmask 516096
    %50 = vst.msk [vmem:[%s2] sm:$0x1] %vm49, 0.0
    %vm51 = vcmask 523264
    %52 = vst.msk [vmem:[%s3] sm:$0xff] %vm51, 0.0
    %53 = vst.msk [vmem:[%s3 + $0x8] sm:$0xff] %vm51, 0.0
    %54 = vst.msk [vmem:[%s3 + $0x10] sm:$0xff] %vm51, 0.0
    %55 = vst.msk [vmem:[%s3 + $0x18] sm:$0xff] %vm51, 0.0
    %56 = vst.msk [vmem:[%s3 + $0x20] sm:$0xff] %vm51, 0.0
    %57 = vst.msk [vmem:[%s3 + $0x28] sm:$0xff] %vm51, 0.0
    %58 = vst.msk [vmem:[%s3 + $0x30] sm:$0xff] %vm51, 0.0
    %59 = vst.msk [vmem:[%s3 + $0x38] sm:$0xff] %vm51, 0.0
  $region13: #{ema_patch_pca_noise_forward.2} parent=0 // pred_fallthru
    _
  %s60 = sadd.s32 0, 0
  %s61 = smul.u32 %s60, 32
  %v62 = vlaneseq
  %v63 = vshrl.u32 %v62, 7
  %v64 = vadd.s32 %v63, 8
  %v65 = vadd.s32 %v63, 16
  %v66 = vadd.s32 %v63, 24
  %v67 = vstv %s61
  %v68 = vadd.s32 %v63, %v67
  %v69 = vadd.s32 %v64, %v67
  %v70 = vadd.s32 %v65, %v67
  %v71 = vadd.s32 %v66, %v67
  %vm72 = vcmp.lt.s32.totalorder %v68, 32
  %vm73 = vcmp.lt.s32.totalorder %v69, 32
  %vm74 = vcmp.lt.s32.totalorder %v70, 32
  %vm75 = vcmp.lt.s32.totalorder %v71, 32
  %v76 = vld [vmem:[%s40] sm:$0xff]
  %v77 = vld [vmem:[%s40 + $0x8] sm:$0xff]
  %v78 = vld [vmem:[%s40 + $0x10] sm:$0xff]
  %v79 = vld [vmem:[%s40 + $0x18] sm:$0xff]
  %v80 = vld [vmem:[%s1] sm:$0x1]
  %v82 = vperm.slane %v80, 0
  %v84 = vsub.f32 %v76, %v82
  %v85 = vsub.f32 %v77, %v82
  %v86 = vsub.f32 %v78, %v82
  %v87 = vsub.f32 %v79, %v82
  %v88 = vsel %vm72, 1, 0
  %v89 = vsel %vm73, 1, 0
  %v90 = vsel %vm74, 1, 0
  %v91 = vsel %vm75, 1, 0
  %vm92 = vcmp.eq.s32.totalorder %v88, 1
  %vm93 = vcmp.eq.s32.totalorder %v89, 1
  %vm94 = vcmp.eq.s32.totalorder %v90, 1
  %vm95 = vcmp.eq.s32.totalorder %v91, 1
  %v96 = vsel %vm92, %v84, 0.0
  %v97 = vsel %vm93, %v85, 0.0
  %v98 = vsel %vm94, %v86, 0.0
  %v99 = vsel %vm95, %v87, 0.0
  %v100 = vld [vmem:[%s2] sm:$0x1]
  %vm101 = vcmask 523264
  %v102 = vsel %vm101, %v96, 0.0
  %v103 = vsel %vm101, %v97, 0.0
  %v104 = vadd.f32 %v102, %v103
  %v105 = vsel %vm101, %v98, 0.0
  %v106 = vadd.f32 %v104, %v105
  %v107 = vsel %vm101, %v99, 0.0
  %v108 = vadd.f32 %v106, %v107
  %v109 = vrot.slane %v108, 4
  %v110 = vadd.f32 %v108, %v109
  %v111 = vrot.slane %v110, 2
  %v112 = vadd.f32 %v110, %v111
  %v113 = vrot.slane %v112, 1
  %v114 = vadd.f32 %v112, %v113
  %v115 = vadd.f32 %v100, %v114
  %vm116 = vcmask 516096
  %117 = vst.msk [vmem:[%s2] sm:$0x1] %vm116, %v115
  %v118 = vld [vmem:[%s3] sm:$0xff]
  %v119 = vld [vmem:[%s3 + $0x8] sm:$0xff]
  %v120 = vld [vmem:[%s3 + $0x10] sm:$0xff]
  %v121 = vld [vmem:[%s3 + $0x18] sm:$0xff]
  %v122 = vld [vmem:[%s3 + $0x20] sm:$0xff]
  %v123 = vld [vmem:[%s3 + $0x28] sm:$0xff]
  %v124 = vld [vmem:[%s3 + $0x30] sm:$0xff]
  %v125 = vld [vmem:[%s3 + $0x38] sm:$0xff]
  %126 = vxpose.xlu0.b32.start [1/16] %v96, 128
  %127 = vxpose.xlu0.b32.cont [2/16] %v97, 128
  %128 = vxpose.xlu0.b32.cont [3/16] %v98, 128
  %129 = vxpose.xlu0.b32.cont [4/16] %v99, 128
  %130 = vxpose.xlu0.b32.cont [5/16] 0.0, 128
  %131 = vxpose.xlu0.b32.cont [6/16] 0.0, 128
  %132 = vxpose.xlu0.b32.cont [7/16] 0.0, 128
  %133 = vxpose.xlu0.b32.cont [8/16] 0.0, 128
  %134 = vxpose.xlu0.b32.cont [9/16] 0.0, 128
  %135 = vxpose.xlu0.b32.cont [10/16] 0.0, 128
  %136 = vxpose.xlu0.b32.cont [11/16] 0.0, 128
  %137 = vxpose.xlu0.b32.cont [12/16] 0.0, 128
  %138 = vxpose.xlu0.b32.cont [13/16] 0.0, 128
  %139 = vxpose.xlu0.b32.cont [14/16] 0.0, 128
  %140 = vxpose.xlu0.b32.cont [15/16] 0.0, 128
  %141 = vxpose.xlu0.b32.end [16/16] 0.0, 128
  %v142 = vpop.trf.xlu0
  %v143 = vpop.trf.xlu0
  %v144 = vpop.trf.xlu0
  %v145 = vpop.trf.xlu0
  %v146 = vpop.trf.xlu0
  %v147 = vpop.trf.xlu0
  %v148 = vpop.trf.xlu0
  %v149 = vpop.trf.xlu0
  %v150 = vpop.trf.xlu0
  %v151 = vpop.trf.xlu0
  %v152 = vpop.trf.xlu0
  %v153 = vpop.trf.xlu0
  %v154 = vpop.trf.xlu0
  %v155 = vpop.trf.xlu0
  %v156 = vpop.trf.xlu0
  %v157 = vpop.trf.xlu0
  %vm158 = vcmask 261120
  %v160 = vsel %vm158, %v142, 0
  %v163 = vsel %vm158, %v143, 0
  %v166 = vsel %vm158, %v144, 0
  %v169 = vsel %vm158, %v145, 0
  %v172 = vsel %vm158, %v146, 0
  %v175 = vsel %vm158, %v147, 0
  %v178 = vsel %vm158, %v148, 0
  %v181 = vsel %vm158, %v149, 0
  %183 = vmatpush.msra.mxu0 0.0
  %184 = vmatpush.msra.mxu0 0.0
  %185 = vmatpush.msra.mxu0 0.0
  %186 = vmatpush.msra.mxu0 0.0
  %187 = vmatpush.msra.mxu0 0.0
  %188 = vmatpush.msra.mxu0 0.0
  %189 = vmatpush.msra.mxu0 0.0
  %190 = vmatpush.msra.mxu0 0.0
  %191 = vmatpush.msra.mxu0 0.0
  %192 = vmatpush.msra.mxu0 0.0
  %193 = vmatpush.msra.mxu0 0.0
  %194 = vmatpush.msra.mxu0 0.0
  %195 = vmatpush.msra.mxu0 %v99
  %196 = vmatpush.msra.mxu0 %v98
  %197 = vmatpush.msra.mxu0 %v97
  %198 = vmatpush.msra.mxu0 %v96
  %199 = vmatmul.f32.gmra.mxu0 %v160
  %v200 = vpop.f32.mrf.mxu0
  %v201 = vadd.f32 0.0, %v200
  %202 = vmatmul.f32.gmra.mxu0 %v163
  %v203 = vpop.f32.mrf.mxu0
  %v204 = vadd.f32 0.0, %v203
  %205 = vmatmul.f32.gmra.mxu0 %v166
  %v206 = vpop.f32.mrf.mxu0
  %v207 = vadd.f32 0.0, %v206
  %208 = vmatmul.f32.gmra.mxu0 %v169
  %v209 = vpop.f32.mrf.mxu0
  %v210 = vadd.f32 0.0, %v209
  %211 = vmatmul.f32.gmra.mxu0 %v172
  %v212 = vpop.f32.mrf.mxu0
  %v213 = vadd.f32 0.0, %v212
  %214 = vmatmul.f32.gmra.mxu0 %v175
  %v215 = vpop.f32.mrf.mxu0
  %v216 = vadd.f32 0.0, %v215
  %217 = vmatmul.f32.gmra.mxu0 %v178
  %v218 = vpop.f32.mrf.mxu0
  %v219 = vadd.f32 0.0, %v218
  %220 = vmatmul.f32.gmra.mxu0 %v181
  %v221 = vpop.f32.mrf.mxu0
  %v222 = vadd.f32 0.0, %v221
  %223 = vdwg.mxu0
  %v224 = vadd.f32 %v118, %v201
  %v225 = vadd.f32 %v119, %v204
  %v226 = vadd.f32 %v120, %v207
  %v227 = vadd.f32 %v121, %v210
  %v228 = vadd.f32 %v122, %v213
  %v229 = vadd.f32 %v123, %v216
  %v230 = vadd.f32 %v124, %v219
  %v231 = vadd.f32 %v125, %v222
  %232 = vst.msk [vmem:[%s3] sm:$0xff] %vm101, %v224
  %233 = vst.msk [vmem:[%s3 + $0x8] sm:$0xff] %vm101, %v225
  %234 = vst.msk [vmem:[%s3 + $0x10] sm:$0xff] %vm101, %v226
  %235 = vst.msk [vmem:[%s3 + $0x18] sm:$0xff] %vm101, %v227
  %236 = vst.msk [vmem:[%s3 + $0x20] sm:$0xff] %vm101, %v228
  %237 = vst.msk [vmem:[%s3 + $0x28] sm:$0xff] %vm101, %v229
  %238 = vst.msk [vmem:[%s3 + $0x30] sm:$0xff] %vm101, %v230
  %239 = vst.msk [vmem:[%s3 + $0x38] sm:$0xff] %vm101, %v231
  // Predicated region
  $region14: #{ema_patch_pca_noise_forward.2} parent=0 // pred_check
    _
  $region15: #{ema_patch_pca_noise_forward.2} parent=0 // pred_check_branch
    %241 = sbr.rel (0) target = $region17
  $region16: #{ema_patch_pca_noise_forward.2} parent=0 // pred_region
    _
  $region17: #{ema_patch_pca_noise_forward.2} parent=0 // pred_fallthru
    _
  // Predicated region
  $region18: #{ema_patch_pca_noise_forward.2} parent=0 // pred_check
    _
  $region19: #{ema_patch_pca_noise_forward.2} parent=0 // pred_check_branch
    %243 = sbr.rel (0) target = $region21
  $region20: #{ema_patch_pca_noise_forward.2} parent=0 // pred_region
    _
  $region21: #{ema_patch_pca_noise_forward.2} parent=0 // pred_fallthru
    _
  // Predicated region
  $region22: #{ema_patch_pca_noise_forward.2} parent=0 // pred_check
    _
  $region23: #{ema_patch_pca_noise_forward.2} parent=0 // pred_check_branch
    %245 = sbr.rel (0) target = $region25
  $region24: #{ema_patch_pca_noise_forward.2} parent=0 // pred_region
    _
  $region25: #{ema_patch_pca_noise_forward.2} parent=0 // pred_fallthru
    _
  // Predicated region
  $region26: #{ema_patch_pca_noise_forward.2} parent=0 // pred_check
    _
  $region27: #{ema_patch_pca_noise_forward.2} parent=0 // pred_check_branch
    %247 = sbr.rel (0) target = $region29
  $region28: #{ema_patch_pca_noise_forward.2} parent=0 // pred_region
    _
  $region29: #{ema_patch_pca_noise_forward.2} parent=0 // pred_fallthru
    _

// kernel: ema_patch_pca_noise_forward.3
$region0: #{ema_patch_pca_noise_forward.3}
  #allocation0 [shape = 'u32[]', space=smem, size = 0x4, offset = 0x4, fixed_abs, tag = 'smem constant byte address 0x4 - core index']
  #allocation1 [shape = 'u32[72,128]{1,0:T(1,128)}', space=vmem, size = 0x9000, scoped, tag = 'internal scratch']
  %s0 = inlined_call_operand.vmem [shape: f32[32,64], index: 0, kind: input, shape index: {}, may-alias: {0,3}]
  %s1 = inlined_call_operand.vmem [shape: bf16[32,64], index: 1, kind: input, shape index: {}]
  %s2 = inlined_call_operand.vmem [shape: bf16[64,64], index: 2, kind: input, shape index: {}]
  %s3 = inlined_call_operand.vmem [shape: f32[32,64], index: 3, kind: output, shape index: {}, may-alias: {0,3}]
  %s4 = sld [smem:[#allocation0]]
  $region22: #{ema_patch_pca_noise_forward.3} parent=0
    _
  %s6 = ssub.s32 1, %s4
  %s7 = scalar_select 0, %s6, %s4
  // Predicated region
  $region2: #{ema_patch_pca_noise_forward.3} parent=0 // pred_check
    _
  $region3: #{ema_patch_pca_noise_forward.3} parent=0 // pred_check_branch
    %9 = sbr.rel (0) target = $region5
  $region4: #{ema_patch_pca_noise_forward.3} parent=0 // pred_region
    _
  $region5: #{ema_patch_pca_noise_forward.3} parent=0 // pred_fallthru
    _
  // Predicated region
  $region6: #{ema_patch_pca_noise_forward.3} parent=0 // pred_check
    _
  $region7: #{ema_patch_pca_noise_forward.3} parent=0 // pred_check_branch
    %11 = sbr.rel (0) target = $region9
  $region8: #{ema_patch_pca_noise_forward.3} parent=0 // pred_region
    _
  $region9: #{ema_patch_pca_noise_forward.3} parent=0 // pred_fallthru
    _
  // Predicated region
  $region10: #{ema_patch_pca_noise_forward.3} parent=0 // pred_check
    _
  $region11: #{ema_patch_pca_noise_forward.3} parent=0 // pred_check_branch
    %13 = sbr.rel (0) target = $region13
  $region12: #{ema_patch_pca_noise_forward.3} parent=0 // pred_region
    _
  $region13: #{ema_patch_pca_noise_forward.3} parent=0 // pred_fallthru
    _
  %v15 = vld [vmem:[%s1] sm:$0xf]
  %v16 = vld [vmem:[%s1 + $0x4] sm:$0xf]
  %v17 = vld [vmem:[%s1 + $0x8] sm:$0xf]
  %v18 = vld [vmem:[%s1 + $0xc] sm:$0xf]
  %v19 = vld [vmem:[%s2] sm:$0xf]
  %v20 = vld [vmem:[%s2 + $0x4] sm:$0xf]
  %v21 = vld [vmem:[%s2 + $0x8] sm:$0xf]
  %v22 = vld [vmem:[%s2 + $0xc] sm:$0xf]
  %v23 = vld [vmem:[%s2 + $0x10] sm:$0xf]
  %v24 = vld [vmem:[%s2 + $0x14] sm:$0xf]
  %v25 = vld [vmem:[%s2 + $0x18] sm:$0xf]
  %v26 = vld [vmem:[%s2 + $0x1c] sm:$0xf]
  %v31 = vunpack.c.l.b16 %v15
  %v32 = vunpack.c.l.b16 %v16
  %v33 = vunpack.c.l.b16 %v17
  %v34 = vunpack.c.l.b16 %v18
  %v35 = vpack.c.b16 %v32, %v31
  %v36 = vpack.c.b16 %v34, %v33
  %v45 = vunpack.c.l.b16 %v19
  %v46 = vunpack.c.l.b16 %v20
  %v47 = vunpack.c.l.b16 %v21
  %v48 = vunpack.c.l.b16 %v22
  %v49 = vunpack.c.l.b16 %v23
  %v50 = vunpack.c.l.b16 %v24
  %v51 = vunpack.c.l.b16 %v25
  %v52 = vunpack.c.l.b16 %v26
  %v53 = vpack.c.b16 %v46, %v45
  %v54 = vpack.c.b16 %v48, %v47
  %v55 = vpack.c.b16 %v50, %v49
  %v56 = vpack.c.b16 %v52, %v51
  %vm61 = vcmask 523264
  %v63 = vsel %vm61, %v35, 0
  %v66 = vsel %vm61, %v36, 0
  %68 = vmatpush.bf16.msra.mxu0 0
  %69 = vmatpush.bf16.msra.mxu0 0
  %70 = vmatpush.bf16.msra.mxu0 0
  %71 = vmatpush.bf16.msra.mxu0 0
  %72 = vmatpush.bf16.msra.mxu0 %v56
  %73 = vmatpush.bf16.msra.mxu0 %v55
  %74 = vmatpush.bf16.msra.mxu0 %v54
  %75 = vmatpush.bf16.msra.mxu0 %v53
  %76 = vmatmul.bf16.gmra.mxu0 %v63
  %v77 = vpop.f32.mrf.mxu0
  %v78 = vadd.f32 0.0, %v77
  %v79 = vpop.f32.mrf.mxu0
  %v80 = vadd.f32 0.0, %v79
  %81 = vmatmul.bf16.gmra.mxu0 %v66
  %v82 = vpop.f32.mrf.mxu0
  %v83 = vadd.f32 0.0, %v82
  %v84 = vpop.f32.mrf.mxu0
  %v85 = vadd.f32 0.0, %v84
  %86 = vdwg.mxu0
  %v87 = vld [vmem:[%s0] sm:$0xff]
  %v88 = vld [vmem:[%s0 + $0x8] sm:$0xff]
  %v89 = vld [vmem:[%s0 + $0x10] sm:$0xff]
  %v90 = vld [vmem:[%s0 + $0x18] sm:$0xff]
  %v91 = vadd.f32 %v87, %v78
  %v92 = vadd.f32 %v88, %v80
  %v93 = vadd.f32 %v89, %v83
  %v94 = vadd.f32 %v90, %v85
  %95 = vst.msk [vmem:[%s3] sm:$0xff] %vm61, %v91
  %96 = vst.msk [vmem:[%s3 + $0x8] sm:$0xff] %vm61, %v92
  %97 = vst.msk [vmem:[%s3 + $0x10] sm:$0xff] %vm61, %v93
  %98 = vst.msk [vmem:[%s3 + $0x18] sm:$0xff] %vm61, %v94
  // Predicated region
  $region14: #{ema_patch_pca_noise_forward.3} parent=0 // pred_check
    _
  $region15: #{ema_patch_pca_noise_forward.3} parent=0 // pred_check_branch
    %100 = sbr.rel (0) target = $region17
  $region16: #{ema_patch_pca_noise_forward.3} parent=0 // pred_region
    _
  $region17: #{ema_patch_pca_noise_forward.3} parent=0 // pred_fallthru
    _
  // Predicated region
  $region18: #{ema_patch_pca_noise_forward.3} parent=0 // pred_check
    _
  $region19: #{ema_patch_pca_noise_forward.3} parent=0 // pred_check_branch
    %102 = sbr.rel (0) target = $region21
  $region20: #{ema_patch_pca_noise_forward.3} parent=0 // pred_region
    _
  $region21: #{ema_patch_pca_noise_forward.3} parent=0 // pred_fallthru
    _

</llo_original>
